<compile_context>
chip_gen: v6e
topology: v6e:2x2x1
jax: 0.10.0
libtpu: 0.0.40
codegen_flags: <defaults>
</compile_context>

<pallas_src>
import functools
import math

import jax
import jax.numpy as jnp
from jax import lax
from jax.experimental import pallas as pl
from jax.experimental.pallas import tpu as pltpu

N_EMBD = 384
BLOCK_SIZE = 256          # max sequence length (tril buffer size in torch)
NUM_HEADS = 6
HEAD_SIZE = 64            # NUM_HEADS * HEAD_SIZE == N_EMBD
DROPOUT = 0.2             # unused in eval-mode forward
Q_TILE = 128              # in-kernel query-row tile (causal skipping)


def mha_kernel(x_ref, wqkv_ref, wo_ref, bo_ref, o_ref, *,
               num_heads, head_size, q_tile):
    # x_ref: (1, T, C) bf16; wqkv: (C, 3*hdim) bf16; wo: (hdim, C) bf16;
    # bo: (1, C) f32; o_ref: (1, T, C) in the caller's dtype.
    x = x_ref[0]                                   # (T, C) bf16
    T = x.shape[0]
    hdim = num_heads * head_size

    # Fused QKV projection: one (T, C) x (C, 3*hdim) bf16 MXU matmul, f32 acc.
    qkv = jnp.dot(x, wqkv_ref[...], preferred_element_type=jnp.float32)

    scale = 1.0 / math.sqrt(head_size)
    # Fold the attention scale into q once (single (T, hdim) VPU multiply).
    # The q/k/v column splits at 0 / hdim / 2*hdim are 128-lane aligned.
    q = (qkv[:, :hdim] * scale).astype(jnp.bfloat16)
    k = qkv[:, hdim:2 * hdim].astype(jnp.bfloat16)
    v = qkv[:, 2 * hdim:].astype(jnp.bfloat16)

    n_q_tiles = (T + q_tile - 1) // q_tile
    for qi in range(n_q_tiles):                    # static unroll: query tiles
        q0 = qi * q_tile
        tq = min(q_tile, T - q0)
        kv_len = q0 + tq                           # causal: later keys all masked
        q_blk = q[q0:q0 + tq]                      # (tq, hdim) bf16

        # Causal mask for this tile (rows q0..q0+tq-1 vs keys 0..kv_len-1).
        row = lax.broadcasted_iota(jnp.int32, (tq, kv_len), 0) + q0
        col = lax.broadcasted_iota(jnp.int32, (tq, kv_len), 1)
        causal = col <= row

        head_outs = []
        for h in range(num_heads):                 # static unroll: heads
            sl = slice(h * head_size, (h + 1) * head_size)
            qh = q_blk[:, sl]                      # (tq, hs)     bf16
            kh = k[:kv_len, sl]                    # (kv_len, hs) bf16
            vh = v[:kv_len, sl]                    # (kv_len, hs) bf16
            # scores = qh @ kh^T (bf16 MXU, f32 acc); scale already folded in q.
            wei = lax.dot_general(qh, kh, (((1,), (1,)), ((), ())),
                                  preferred_element_type=jnp.float32)
            wei = jnp.where(causal, wei, -jnp.inf)
            # Numerically stable softmax numerator in f32; normalization is
            # deferred past the P@V matmul (one (tq,1) reciprocal instead of a
            # (tq, kv_len) divide). Every causal row has >=1 unmasked entry.
            wei = wei - jnp.max(wei, axis=-1, keepdims=True)
            p = jnp.exp(wei)
            denom = jnp.sum(p, axis=-1, keepdims=True)        # (tq, 1) f32
            pv = jnp.dot(p.astype(jnp.bfloat16), vh,
                         preferred_element_type=jnp.float32)  # (tq, hs) f32
            # TODO(synk): train-mode dropout on p is not reproducible vs the
            # torch RNG stream; eval-mode (identity) is applied.
            head_outs.append(pv * pl.reciprocal(denom, approx=True))

        heads = jnp.concatenate(head_outs, axis=-1)           # (tq, hdim) f32
        # Fused output projection (K=384, MXU-friendly) + bias in f32.
        y = jnp.dot(heads.astype(jnp.bfloat16), wo_ref[...],
                    preferred_element_type=jnp.float32) + bo_ref[...]
        o_ref[0, q0:q0 + tq, :] = y.astype(o_ref.dtype)


@functools.partial(jax.jit, static_argnames=("num_heads", "head_size", "q_tile"))
def multi_head_attention(x, wq, wk, wv, wo, bo, *,
                         num_heads=NUM_HEADS, head_size=HEAD_SIZE,
                         q_tile=Q_TILE):
    B, T, C = x.shape
    assert T <= BLOCK_SIZE, "sequence length exceeds block_size"
    hdim = num_heads * head_size

    # Outside the kernel: concat QKV weights and cast matmul operands to bf16
    # so the resident-weight DMAs move half the bytes and no per-grid-step
    # converts run inside the kernel. Bias stays f32 (added to the f32 acc).
    wqkv = jnp.concatenate([wq, wk, wv], axis=1).astype(jnp.bfloat16)
    wo_bf = wo.astype(jnp.bfloat16)
    x_bf = x.astype(jnp.bfloat16)
    bo_f32 = bo.astype(jnp.float32)

    kernel = functools.partial(mha_kernel, num_heads=num_heads,
                               head_size=head_size, q_tile=min(q_tile, T))
    # TODO(synk): a second "parallel" grid axis over query tiles would keep
    # both v7x TensorCores busy when B is very small, at the cost of
    # re-projecting K/V per tile; batch-parallel is kept here (B >= 2).
    return pl.pallas_call(
        kernel,
        out_shape=jax.ShapeDtypeStruct((B, T, C), x.dtype),
        grid_spec=pltpu.PrefetchScalarGridSpec(
            num_scalar_prefetch=0,
            grid=(B,),
            in_specs=[
                pl.BlockSpec((1, T, C), lambda b: (b, 0, 0)),    # x, one batch
                pl.BlockSpec((C, 3 * hdim), lambda b: (0, 0)),   # Wqkv (resident)
                pl.BlockSpec((hdim, C), lambda b: (0, 0)),       # Wproj (resident)
                pl.BlockSpec((1, C), lambda b: (0, 0)),          # bproj
            ],
            out_specs=pl.BlockSpec((1, T, C), lambda b: (b, 0, 0)),
        ),
        compiler_params=pltpu.CompilerParams(
            dimension_semantics=("parallel",),        # megacore over batch
            vmem_limit_bytes=32 * 1024 * 1024,        # ~6-12 MiB actual footprint
        ),
    )(x_bf, wqkv, wo_bf, bo_f32)


def init_params(key, n_embd=N_EMBD, num_heads=NUM_HEADS, head_size=HEAD_SIZE,
                dtype=jnp.float32):
    """Mirror torch.nn.Linear defaults: U(-1/sqrt(fan_in), 1/sqrt(fan_in)).
    K/Q/V are bias-free (fan_in = n_embd); proj has bias (fan_in = H*hs).
    Weights are stored transposed (in_features, out_features) so the kernel
    does x @ W directly; per-head K/Q/V weights are stacked along columns."""
    kq, kk, kv, kw, kb = jax.random.split(key, 5)
    hdim = num_heads * head_size
    b_in = 1.0 / math.sqrt(n_embd)
    b_pj = 1.0 / math.sqrt(hdim)
    wq = jax.random.uniform(kq, (n_embd, hdim), dtype, -b_in, b_in)
    wk = jax.random.uniform(kk, (n_embd, hdim), dtype, -b_in, b_in)
    wv = jax.random.uniform(kv, (n_embd, hdim), dtype, -b_in, b_in)
    wo = jax.random.uniform(kw, (hdim, n_embd), dtype, -b_pj, b_pj)
    bo = jax.random.uniform(kb, (1, n_embd), dtype, -b_pj, b_pj)
    return wq, wk, wv, wo, bo


def mha_ref(x, wq, wk, wv, wo, bo, *, num_heads=NUM_HEADS, head_size=HEAD_SIZE):
    """Pure-JAX f32 reference (eval-mode dropout)."""
    B, T, C = x.shape
    q = (x @ wq).reshape(B, T, num_heads, head_size).transpose(0, 2, 1, 3)
    k = (x @ wk).reshape(B, T, num_heads, head_size).transpose(0, 2, 1, 3)
    v = (x @ wv).reshape(B, T, num_heads, head_size).transpose(0, 2, 1, 3)
    wei = jnp.einsum("bhqd,bhkd->bhqk", q, k) * (head_size ** -0.5)
    mask = jnp.tril(jnp.ones((T, T), dtype=bool))
    wei = jnp.where(mask, wei, -jnp.inf)
    wei = jax.nn.softmax(wei, axis=-1)
    out = jnp.einsum("bhqk,bhkd->bhqd", wei, v)
    out = out.transpose(0, 2, 1, 3).reshape(B, T, num_heads * head_size)
    return out @ wo + bo[0]


if __name__ == "__main__":
    key = jax.random.PRNGKey(0)
    kx, kp, kx2 = jax.random.split(key, 3)

    wq, wk, wv, wo, bo = init_params(kp)

    # Small shape (single query tile path).
    B, T = 2, 8
    x = jax.random.normal(kx, (B, T, N_EMBD), jnp.float32)
    y = jax.block_until_ready(multi_head_attention(x, wq, wk, wv, wo, bo))
    y_ref = mha_ref(x, wq, wk, wv, wo, bo)
    assert y.shape == (B, T, N_EMBD)
    # bf16 matmul operands -> loosened tolerance vs the f32 reference.
    assert jnp.allclose(y, y_ref, atol=3e-2, rtol=3e-2), "mismatch (small T)"

    # Full block_size (exercises multi-tile causal-skipping path).
    T2 = BLOCK_SIZE
    x2 = jax.random.normal(kx2, (B, T2, N_EMBD), jnp.float32)
    y2 = jax.block_until_ready(multi_head_attention(x2, wq, wk, wv, wo, bo))
    y2_ref = mha_ref(x2, wq, wk, wv, wo, bo)
    assert y2.shape == (B, T2, N_EMBD)
    assert jnp.allclose(y2, y2_ref, atol=3e-2, rtol=3e-2), "mismatch (T=256)"

    print("KERNEL_OK")
</pallas_src>

<mosaic_0001>
module attributes {stable_mosaic.version = 11 : i64} {
  func.func @mha_kernel(%arg0: i32, %arg1: memref<1x8x384xbf16, #tpu.memory_space<vmem>>, %arg2: memref<384x1152xbf16, #tpu.memory_space<vmem>>, %arg3: memref<384x384xbf16, #tpu.memory_space<vmem>>, %arg4: memref<1x384xf32, #tpu.memory_space<vmem>>, %arg5: memref<1x8x384xf32, #tpu.memory_space<vmem>>) attributes {dimension_semantics = [#tpu.dimension_semantics<parallel>], iteration_bounds = array<i64: 2>, scalar_prefetch = 0 : i64, scratch_operands = 0 : i64, tpu.core_type = #tpu.core_type<tc>, window_params = [{transform_indices = @transform_0, window_bounds = array<i64: 1, 8, 384>}, {pipeline_mode = #tpu.pipeline_mode<synchronous>, transform_indices = @transform_1, window_bounds = array<i64: 384, 1152>}, {pipeline_mode = #tpu.pipeline_mode<synchronous>, transform_indices = @transform_2, window_bounds = array<i64: 384, 384>}, {pipeline_mode = #tpu.pipeline_mode<synchronous>, transform_indices = @transform_3, window_bounds = array<i64: 1, 384>}, {transform_indices = @transform_4, window_bounds = array<i64: 1, 8, 384>}]} {
    %c0 = arith.constant 0 : index
    %c0_0 = arith.constant 0 : index
    %c0_1 = arith.constant 0 : index
    %0 = vector.load %arg1[%c0, %c0_0, %c0_1] : memref<1x8x384xbf16, #tpu.memory_space<vmem>>, vector<1x8x384xbf16>
    %1 = vector.shape_cast %0 : vector<1x8x384xbf16> to vector<8x384xbf16>
    %c0_2 = arith.constant 0 : index
    %c0_3 = arith.constant 0 : index
    %2 = vector.load %arg2[%c0_2, %c0_3] : memref<384x1152xbf16, #tpu.memory_space<vmem>>, vector<384x1152xbf16>
    %cst = arith.constant dense<0.000000e+00> : vector<8x1152xf32>
    %3 = tpu.matmul %1, %2, %cst {dimension_numbers = #tpu.dot_dimension_numbers<[1], [0], [0], [1], [0, 0, 1, 1], [], []>} : vector<8x384xbf16>, vector<384x1152xbf16>, vector<8x1152xf32> -> vector<8x1152xf32>
    %4 = vector.extract_strided_slice %3 {offsets = [0, 0], sizes = [8, 384], strides = [1, 1]} : vector<8x1152xf32> to vector<8x384xf32>
    %cst_4 = arith.constant 1.250000e-01 : f32
    %5 = vector.broadcast %cst_4 : f32 to vector<8x384xf32>
    %6 = arith.mulf %4, %5 : vector<8x384xf32>
    %7 = arith.truncf %6 : vector<8x384xf32> to vector<8x384xbf16>
    %8 = vector.extract_strided_slice %3 {offsets = [0, 384], sizes = [8, 384], strides = [1, 1]} : vector<8x1152xf32> to vector<8x384xf32>
    %9 = arith.truncf %8 : vector<8x384xf32> to vector<8x384xbf16>
    %10 = vector.extract_strided_slice %3 {offsets = [0, 768], sizes = [8, 384], strides = [1, 1]} : vector<8x1152xf32> to vector<8x384xf32>
    %11 = arith.truncf %10 : vector<8x384xf32> to vector<8x384xbf16>
    %12 = tpu.iota {dimensions = array<i32: 0>} : vector<8x8xi32>
    %c0_i32 = arith.constant 0 : i32
    %13 = vector.broadcast %c0_i32 : i32 to vector<8x8xi32>
    %14 = arith.addi %12, %13 : vector<8x8xi32>
    %15 = tpu.iota {dimensions = array<i32: 1>} : vector<8x8xi32>
    %16 = arith.cmpi sle, %15, %14 : vector<8x8xi32>
    %17 = vector.extract_strided_slice %7 {offsets = [0, 0], sizes = [8, 64], strides = [1, 1]} : vector<8x384xbf16> to vector<8x64xbf16>
    %18 = vector.extract_strided_slice %9 {offsets = [0, 0], sizes = [8, 64], strides = [1, 1]} : vector<8x384xbf16> to vector<8x64xbf16>
    %19 = vector.extract_strided_slice %11 {offsets = [0, 0], sizes = [8, 64], strides = [1, 1]} : vector<8x384xbf16> to vector<8x64xbf16>
    %cst_5 = arith.constant dense<0.000000e+00> : vector<8x8xf32>
    %20 = tpu.matmul %17, %18, %cst_5 {dimension_numbers = #tpu.dot_dimension_numbers<[1], [1], [0], [0], [0, 0, 1, 0], [], []>} : vector<8x64xbf16>, vector<8x64xbf16>, vector<8x8xf32> -> vector<8x8xf32>
    %cst_6 = arith.constant 0xFF800000 : f32
    %21 = vector.broadcast %cst_6 : f32 to vector<8x8xf32>
    %22 = arith.select %16, %20, %21 : vector<8x8xi1>, vector<8x8xf32>
    %cst_7 = arith.constant dense<0xFF800000> : vector<8xf32>
    %23 = vector.multi_reduction <maximumf>, %22, %cst_7 [1] : vector<8x8xf32> to vector<8xf32>
    %24 = vector.shape_cast %23 : vector<8xf32> to vector<8x1xf32>
    %25 = vector.broadcast %24 : vector<8x1xf32> to vector<8x8xf32>
    %26 = arith.subf %22, %25 : vector<8x8xf32>
    %27 = math.exp %26 : vector<8x8xf32>
    %cst_8 = arith.constant dense<0.000000e+00> : vector<8xf32>
    %28 = vector.multi_reduction <add>, %27, %cst_8 [1] : vector<8x8xf32> to vector<8xf32>
    %29 = vector.shape_cast %28 : vector<8xf32> to vector<8x1xf32>
    %30 = arith.truncf %27 : vector<8x8xf32> to vector<8x8xbf16>
    %cst_9 = arith.constant dense<0.000000e+00> : vector<8x64xf32>
    %31 = tpu.matmul %30, %19, %cst_9 {dimension_numbers = #tpu.dot_dimension_numbers<[1], [0], [0], [1], [0, 0, 1, 1], [], []>} : vector<8x8xbf16>, vector<8x64xbf16>, vector<8x64xf32> -> vector<8x64xf32>
    %32 = tpu.reciprocal %29 {approx = true} : vector<8x1xf32> -> vector<8x1xf32>
    %33 = vector.broadcast %32 : vector<8x1xf32> to vector<8x64xf32>
    %34 = arith.mulf %31, %33 : vector<8x64xf32>
    %35 = vector.extract_strided_slice %7 {offsets = [0, 64], sizes = [8, 64], strides = [1, 1]} : vector<8x384xbf16> to vector<8x64xbf16>
    %36 = vector.extract_strided_slice %9 {offsets = [0, 64], sizes = [8, 64], strides = [1, 1]} : vector<8x384xbf16> to vector<8x64xbf16>
    %37 = vector.extract_strided_slice %11 {offsets = [0, 64], sizes = [8, 64], strides = [1, 1]} : vector<8x384xbf16> to vector<8x64xbf16>
    %cst_10 = arith.constant dense<0.000000e+00> : vector<8x8xf32>
    %38 = tpu.matmul %35, %36, %cst_10 {dimension_numbers = #tpu.dot_dimension_numbers<[1], [1], [0], [0], [0, 0, 1, 0], [], []>} : vector<8x64xbf16>, vector<8x64xbf16>, vector<8x8xf32> -> vector<8x8xf32>
    %cst_11 = arith.constant 0xFF800000 : f32
    %39 = vector.broadcast %cst_11 : f32 to vector<8x8xf32>
    %40 = arith.select %16, %38, %39 : vector<8x8xi1>, vector<8x8xf32>
    %cst_12 = arith.constant dense<0xFF800000> : vector<8xf32>
    %41 = vector.multi_reduction <maximumf>, %40, %cst_12 [1] : vector<8x8xf32> to vector<8xf32>
    %42 = vector.shape_cast %41 : vector<8xf32> to vector<8x1xf32>
    %43 = vector.broadcast %42 : vector<8x1xf32> to vector<8x8xf32>
    %44 = arith.subf %40, %43 : vector<8x8xf32>
    %45 = math.exp %44 : vector<8x8xf32>
    %cst_13 = arith.constant dense<0.000000e+00> : vector<8xf32>
    %46 = vector.multi_reduction <add>, %45, %cst_13 [1] : vector<8x8xf32> to vector<8xf32>
    %47 = vector.shape_cast %46 : vector<8xf32> to vector<8x1xf32>
    %48 = arith.truncf %45 : vector<8x8xf32> to vector<8x8xbf16>
    %cst_14 = arith.constant dense<0.000000e+00> : vector<8x64xf32>
    %49 = tpu.matmul %48, %37, %cst_14 {dimension_numbers = #tpu.dot_dimension_numbers<[1], [0], [0], [1], [0, 0, 1, 1], [], []>} : vector<8x8xbf16>, vector<8x64xbf16>, vector<8x64xf32> -> vector<8x64xf32>
    %50 = tpu.reciprocal %47 {approx = true} : vector<8x1xf32> -> vector<8x1xf32>
    %51 = vector.broadcast %50 : vector<8x1xf32> to vector<8x64xf32>
    %52 = arith.mulf %49, %51 : vector<8x64xf32>
    %53 = vector.extract_strided_slice %7 {offsets = [0, 128], sizes = [8, 64], strides = [1, 1]} : vector<8x384xbf16> to vector<8x64xbf16>
    %54 = vector.extract_strided_slice %9 {offsets = [0, 128], sizes = [8, 64], strides = [1, 1]} : vector<8x384xbf16> to vector<8x64xbf16>
    %55 = vector.extract_strided_slice %11 {offsets = [0, 128], sizes = [8, 64], strides = [1, 1]} : vector<8x384xbf16> to vector<8x64xbf16>
    %cst_15 = arith.constant dense<0.000000e+00> : vector<8x8xf32>
    %56 = tpu.matmul %53, %54, %cst_15 {dimension_numbers = #tpu.dot_dimension_numbers<[1], [1], [0], [0], [0, 0, 1, 0], [], []>} : vector<8x64xbf16>, vector<8x64xbf16>, vector<8x8xf32> -> vector<8x8xf32>
    %cst_16 = arith.constant 0xFF800000 : f32
    %57 = vector.broadcast %cst_16 : f32 to vector<8x8xf32>
    %58 = arith.select %16, %56, %57 : vector<8x8xi1>, vector<8x8xf32>
    %cst_17 = arith.constant dense<0xFF800000> : vector<8xf32>
    %59 = vector.multi_reduction <maximumf>, %58, %cst_17 [1] : vector<8x8xf32> to vector<8xf32>
    %60 = vector.shape_cast %59 : vector<8xf32> to vector<8x1xf32>
    %61 = vector.broadcast %60 : vector<8x1xf32> to vector<8x8xf32>
    %62 = arith.subf %58, %61 : vector<8x8xf32>
    %63 = math.exp %62 : vector<8x8xf32>
    %cst_18 = arith.constant dense<0.000000e+00> : vector<8xf32>
    %64 = vector.multi_reduction <add>, %63, %cst_18 [1] : vector<8x8xf32> to vector<8xf32>
    %65 = vector.shape_cast %64 : vector<8xf32> to vector<8x1xf32>
    %66 = arith.truncf %63 : vector<8x8xf32> to vector<8x8xbf16>
    %cst_19 = arith.constant dense<0.000000e+00> : vector<8x64xf32>
    %67 = tpu.matmul %66, %55, %cst_19 {dimension_numbers = #tpu.dot_dimension_numbers<[1], [0], [0], [1], [0, 0, 1, 1], [], []>} : vector<8x8xbf16>, vector<8x64xbf16>, vector<8x64xf32> -> vector<8x64xf32>
    %68 = tpu.reciprocal %65 {approx = true} : vector<8x1xf32> -> vector<8x1xf32>
    %69 = vector.broadcast %68 : vector<8x1xf32> to vector<8x64xf32>
    %70 = arith.mulf %67, %69 : vector<8x64xf32>
    %71 = vector.extract_strided_slice %7 {offsets = [0, 192], sizes = [8, 64], strides = [1, 1]} : vector<8x384xbf16> to vector<8x64xbf16>
    %72 = vector.extract_strided_slice %9 {offsets = [0, 192], sizes = [8, 64], strides = [1, 1]} : vector<8x384xbf16> to vector<8x64xbf16>
    %73 = vector.extract_strided_slice %11 {offsets = [0, 192], sizes = [8, 64], strides = [1, 1]} : vector<8x384xbf16> to vector<8x64xbf16>
    %cst_20 = arith.constant dense<0.000000e+00> : vector<8x8xf32>
    %74 = tpu.matmul %71, %72, %cst_20 {dimension_numbers = #tpu.dot_dimension_numbers<[1], [1], [0], [0], [0, 0, 1, 0], [], []>} : vector<8x64xbf16>, vector<8x64xbf16>, vector<8x8xf32> -> vector<8x8xf32>
    %cst_21 = arith.constant 0xFF800000 : f32
    %75 = vector.broadcast %cst_21 : f32 to vector<8x8xf32>
    %76 = arith.select %16, %74, %75 : vector<8x8xi1>, vector<8x8xf32>
    %cst_22 = arith.constant dense<0xFF800000> : vector<8xf32>
    %77 = vector.multi_reduction <maximumf>, %76, %cst_22 [1] : vector<8x8xf32> to vector<8xf32>
    %78 = vector.shape_cast %77 : vector<8xf32> to vector<8x1xf32>
    %79 = vector.broadcast %78 : vector<8x1xf32> to vector<8x8xf32>
    %80 = arith.subf %76, %79 : vector<8x8xf32>
    %81 = math.exp %80 : vector<8x8xf32>
    %cst_23 = arith.constant dense<0.000000e+00> : vector<8xf32>
    %82 = vector.multi_reduction <add>, %81, %cst_23 [1] : vector<8x8xf32> to vector<8xf32>
    %83 = vector.shape_cast %82 : vector<8xf32> to vector<8x1xf32>
    %84 = arith.truncf %81 : vector<8x8xf32> to vector<8x8xbf16>
    %cst_24 = arith.constant dense<0.000000e+00> : vector<8x64xf32>
    %85 = tpu.matmul %84, %73, %cst_24 {dimension_numbers = #tpu.dot_dimension_numbers<[1], [0], [0], [1], [0, 0, 1, 1], [], []>} : vector<8x8xbf16>, vector<8x64xbf16>, vector<8x64xf32> -> vector<8x64xf32>
    %86 = tpu.reciprocal %83 {approx = true} : vector<8x1xf32> -> vector<8x1xf32>
    %87 = vector.broadcast %86 : vector<8x1xf32> to vector<8x64xf32>
    %88 = arith.mulf %85, %87 : vector<8x64xf32>
    %89 = vector.extract_strided_slice %7 {offsets = [0, 256], sizes = [8, 64], strides = [1, 1]} : vector<8x384xbf16> to vector<8x64xbf16>
    %90 = vector.extract_strided_slice %9 {offsets = [0, 256], sizes = [8, 64], strides = [1, 1]} : vector<8x384xbf16> to vector<8x64xbf16>
    %91 = vector.extract_strided_slice %11 {offsets = [0, 256], sizes = [8, 64], strides = [1, 1]} : vector<8x384xbf16> to vector<8x64xbf16>
    %cst_25 = arith.constant dense<0.000000e+00> : vector<8x8xf32>
    %92 = tpu.matmul %89, %90, %cst_25 {dimension_numbers = #tpu.dot_dimension_numbers<[1], [1], [0], [0], [0, 0, 1, 0], [], []>} : vector<8x64xbf16>, vector<8x64xbf16>, vector<8x8xf32> -> vector<8x8xf32>
    %cst_26 = arith.constant 0xFF800000 : f32
    %93 = vector.broadcast %cst_26 : f32 to vector<8x8xf32>
    %94 = arith.select %16, %92, %93 : vector<8x8xi1>, vector<8x8xf32>
    %cst_27 = arith.constant dense<0xFF800000> : vector<8xf32>
    %95 = vector.multi_reduction <maximumf>, %94, %cst_27 [1] : vector<8x8xf32> to vector<8xf32>
    %96 = vector.shape_cast %95 : vector<8xf32> to vector<8x1xf32>
    %97 = vector.broadcast %96 : vector<8x1xf32> to vector<8x8xf32>
    %98 = arith.subf %94, %97 : vector<8x8xf32>
    %99 = math.exp %98 : vector<8x8xf32>
    %cst_28 = arith.constant dense<0.000000e+00> : vector<8xf32>
    %100 = vector.multi_reduction <add>, %99, %cst_28 [1] : vector<8x8xf32> to vector<8xf32>
    %101 = vector.shape_cast %100 : vector<8xf32> to vector<8x1xf32>
    %102 = arith.truncf %99 : vector<8x8xf32> to vector<8x8xbf16>
    %cst_29 = arith.constant dense<0.000000e+00> : vector<8x64xf32>
    %103 = tpu.matmul %102, %91, %cst_29 {dimension_numbers = #tpu.dot_dimension_numbers<[1], [0], [0], [1], [0, 0, 1, 1], [], []>} : vector<8x8xbf16>, vector<8x64xbf16>, vector<8x64xf32> -> vector<8x64xf32>
    %104 = tpu.reciprocal %101 {approx = true} : vector<8x1xf32> -> vector<8x1xf32>
    %105 = vector.broadcast %104 : vector<8x1xf32> to vector<8x64xf32>
    %106 = arith.mulf %103, %105 : vector<8x64xf32>
    %107 = vector.extract_strided_slice %7 {offsets = [0, 320], sizes = [8, 64], strides = [1, 1]} : vector<8x384xbf16> to vector<8x64xbf16>
    %108 = vector.extract_strided_slice %9 {offsets = [0, 320], sizes = [8, 64], strides = [1, 1]} : vector<8x384xbf16> to vector<8x64xbf16>
    %109 = vector.extract_strided_slice %11 {offsets = [0, 320], sizes = [8, 64], strides = [1, 1]} : vector<8x384xbf16> to vector<8x64xbf16>
    %cst_30 = arith.constant dense<0.000000e+00> : vector<8x8xf32>
    %110 = tpu.matmul %107, %108, %cst_30 {dimension_numbers = #tpu.dot_dimension_numbers<[1], [1], [0], [0], [0, 0, 1, 0], [], []>} : vector<8x64xbf16>, vector<8x64xbf16>, vector<8x8xf32> -> vector<8x8xf32>
    %cst_31 = arith.constant 0xFF800000 : f32
    %111 = vector.broadcast %cst_31 : f32 to vector<8x8xf32>
    %112 = arith.select %16, %110, %111 : vector<8x8xi1>, vector<8x8xf32>
    %cst_32 = arith.constant dense<0xFF800000> : vector<8xf32>
    %113 = vector.multi_reduction <maximumf>, %112, %cst_32 [1] : vector<8x8xf32> to vector<8xf32>
    %114 = vector.shape_cast %113 : vector<8xf32> to vector<8x1xf32>
    %115 = vector.broadcast %114 : vector<8x1xf32> to vector<8x8xf32>
    %116 = arith.subf %112, %115 : vector<8x8xf32>
    %117 = math.exp %116 : vector<8x8xf32>
    %cst_33 = arith.constant dense<0.000000e+00> : vector<8xf32>
    %118 = vector.multi_reduction <add>, %117, %cst_33 [1] : vector<8x8xf32> to vector<8xf32>
    %119 = vector.shape_cast %118 : vector<8xf32> to vector<8x1xf32>
    %120 = arith.truncf %117 : vector<8x8xf32> to vector<8x8xbf16>
    %cst_34 = arith.constant dense<0.000000e+00> : vector<8x64xf32>
    %121 = tpu.matmul %120, %109, %cst_34 {dimension_numbers = #tpu.dot_dimension_numbers<[1], [0], [0], [1], [0, 0, 1, 1], [], []>} : vector<8x8xbf16>, vector<8x64xbf16>, vector<8x64xf32> -> vector<8x64xf32>
    %122 = tpu.reciprocal %119 {approx = true} : vector<8x1xf32> -> vector<8x1xf32>
    %123 = vector.broadcast %122 : vector<8x1xf32> to vector<8x64xf32>
    %124 = arith.mulf %121, %123 : vector<8x64xf32>
    %125 = tpu.concatenate %34, %52, %70, %88, %106, %124 in 1 : vector<8x64xf32>, vector<8x64xf32>, vector<8x64xf32>, vector<8x64xf32>, vector<8x64xf32>, vector<8x64xf32> -> vector<8x384xf32>
    %126 = arith.truncf %125 : vector<8x384xf32> to vector<8x384xbf16>
    %c0_35 = arith.constant 0 : index
    %c0_36 = arith.constant 0 : index
    %127 = vector.load %arg3[%c0_35, %c0_36] : memref<384x384xbf16, #tpu.memory_space<vmem>>, vector<384x384xbf16>
    %cst_37 = arith.constant dense<0.000000e+00> : vector<8x384xf32>
    %128 = tpu.matmul %126, %127, %cst_37 {dimension_numbers = #tpu.dot_dimension_numbers<[1], [0], [0], [1], [0, 0, 1, 1], [], []>} : vector<8x384xbf16>, vector<384x384xbf16>, vector<8x384xf32> -> vector<8x384xf32>
    %c0_38 = arith.constant 0 : index
    %c0_39 = arith.constant 0 : index
    %129 = vector.load %arg4[%c0_38, %c0_39] : memref<1x384xf32, #tpu.memory_space<vmem>>, vector<1x384xf32>
    %130 = vector.broadcast %129 : vector<1x384xf32> to vector<8x384xf32>
    %131 = arith.addf %128, %130 : vector<8x384xf32>
    %c0_40 = arith.constant 0 : index
    %c0_41 = arith.constant 0 : index
    %c0_42 = arith.constant 0 : index
    %132 = vector.load %arg5[%c0_40, %c0_41, %c0_42] : memref<1x8x384xf32, #tpu.memory_space<vmem>>, vector<1x8x384xf32>
    %133 = vector.shape_cast %132 : vector<1x8x384xf32> to vector<8x384xf32>
    %134 = vector.shape_cast %131 : vector<8x384xf32> to vector<1x8x384xf32>
    tpu.vector_store %arg5[%c0_40, %c0_41, %c0_42], %134 {strides = array<i32>} : memref<1x8x384xf32, #tpu.memory_space<vmem>>, vector<1x8x384xf32>,
    return
  }
  func.func @transform_0(%arg0: i32) -> (i32, i32, i32) {
    %c0_i32 = arith.constant 0 : i32
    %c0_i32_0 = arith.constant 0 : i32
    %c0_i32_1 = arith.constant 0 : i32
    return %arg0, %c0_i32, %c0_i32_0 : i32, i32, i32
  }
  func.func @transform_1(%arg0: i32) -> (i32, i32) {
    %c0_i32 = arith.constant 0 : i32
    %c0_i32_0 = arith.constant 0 : i32
    %c0_i32_1 = arith.constant 0 : i32
    return %c0_i32, %c0_i32_0 : i32, i32
  }
  func.func @transform_2(%arg0: i32) -> (i32, i32) {
    %c0_i32 = arith.constant 0 : i32
    %c0_i32_0 = arith.constant 0 : i32
    %c0_i32_1 = arith.constant 0 : i32
    return %c0_i32, %c0_i32_0 : i32, i32
  }
  func.func @transform_3(%arg0: i32) -> (i32, i32) {
    %c0_i32 = arith.constant 0 : i32
    %c0_i32_0 = arith.constant 0 : i32
    %c0_i32_1 = arith.constant 0 : i32
    return %c0_i32, %c0_i32_0 : i32, i32
  }
  func.func @transform_4(%arg0: i32) -> (i32, i32, i32) {
    %c0_i32 = arith.constant 0 : i32
    %c0_i32_0 = arith.constant 0 : i32
    %c0_i32_1 = arith.constant 0 : i32
    return %arg0, %c0_i32, %c0_i32_0 : i32, i32, i32
  }
}

</mosaic_0001>

<llo_original>
// kernel: multi_head_attention.1
$region0: #{multi_head_attention.1}
  #allocation0 [shape = 'u32[]', space=smem, size = 0x4, offset = 0x4, fixed_abs, tag = 'smem constant byte address 0x4 - core index']
  #allocation1 [shape = 'u32[144,128]{1,0:T(1,128)}', space=vmem, size = 0x12000, scoped, tag = 'internal scratch']
  %s0 = inlined_call_operand.vmem [shape: bf16[2,8,384], index: 0, kind: input, shape index: {}]
  %s1 = inlined_call_operand.vmem [shape: bf16[384,1152], index: 1, kind: input, shape index: {}]
  %s2 = inlined_call_operand.vmem [shape: bf16[384,384], index: 2, kind: input, shape index: {}]
  %s3 = inlined_call_operand.vmem [shape: f32[1,384], index: 3, kind: input, shape index: {}]
  %s4 = inlined_call_operand.hbm [shape: f32[2,8,384], index: 4, kind: output, shape index: {}]
  %s5 = sld [smem:[#allocation0]]
  $region49: #{multi_head_attention.1} parent=0
    _
  %s7 = ssub.s32 1, %s5
  %s8 = scalar_select 0, %s7, %s5
  $region1: #{multi_head_attention.1} parent=0
    #allocation2 [shape = 'u8[24576]{0}', space=vmem, size = 0x6000, scoped, tag = 'output window, operand 0']
    #allocation3 [shape = 's32[2]{0}', space=sflag, size = 0x8, scoped, tag = 'scoped memory for multi_head_attention.1']
    %9 = vsyncpa [#allocation3], 0
    %s10 = scalar_lea.sflag [#allocation3], 1
    %11 = vsyncpa %s10, 0
    loop: start=0, step=1, limit=4
    $region2: #{multi_head_attention.1} parent=1 // loop_pre_header
      _
    $region3: #{multi_head_attention.1} parent=1 // loop_header
      %s13 = sphi 0, %s17
      %p14 = scmp.ge.s32.totalorder %s13, 4
      %s23 = sphi 0, %s25
      %s26 = sphi 0, %s23
      %s27 = sphi 0, %s26
      %s43 = sphi 0, %s27
      %s47 = sphi 0, %s47
      %s49 = sphi 0, %s47
      %s50 = sphi 0, %s49
      %s64 = sphi 0, %s50
      %s68 = sphi 0, %s68
      %s70 = sphi 0, %s68
      %s71 = sphi 0, %s70
      %s85 = sphi 0, %s71
      %s89 = sphi 0, %s89
      %s91 = sphi 0, %s89
      %s92 = sphi 0, %s91
      %s106 = sphi 0, %s92
      %s112 = sphi 0, %s114
      %s115 = sphi 0, %s112
      %s116 = sphi 0, %s115
      %s132 = sphi 0, %s116
    $region4: #{multi_head_attention.1} parent=1 // loop_header_branch
      %16 = sbr.rel (%p14) target = $region8
    $region5: #{multi_head_attention.1} parent=1 // loop_body
      %s18 = ssub.s32 %s13, 1
      %s19 = ssub.s32 %s13, 2
      %s20 = sadd.s32 %s13, 1
      %s21 = ssub.s32 %s13, %s20
      %p22 = scmp.eq.s32.totalorder %s21, 0
      %s24 = sadd.s32 %s23, 1
      %s25 = scalar_select %p22, %s23, %s24
      %p28 = pneg %p22
      %p29 = scmp.eq.s32.totalorder %s13, 1
      %p30 = por %p28, %p29
      %p31 = scmp.ne.s32.totalorder %s23, %s26
      %p32 = scmp.eq.s32.totalorder %s13, 0
      %p33 = por %p31, %p32
      %p34 = scmp.ne.s32.totalorder %s23, %s26
      %p35 = scmp.eq.s32.totalorder %s18, 1
      %p36 = por %p34, %p35
      %p37 = scmp.ne.s32.totalorder %s26, %s27
      %p38 = scmp.eq.s32.totalorder %s18, 0
      %p39 = por %p37, %p38
      %p40 = scmp.ne.s32.totalorder %s26, %s27
      %p41 = scmp.eq.s32.totalorder %s19, 1
      %p42 = por %p40, %p41
      %p44 = scmp.ne.s32.totalorder %s27, %s43
      %p45 = scmp.eq.s32.totalorder %s19, 0
      %p46 = por %p44, %p45
      %s48 = sadd.s32 %s47, 1
      %p51 = scmp.eq.s32.totalorder %s13, 1
      %p52 = scmp.ne.s32.totalorder %s47, %s49
      %p53 = scmp.eq.s32.totalorder %s13, 0
      %p54 = por %p52, %p53
      %p55 = scmp.ne.s32.totalorder %s47, %s49
      %p56 = scmp.eq.s32.totalorder %s18, 1
      %p57 = por %p55, %p56
      %p58 = scmp.ne.s32.totalorder %s49, %s50
      %p59 = scmp.eq.s32.totalorder %s18, 0
      %p60 = por %p58, %p59
      %p61 = scmp.ne.s32.totalorder %s49, %s50
      %p62 = scmp.eq.s32.totalorder %s19, 1
      %p63 = por %p61, %p62
      %p65 = scmp.ne.s32.totalorder %s50, %s64
      %p66 = scmp.eq.s32.totalorder %s19, 0
      %p67 = por %p65, %p66
      %s69 = sadd.s32 %s68, 1
      %p72 = scmp.eq.s32.totalorder %s13, 1
      %p73 = scmp.ne.s32.totalorder %s68, %s70
      %p74 = scmp.eq.s32.totalorder %s13, 0
      %p75 = por %p73, %p74
      %p76 = scmp.ne.s32.totalorder %s68, %s70
      %p77 = scmp.eq.s32.totalorder %s18, 1
      %p78 = por %p76, %p77
      %p79 = scmp.ne.s32.totalorder %s70, %s71
      %p80 = scmp.eq.s32.totalorder %s18, 0
      %p81 = por %p79, %p80
      %p82 = scmp.ne.s32.totalorder %s70, %s71
      %p83 = scmp.eq.s32.totalorder %s19, 1
      %p84 = por %p82, %p83
      %p86 = scmp.ne.s32.totalorder %s71, %s85
      %p87 = scmp.eq.s32.totalorder %s19, 0
      %p88 = por %p86, %p87
      %s90 = sadd.s32 %s89, 1
      %p93 = scmp.eq.s32.totalorder %s13, 1
      %p94 = scmp.ne.s32.totalorder %s89, %s91
      %p95 = scmp.eq.s32.totalorder %s13, 0
      %p96 = por %p94, %p95
      %p97 = scmp.ne.s32.totalorder %s89, %s91
      %p98 = scmp.eq.s32.totalorder %s18, 1
      %p99 = por %p97, %p98
      %p100 = scmp.ne.s32.totalorder %s91, %s92
      %p101 = scmp.eq.s32.totalorder %s18, 0
      %p102 = por %p100, %p101
      %p103 = scmp.ne.s32.totalorder %s91, %s92
      %p104 = scmp.eq.s32.totalorder %s19, 1
      %p105 = por %p103, %p104
      %p107 = scmp.ne.s32.totalorder %s92, %s106
      %p108 = scmp.eq.s32.totalorder %s19, 0
      %p109 = por %p107, %p108
      %s110 = ssub.s32 %s13, %s20
      %p111 = scmp.eq.s32.totalorder %s110, 0
      %s113 = sadd.s32 %s112, 1
      %s114 = scalar_select %p111, %s112, %s113
      %p117 = pneg %p111
      %p118 = scmp.eq.s32.totalorder %s13, 1
      %p119 = por %p117, %p118
      %p120 = scmp.ne.s32.totalorder %s112, %s115
      %p121 = scmp.eq.s32.totalorder %s13, 0
      %p122 = por %p120, %p121
      %p123 = scmp.ne.s32.totalorder %s112, %s115
      %p124 = scmp.eq.s32.totalorder %s18, 1
      %p125 = por %p123, %p124
      %p126 = scmp.ne.s32.totalorder %s115, %s116
      %p127 = scmp.eq.s32.totalorder %s18, 0
      %p128 = por %p126, %p127
      %p129 = scmp.ne.s32.totalorder %s115, %s116
      %p130 = scmp.eq.s32.totalorder %s19, 1
      %p131 = por %p129, %p130
      %p133 = scmp.ne.s32.totalorder %s116, %s132
      %p134 = scmp.eq.s32.totalorder %s19, 0
      %p135 = por %p133, %p134
      %p136 = scmp.le.s32.totalorder 1, %s13
      %p137 = scmp.lt.s32.totalorder %s13, 3
      %p138 = pnand %p136, %p137
      %p139 = pneg %p138
      // Predicated region
      $region9: #{multi_head_attention.1} parent=5 // pred_check
        _
      $region10: #{multi_head_attention.1} parent=5 // pred_check_branch
        %141 = sbr.rel (%p138) target = $region12
      $region11: #{multi_head_attention.1} parent=5 // pred_region
        %s142 = ssub.s32 %s13, 1
        // Predicated region
        $region13: #{multi_head_attention.1} parent=11 // pred_check
          %p143 = pneg %p60
        $region14: #{multi_head_attention.1} parent=11 // pred_check_branch
          %145 = sbr.rel (%p143) target = $region16
        $region15: #{multi_head_attention.1} parent=11 // pred_region
          _
        $region16: #{multi_head_attention.1} parent=11 // pred_fallthru
          _
        // Predicated region
        $region17: #{multi_head_attention.1} parent=11 // pred_check
          %p146 = pneg %p81
        $region18: #{multi_head_attention.1} parent=11 // pred_check_branch
          %148 = sbr.rel (%p146) target = $region20
        $region19: #{multi_head_attention.1} parent=11 // pred_region
          _
        $region20: #{multi_head_attention.1} parent=11 // pred_fallthru
          _
        // Predicated region
        $region21: #{multi_head_attention.1} parent=11 // pred_check
          %p149 = pneg %p102
        $region22: #{multi_head_attention.1} parent=11 // pred_check_branch
          %151 = sbr.rel (%p149) target = $region24
        $region23: #{multi_head_attention.1} parent=11 // pred_region
          _
        $region24: #{multi_head_attention.1} parent=11 // pred_fallthru
          _
      $region12: #{multi_head_attention.1} parent=5 // pred_fallthru
        _
      %p152 = scmp.lt.s32.totalorder %s13, 2
      // Predicated region
      $region25: #{multi_head_attention.1} parent=5 // pred_check
        %p153 = pneg %p152
      $region26: #{multi_head_attention.1} parent=5 // pred_check_branch
        %155 = sbr.rel (%p153) target = $region28
      $region27: #{multi_head_attention.1} parent=5 // pred_region
        // Predicated region
        $region29: #{multi_head_attention.1} parent=27 // pred_check
          %p156 = pneg %p33
        $region30: #{multi_head_attention.1} parent=27 // pred_check_branch
          %158 = sbr.rel (%p156) target = $region32
        $region31: #{multi_head_attention.1} parent=27 // pred_region
          %p159 = scmp.lt.s32.totalorder %s13, 1
          %s160 = scalar_select %p159, %s13, 1
          %s161 = smul.addr %s160, 3
          %s162 = smul.addr %s161, 4
          %s163 = scalar_lea.vmem %s0, %s162
        $region32: #{multi_head_attention.1} parent=27 // pred_fallthru
          _
      $region28: #{multi_head_attention.1} parent=5 // pred_fallthru
        _
      %p164 = scmp.le.s32.totalorder 1, %s13
      %p165 = scmp.lt.s32.totalorder %s13, 3
      %p166 = pnand %p164, %p165
      %p167 = pneg %p166
      // Predicated region
      $region33: #{multi_head_attention.1} parent=5 // pred_check
        _
      $region34: #{multi_head_attention.1} parent=5 // pred_check_branch
        %169 = sbr.rel (%p166) target = $region36
      $region35: #{multi_head_attention.1} parent=5 // pred_region
        %s170 = ssub.s32 %s13, 1
        %p171 = scmp.lt.s32.totalorder %s18, 1
        %s172 = scalar_select %p171, %s18, 1
        %s173 = smul.addr %s172, 3
        %s174 = smul.addr %s173, 4
        %s175 = scalar_lea.vmem %s0, %s174
        %p176 = pneg %p39
        %p177 = pneg %p36
        %p178 = pneg %p60
        %p179 = pneg %p57
        %p180 = pneg %p81
        %p181 = pneg %p78
        %p182 = pneg %p102
        %p183 = pneg %p99
        %p184 = pneg %p128
        %p185 = pneg %p125
        %s186 = sand.u32 %s115, 1
        %s187 = scalar_lea.sflag [#allocation3], %s186
        %s188 = sand.u32 %s115, 1
        %s189 = smul.addr %s188, 24
        %s190 = scalar_lea.vmem [#allocation2], %s189
        %p191 = scmp.lt.s32.totalorder %s18, 1
        %s192 = scalar_select %p191, %s18, 1
        %s193 = smul.addr %s192, 3
        %s194 = smul.addr %s193, 4
        %s195 = scalar_lea.vmem %s0, %s194
        %v197 = vld [vmem:[%s195] sm:$0xff]
        %v198 = vld [vmem:[%s195 + $0x8] sm:$0xf]
        %v199 = vld [vmem:[%s1] sm:$0xff]
        %v200 = vld [vmem:[%s1 + $0x8] sm:$0xff]
        %v201 = vld [vmem:[%s1 + $0x10] sm:$0xff]
        %v202 = vld [vmem:[%s1 + $0x18] sm:$0xff]
        %v203 = vld [vmem:[%s1 + $0x20] sm:$0xf]
        %v204 = vld [vmem:[%s1 + $0x24] sm:$0xff]
        %v205 = vld [vmem:[%s1 + $0x2c] sm:$0xff]
        %v206 = vld [vmem:[%s1 + $0x34] sm:$0xff]
        %v207 = vld [vmem:[%s1 + $0x3c] sm:$0xff]
        %v208 = vld [vmem:[%s1 + $0x44] sm:$0xf]
        %v209 = vld [vmem:[%s1 + $0x48] sm:$0xff]
        %v210 = vld [vmem:[%s1 + $0x50] sm:$0xff]
        %v211 = vld [vmem:[%s1 + $0x58] sm:$0xff]
        %v212 = vld [vmem:[%s1 + $0x60] sm:$0xff]
        %v213 = vld [vmem:[%s1 + $0x68] sm:$0xf]
        %v214 = vld [vmem:[%s1 + $0x6c] sm:$0xff]
        %v215 = vld [vmem:[%s1 + $0x74] sm:$0xff]
        %v216 = vld [vmem:[%s1 + $0x7c] sm:$0xff]
        %v217 = vld [vmem:[%s1 + $0x84] sm:$0xff]
        %v218 = vld [vmem:[%s1 + $0x8c] sm:$0xf]
        %v219 = vld [vmem:[%s1 + $0x90] sm:$0xff]
        %v220 = vld [vmem:[%s1 + $0x98] sm:$0xff]
        %v221 = vld [vmem:[%s1 + $0xa0] sm:$0xff]
        %v222 = vld [vmem:[%s1 + $0xa8] sm:$0xff]
        %v223 = vld [vmem:[%s1 + $0xb0] sm:$0xf]
        %v224 = vld [vmem:[%s1 + $0xb4] sm:$0xff]
        %v225 = vld [vmem:[%s1 + $0xbc] sm:$0xff]
        %v226 = vld [vmem:[%s1 + $0xc4] sm:$0xff]
        %v227 = vld [vmem:[%s1 + $0xcc] sm:$0xff]
        %v228 = vld [vmem:[%s1 + $0xd4] sm:$0xf]
        %v229 = vld [vmem:[%s1 + $0xd8] sm:$0xff]
        %v230 = vld [vmem:[%s1 + $0xe0] sm:$0xff]
        %v231 = vld [vmem:[%s1 + $0xe8] sm:$0xff]
        %v232 = vld [vmem:[%s1 + $0xf0] sm:$0xff]
        %v233 = vld [vmem:[%s1 + $0xf8] sm:$0xf]
        %v234 = vld [vmem:[%s1 + $0xfc] sm:$0xff]
        %v235 = vld [vmem:[%s1 + $0x104] sm:$0xff]
        %v236 = vld [vmem:[%s1 + $0x10c] sm:$0xff]
        %v237 = vld [vmem:[%s1 + $0x114] sm:$0xff]
        %v238 = vld [vmem:[%s1 + $0x11c] sm:$0xf]
        %v239 = vld [vmem:[%s1 + $0x120] sm:$0xff]
        %v240 = vld [vmem:[%s1 + $0x128] sm:$0xff]
        %v241 = vld [vmem:[%s1 + $0x130] sm:$0xff]
        %v242 = vld [vmem:[%s1 + $0x138] sm:$0xff]
        %v243 = vld [vmem:[%s1 + $0x140] sm:$0xf]
        %v244 = vld [vmem:[%s1 + $0x144] sm:$0xff]
        %v245 = vld [vmem:[%s1 + $0x14c] sm:$0xff]
        %v246 = vld [vmem:[%s1 + $0x154] sm:$0xff]
        %v247 = vld [vmem:[%s1 + $0x15c] sm:$0xff]
        %v248 = vld [vmem:[%s1 + $0x164] sm:$0xf]
        %v249 = vld [vmem:[%s1 + $0x168] sm:$0xff]
        %v250 = vld [vmem:[%s1 + $0x170] sm:$0xff]
        %v251 = vld [vmem:[%s1 + $0x178] sm:$0xff]
        %v252 = vld [vmem:[%s1 + $0x180] sm:$0xff]
        %v253 = vld [vmem:[%s1 + $0x188] sm:$0xf]
        %v254 = vld [vmem:[%s1 + $0x18c] sm:$0xff]
        %v255 = vld [vmem:[%s1 + $0x194] sm:$0xff]
        %v256 = vld [vmem:[%s1 + $0x19c] sm:$0xff]
        %v257 = vld [vmem:[%s1 + $0x1a4] sm:$0xff]
        %v258 = vld [vmem:[%s1 + $0x1ac] sm:$0xf]
        %v259 = vld [vmem:[%s1 + $0x1b0] sm:$0xff]
        %v260 = vld [vmem:[%s1 + $0x1b8] sm:$0xff]
        %v261 = vld [vmem:[%s1 + $0x1c0] sm:$0xff]
        %v262 = vld [vmem:[%s1 + $0x1c8] sm:$0xff]
        %v263 = vld [vmem:[%s1 + $0x1d0] sm:$0xf]
        %v264 = vld [vmem:[%s1 + $0x1d4] sm:$0xff]
        %v265 = vld [vmem:[%s1 + $0x1dc] sm:$0xff]
        %v266 = vld [vmem:[%s1 + $0x1e4] sm:$0xff]
        %v267 = vld [vmem:[%s1 + $0x1ec] sm:$0xff]
        %v268 = vld [vmem:[%s1 + $0x1f4] sm:$0xf]
        %v269 = vld [vmem:[%s1 + $0x1f8] sm:$0xff]
        %v270 = vld [vmem:[%s1 + $0x200] sm:$0xff]
        %v271 = vld [vmem:[%s1 + $0x208] sm:$0xff]
        %v272 = vld [vmem:[%s1 + $0x210] sm:$0xff]
        %v273 = vld [vmem:[%s1 + $0x218] sm:$0xf]
        %v274 = vld [vmem:[%s1 + $0x21c] sm:$0xff]
        %v275 = vld [vmem:[%s1 + $0x224] sm:$0xff]
        %v276 = vld [vmem:[%s1 + $0x22c] sm:$0xff]
        %v277 = vld [vmem:[%s1 + $0x234] sm:$0xff]
        %v278 = vld [vmem:[%s1 + $0x23c] sm:$0xf]
        %v279 = vld [vmem:[%s1 + $0x240] sm:$0xff]
        %v280 = vld [vmem:[%s1 + $0x248] sm:$0xff]
        %v281 = vld [vmem:[%s1 + $0x250] sm:$0xff]
        %v282 = vld [vmem:[%s1 + $0x258] sm:$0xff]
        %v283 = vld [vmem:[%s1 + $0x260] sm:$0xf]
        %v284 = vld [vmem:[%s1 + $0x264] sm:$0xff]
        %v285 = vld [vmem:[%s1 + $0x26c] sm:$0xff]
        %v286 = vld [vmem:[%s1 + $0x274] sm:$0xff]
        %v287 = vld [vmem:[%s1 + $0x27c] sm:$0xff]
        %v288 = vld [vmem:[%s1 + $0x284] sm:$0xf]
        %v289 = vld [vmem:[%s1 + $0x288] sm:$0xff]
        %v290 = vld [vmem:[%s1 + $0x290] sm:$0xff]
        %v291 = vld [vmem:[%s1 + $0x298] sm:$0xff]
        %v292 = vld [vmem:[%s1 + $0x2a0] sm:$0xff]
        %v293 = vld [vmem:[%s1 + $0x2a8] sm:$0xf]
        %v294 = vld [vmem:[%s1 + $0x2ac] sm:$0xff]
        %v295 = vld [vmem:[%s1 + $0x2b4] sm:$0xff]
        %v296 = vld [vmem:[%s1 + $0x2bc] sm:$0xff]
        %v297 = vld [vmem:[%s1 + $0x2c4] sm:$0xff]
        %v298 = vld [vmem:[%s1 + $0x2cc] sm:$0xf]
        %v299 = vld [vmem:[%s1 + $0x2d0] sm:$0xff]
        %v300 = vld [vmem:[%s1 + $0x2d8] sm:$0xff]
        %v301 = vld [vmem:[%s1 + $0x2e0] sm:$0xff]
        %v302 = vld [vmem:[%s1 + $0x2e8] sm:$0xff]
        %v303 = vld [vmem:[%s1 + $0x2f0] sm:$0xf]
        %v304 = vld [vmem:[%s1 + $0x2f4] sm:$0xff]
        %v305 = vld [vmem:[%s1 + $0x2fc] sm:$0xff]
        %v306 = vld [vmem:[%s1 + $0x304] sm:$0xff]
        %v307 = vld [vmem:[%s1 + $0x30c] sm:$0xff]
        %v308 = vld [vmem:[%s1 + $0x314] sm:$0xf]
        %v309 = vld [vmem:[%s1 + $0x318] sm:$0xff]
        %v310 = vld [vmem:[%s1 + $0x320] sm:$0xff]
        %v311 = vld [vmem:[%s1 + $0x328] sm:$0xff]
        %v312 = vld [vmem:[%s1 + $0x330] sm:$0xff]
        %v313 = vld [vmem:[%s1 + $0x338] sm:$0xf]
        %v314 = vld [vmem:[%s1 + $0x33c] sm:$0xff]
        %v315 = vld [vmem:[%s1 + $0x344] sm:$0xff]
        %v316 = vld [vmem:[%s1 + $0x34c] sm:$0xff]
        %v317 = vld [vmem:[%s1 + $0x354] sm:$0xff]
        %v318 = vld [vmem:[%s1 + $0x35c] sm:$0xf]
        %v319 = vld [vmem:[%s1 + $0x360] sm:$0xff]
        %v320 = vld [vmem:[%s1 + $0x368] sm:$0xff]
        %v321 = vld [vmem:[%s1 + $0x370] sm:$0xff]
        %v322 = vld [vmem:[%s1 + $0x378] sm:$0xff]
        %v323 = vld [vmem:[%s1 + $0x380] sm:$0xf]
        %v324 = vld [vmem:[%s1 + $0x384] sm:$0xff]
        %v325 = vld [vmem:[%s1 + $0x38c] sm:$0xff]
        %v326 = vld [vmem:[%s1 + $0x394] sm:$0xff]
        %v327 = vld [vmem:[%s1 + $0x39c] sm:$0xff]
        %v328 = vld [vmem:[%s1 + $0x3a4] sm:$0xf]
        %v329 = vld [vmem:[%s1 + $0x3a8] sm:$0xff]
        %v330 = vld [vmem:[%s1 + $0x3b0] sm:$0xff]
        %v331 = vld [vmem:[%s1 + $0x3b8] sm:$0xff]
        %v332 = vld [vmem:[%s1 + $0x3c0] sm:$0xff]
        %v333 = vld [vmem:[%s1 + $0x3c8] sm:$0xf]
        %v334 = vld [vmem:[%s1 + $0x3cc] sm:$0xff]
        %v335 = vld [vmem:[%s1 + $0x3d4] sm:$0xff]
        %v336 = vld [vmem:[%s1 + $0x3dc] sm:$0xff]
        %v337 = vld [vmem:[%s1 + $0x3e4] sm:$0xff]
        %v338 = vld [vmem:[%s1 + $0x3ec] sm:$0xf]
        %v339 = vld [vmem:[%s1 + $0x3f0] sm:$0xff]
        %v340 = vld [vmem:[%s1 + $0x3f8] sm:$0xff]
        %v341 = vld [vmem:[%s1 + $0x400] sm:$0xff]
        %v342 = vld [vmem:[%s1 + $0x408] sm:$0xff]
        %v343 = vld [vmem:[%s1 + $0x410] sm:$0xf]
        %v344 = vld [vmem:[%s1 + $0x414] sm:$0xff]
        %v345 = vld [vmem:[%s1 + $0x41c] sm:$0xff]
        %v346 = vld [vmem:[%s1 + $0x424] sm:$0xff]
        %v347 = vld [vmem:[%s1 + $0x42c] sm:$0xff]
        %v348 = vld [vmem:[%s1 + $0x434] sm:$0xf]
        %v349 = vld [vmem:[%s1 + $0x438] sm:$0xff]
        %v350 = vld [vmem:[%s1 + $0x440] sm:$0xff]
        %v351 = vld [vmem:[%s1 + $0x448] sm:$0xff]
        %v352 = vld [vmem:[%s1 + $0x450] sm:$0xff]
        %v353 = vld [vmem:[%s1 + $0x458] sm:$0xf]
        %v354 = vld [vmem:[%s1 + $0x45c] sm:$0xff]
        %v355 = vld [vmem:[%s1 + $0x464] sm:$0xff]
        %v356 = vld [vmem:[%s1 + $0x46c] sm:$0xff]
        %v357 = vld [vmem:[%s1 + $0x474] sm:$0xff]
        %v358 = vld [vmem:[%s1 + $0x47c] sm:$0xf]
        %v359 = vld [vmem:[%s1 + $0x480] sm:$0xff]
        %v360 = vld [vmem:[%s1 + $0x488] sm:$0xff]
        %v361 = vld [vmem:[%s1 + $0x490] sm:$0xff]
        %v362 = vld [vmem:[%s1 + $0x498] sm:$0xff]
        %v363 = vld [vmem:[%s1 + $0x4a0] sm:$0xf]
        %v364 = vld [vmem:[%s1 + $0x4a4] sm:$0xff]
        %v365 = vld [vmem:[%s1 + $0x4ac] sm:$0xff]
        %v366 = vld [vmem:[%s1 + $0x4b4] sm:$0xff]
        %v367 = vld [vmem:[%s1 + $0x4bc] sm:$0xff]
        %v368 = vld [vmem:[%s1 + $0x4c4] sm:$0xf]
        %v369 = vld [vmem:[%s1 + $0x4c8] sm:$0xff]
        %v370 = vld [vmem:[%s1 + $0x4d0] sm:$0xff]
        %v371 = vld [vmem:[%s1 + $0x4d8] sm:$0xff]
        %v372 = vld [vmem:[%s1 + $0x4e0] sm:$0xff]
        %v373 = vld [vmem:[%s1 + $0x4e8] sm:$0xf]
        %v374 = vld [vmem:[%s1 + $0x4ec] sm:$0xff]
        %v375 = vld [vmem:[%s1 + $0x4f4] sm:$0xff]
        %v376 = vld [vmem:[%s1 + $0x4fc] sm:$0xff]
        %v377 = vld [vmem:[%s1 + $0x504] sm:$0xff]
        %v378 = vld [vmem:[%s1 + $0x50c] sm:$0xf]
        %v379 = vld [vmem:[%s1 + $0x510] sm:$0xff]
        %v380 = vld [vmem:[%s1 + $0x518] sm:$0xff]
        %v381 = vld [vmem:[%s1 + $0x520] sm:$0xff]
        %v382 = vld [vmem:[%s1 + $0x528] sm:$0xff]
        %v383 = vld [vmem:[%s1 + $0x530] sm:$0xf]
        %v384 = vld [vmem:[%s1 + $0x534] sm:$0xff]
        %v385 = vld [vmem:[%s1 + $0x53c] sm:$0xff]
        %v386 = vld [vmem:[%s1 + $0x544] sm:$0xff]
        %v387 = vld [vmem:[%s1 + $0x54c] sm:$0xff]
        %v388 = vld [vmem:[%s1 + $0x554] sm:$0xf]
        %v389 = vld [vmem:[%s1 + $0x558] sm:$0xff]
        %v390 = vld [vmem:[%s1 + $0x560] sm:$0xff]
        %v391 = vld [vmem:[%s1 + $0x568] sm:$0xff]
        %v392 = vld [vmem:[%s1 + $0x570] sm:$0xff]
        %v393 = vld [vmem:[%s1 + $0x578] sm:$0xf]
        %v394 = vld [vmem:[%s1 + $0x57c] sm:$0xff]
        %v395 = vld [vmem:[%s1 + $0x584] sm:$0xff]
        %v396 = vld [vmem:[%s1 + $0x58c] sm:$0xff]
        %v397 = vld [vmem:[%s1 + $0x594] sm:$0xff]
        %v398 = vld [vmem:[%s1 + $0x59c] sm:$0xf]
        %v399 = vld [vmem:[%s1 + $0x5a0] sm:$0xff]
        %v400 = vld [vmem:[%s1 + $0x5a8] sm:$0xff]
        %v401 = vld [vmem:[%s1 + $0x5b0] sm:$0xff]
        %v402 = vld [vmem:[%s1 + $0x5b8] sm:$0xff]
        %v403 = vld [vmem:[%s1 + $0x5c0] sm:$0xf]
        %v404 = vld [vmem:[%s1 + $0x5c4] sm:$0xff]
        %v405 = vld [vmem:[%s1 + $0x5cc] sm:$0xff]
        %v406 = vld [vmem:[%s1 + $0x5d4] sm:$0xff]
        %v407 = vld [vmem:[%s1 + $0x5dc] sm:$0xff]
        %v408 = vld [vmem:[%s1 + $0x5e4] sm:$0xf]
        %v409 = vld [vmem:[%s1 + $0x5e8] sm:$0xff]
        %v410 = vld [vmem:[%s1 + $0x5f0] sm:$0xff]
        %v411 = vld [vmem:[%s1 + $0x5f8] sm:$0xff]
        %v412 = vld [vmem:[%s1 + $0x600] sm:$0xff]
        %v413 = vld [vmem:[%s1 + $0x608] sm:$0xf]
        %v414 = vld [vmem:[%s1 + $0x60c] sm:$0xff]
        %v415 = vld [vmem:[%s1 + $0x614] sm:$0xff]
        %v416 = vld [vmem:[%s1 + $0x61c] sm:$0xff]
        %v417 = vld [vmem:[%s1 + $0x624] sm:$0xff]
        %v418 = vld [vmem:[%s1 + $0x62c] sm:$0xf]
        %v419 = vld [vmem:[%s1 + $0x630] sm:$0xff]
        %v420 = vld [vmem:[%s1 + $0x638] sm:$0xff]
        %v421 = vld [vmem:[%s1 + $0x640] sm:$0xff]
        %v422 = vld [vmem:[%s1 + $0x648] sm:$0xff]
        %v423 = vld [vmem:[%s1 + $0x650] sm:$0xf]
        %v424 = vld [vmem:[%s1 + $0x654] sm:$0xff]
        %v425 = vld [vmem:[%s1 + $0x65c] sm:$0xff]
        %v426 = vld [vmem:[%s1 + $0x664] sm:$0xff]
        %v427 = vld [vmem:[%s1 + $0x66c] sm:$0xff]
        %v428 = vld [vmem:[%s1 + $0x674] sm:$0xf]
        %v429 = vld [vmem:[%s1 + $0x678] sm:$0xff]
        %v430 = vld [vmem:[%s1 + $0x680] sm:$0xff]
        %v431 = vld [vmem:[%s1 + $0x688] sm:$0xff]
        %v432 = vld [vmem:[%s1 + $0x690] sm:$0xff]
        %v433 = vld [vmem:[%s1 + $0x698] sm:$0xf]
        %v434 = vld [vmem:[%s1 + $0x69c] sm:$0xff]
        %v435 = vld [vmem:[%s1 + $0x6a4] sm:$0xff]
        %v436 = vld [vmem:[%s1 + $0x6ac] sm:$0xff]
        %v437 = vld [vmem:[%s1 + $0x6b4] sm:$0xff]
        %v438 = vld [vmem:[%s1 + $0x6bc] sm:$0xf]
        %v441 = vunpack.c.l.b16 %v197
        %v442 = vunpack.c.h.b16 %v197
        %v443 = vunpack.c.l.b16 %v198
        %v444 = vpack.c.b16 %v441, %v441
        %v445 = vpack.c.b16 %v442, %v442
        %v446 = vpack.c.b16 %v443, %v443
        %v690 = vunpack.c.l.b16 %v199
        %v691 = vunpack.c.h.b16 %v199
        %v692 = vunpack.c.l.b16 %v200
        %v693 = vunpack.c.h.b16 %v200
        %v694 = vunpack.c.l.b16 %v201
        %v695 = vunpack.c.h.b16 %v201
        %v696 = vunpack.c.l.b16 %v202
        %v697 = vunpack.c.h.b16 %v202
        %v698 = vunpack.c.l.b16 %v203
        %v699 = vunpack.c.l.b16 %v204
        %v700 = vunpack.c.h.b16 %v204
        %v701 = vunpack.c.l.b16 %v205
        %v702 = vunpack.c.h.b16 %v205
        %v703 = vunpack.c.l.b16 %v206
        %v704 = vunpack.c.h.b16 %v206
        %v705 = vunpack.c.l.b16 %v207
        %v706 = vunpack.c.h.b16 %v207
        %v707 = vunpack.c.l.b16 %v208
        %v708 = vunpack.c.l.b16 %v209
        %v709 = vunpack.c.h.b16 %v209
        %v710 = vunpack.c.l.b16 %v210
        %v711 = vunpack.c.h.b16 %v210
        %v712 = vunpack.c.l.b16 %v211
        %v713 = vunpack.c.h.b16 %v211
        %v714 = vunpack.c.l.b16 %v212
        %v715 = vunpack.c.h.b16 %v212
        %v716 = vunpack.c.l.b16 %v213
        %v717 = vunpack.c.l.b16 %v214
        %v718 = vunpack.c.h.b16 %v214
        %v719 = vunpack.c.l.b16 %v215
        %v720 = vunpack.c.h.b16 %v215
        %v721 = vunpack.c.l.b16 %v216
        %v722 = vunpack.c.h.b16 %v216
        %v723 = vunpack.c.l.b16 %v217
        %v724 = vunpack.c.h.b16 %v217
        %v725 = vunpack.c.l.b16 %v218
        %v726 = vunpack.c.l.b16 %v219
        %v727 = vunpack.c.h.b16 %v219
        %v728 = vunpack.c.l.b16 %v220
        %v729 = vunpack.c.h.b16 %v220
        %v730 = vunpack.c.l.b16 %v221
        %v731 = vunpack.c.h.b16 %v221
        %v732 = vunpack.c.l.b16 %v222
        %v733 = vunpack.c.h.b16 %v222
        %v734 = vunpack.c.l.b16 %v223
        %v735 = vunpack.c.l.b16 %v224
        %v736 = vunpack.c.h.b16 %v224
        %v737 = vunpack.c.l.b16 %v225
        %v738 = vunpack.c.h.b16 %v225
        %v739 = vunpack.c.l.b16 %v226
        %v740 = vunpack.c.h.b16 %v226
        %v741 = vunpack.c.l.b16 %v227
        %v742 = vunpack.c.h.b16 %v227
        %v743 = vunpack.c.l.b16 %v228
        %v744 = vunpack.c.l.b16 %v229
        %v745 = vunpack.c.h.b16 %v229
        %v746 = vunpack.c.l.b16 %v230
        %v747 = vunpack.c.h.b16 %v230
        %v748 = vunpack.c.l.b16 %v231
        %v749 = vunpack.c.h.b16 %v231
        %v750 = vunpack.c.l.b16 %v232
        %v751 = vunpack.c.h.b16 %v232
        %v752 = vunpack.c.l.b16 %v233
        %v753 = vunpack.c.l.b16 %v234
        %v754 = vunpack.c.h.b16 %v234
        %v755 = vunpack.c.l.b16 %v235
        %v756 = vunpack.c.h.b16 %v235
        %v757 = vunpack.c.l.b16 %v236
        %v758 = vunpack.c.h.b16 %v236
        %v759 = vunpack.c.l.b16 %v237
        %v760 = vunpack.c.h.b16 %v237
        %v761 = vunpack.c.l.b16 %v238
        %v762 = vunpack.c.l.b16 %v239
        %v763 = vunpack.c.h.b16 %v239
        %v764 = vunpack.c.l.b16 %v240
        %v765 = vunpack.c.h.b16 %v240
        %v766 = vunpack.c.l.b16 %v241
        %v767 = vunpack.c.h.b16 %v241
        %v768 = vunpack.c.l.b16 %v242
        %v769 = vunpack.c.h.b16 %v242
        %v770 = vunpack.c.l.b16 %v243
        %v771 = vunpack.c.l.b16 %v244
        %v772 = vunpack.c.h.b16 %v244
        %v773 = vunpack.c.l.b16 %v245
        %v774 = vunpack.c.h.b16 %v245
        %v775 = vunpack.c.l.b16 %v246
        %v776 = vunpack.c.h.b16 %v246
        %v777 = vunpack.c.l.b16 %v247
        %v778 = vunpack.c.h.b16 %v247
        %v779 = vunpack.c.l.b16 %v248
        %v780 = vunpack.c.l.b16 %v249
        %v781 = vunpack.c.h.b16 %v249
        %v782 = vunpack.c.l.b16 %v250
        %v783 = vunpack.c.h.b16 %v250
        %v784 = vunpack.c.l.b16 %v251
        %v785 = vunpack.c.h.b16 %v251
        %v786 = vunpack.c.l.b16 %v252
        %v787 = vunpack.c.h.b16 %v252
        %v788 = vunpack.c.l.b16 %v253
        %v789 = vunpack.c.l.b16 %v254
        %v790 = vunpack.c.h.b16 %v254
        %v791 = vunpack.c.l.b16 %v255
        %v792 = vunpack.c.h.b16 %v255
        %v793 = vunpack.c.l.b16 %v256
        %v794 = vunpack.c.h.b16 %v256
        %v795 = vunpack.c.l.b16 %v257
        %v796 = vunpack.c.h.b16 %v257
        %v797 = vunpack.c.l.b16 %v258
        %v798 = vunpack.c.l.b16 %v259
        %v799 = vunpack.c.h.b16 %v259
        %v800 = vunpack.c.l.b16 %v260
        %v801 = vunpack.c.h.b16 %v260
        %v802 = vunpack.c.l.b16 %v261
        %v803 = vunpack.c.h.b16 %v261
        %v804 = vunpack.c.l.b16 %v262
        %v805 = vunpack.c.h.b16 %v262
        %v806 = vunpack.c.l.b16 %v263
        %v807 = vunpack.c.l.b16 %v264
        %v808 = vunpack.c.h.b16 %v264
        %v809 = vunpack.c.l.b16 %v265
        %v810 = vunpack.c.h.b16 %v265
        %v811 = vunpack.c.l.b16 %v266
        %v812 = vunpack.c.h.b16 %v266
        %v813 = vunpack.c.l.b16 %v267
        %v814 = vunpack.c.h.b16 %v267
        %v815 = vunpack.c.l.b16 %v268
        %v816 = vunpack.c.l.b16 %v269
        %v817 = vunpack.c.h.b16 %v269
        %v818 = vunpack.c.l.b16 %v270
        %v819 = vunpack.c.h.b16 %v270
        %v820 = vunpack.c.l.b16 %v271
        %v821 = vunpack.c.h.b16 %v271
        %v822 = vunpack.c.l.b16 %v272
        %v823 = vunpack.c.h.b16 %v272
        %v824 = vunpack.c.l.b16 %v273
        %v825 = vunpack.c.l.b16 %v274
        %v826 = vunpack.c.h.b16 %v274
        %v827 = vunpack.c.l.b16 %v275
        %v828 = vunpack.c.h.b16 %v275
        %v829 = vunpack.c.l.b16 %v276
        %v830 = vunpack.c.h.b16 %v276
        %v831 = vunpack.c.l.b16 %v277
        %v832 = vunpack.c.h.b16 %v277
        %v833 = vunpack.c.l.b16 %v278
        %v834 = vunpack.c.l.b16 %v279
        %v835 = vunpack.c.h.b16 %v279
        %v836 = vunpack.c.l.b16 %v280
        %v837 = vunpack.c.h.b16 %v280
        %v838 = vunpack.c.l.b16 %v281
        %v839 = vunpack.c.h.b16 %v281
        %v840 = vunpack.c.l.b16 %v282
        %v841 = vunpack.c.h.b16 %v282
        %v842 = vunpack.c.l.b16 %v283
        %v843 = vunpack.c.l.b16 %v284
        %v844 = vunpack.c.h.b16 %v284
        %v845 = vunpack.c.l.b16 %v285
        %v846 = vunpack.c.h.b16 %v285
        %v847 = vunpack.c.l.b16 %v286
        %v848 = vunpack.c.h.b16 %v286
        %v849 = vunpack.c.l.b16 %v287
        %v850 = vunpack.c.h.b16 %v287
        %v851 = vunpack.c.l.b16 %v288
        %v852 = vunpack.c.l.b16 %v289
        %v853 = vunpack.c.h.b16 %v289
        %v854 = vunpack.c.l.b16 %v290
        %v855 = vunpack.c.h.b16 %v290
        %v856 = vunpack.c.l.b16 %v291
        %v857 = vunpack.c.h.b16 %v291
        %v858 = vunpack.c.l.b16 %v292
        %v859 = vunpack.c.h.b16 %v292
        %v860 = vunpack.c.l.b16 %v293
        %v861 = vunpack.c.l.b16 %v294
        %v862 = vunpack.c.h.b16 %v294
        %v863 = vunpack.c.l.b16 %v295
        %v864 = vunpack.c.h.b16 %v295
        %v865 = vunpack.c.l.b16 %v296
        %v866 = vunpack.c.h.b16 %v296
        %v867 = vunpack.c.l.b16 %v297
        %v868 = vunpack.c.h.b16 %v297
        %v869 = vunpack.c.l.b16 %v298
        %v870 = vunpack.c.l.b16 %v299
        %v871 = vunpack.c.h.b16 %v299
        %v872 = vunpack.c.l.b16 %v300
        %v873 = vunpack.c.h.b16 %v300
        %v874 = vunpack.c.l.b16 %v301
        %v875 = vunpack.c.h.b16 %v301
        %v876 = vunpack.c.l.b16 %v302
        %v877 = vunpack.c.h.b16 %v302
        %v878 = vunpack.c.l.b16 %v303
        %v879 = vunpack.c.l.b16 %v304
        %v880 = vunpack.c.h.b16 %v304
        %v881 = vunpack.c.l.b16 %v305
        %v882 = vunpack.c.h.b16 %v305
        %v883 = vunpack.c.l.b16 %v306
        %v884 = vunpack.c.h.b16 %v306
        %v885 = vunpack.c.l.b16 %v307
        %v886 = vunpack.c.h.b16 %v307
        %v887 = vunpack.c.l.b16 %v308
        %v888 = vunpack.c.l.b16 %v309
        %v889 = vunpack.c.h.b16 %v309
        %v890 = vunpack.c.l.b16 %v310
        %v891 = vunpack.c.h.b16 %v310
        %v892 = vunpack.c.l.b16 %v311
        %v893 = vunpack.c.h.b16 %v311
        %v894 = vunpack.c.l.b16 %v312
        %v895 = vunpack.c.h.b16 %v312
        %v896 = vunpack.c.l.b16 %v313
        %v897 = vunpack.c.l.b16 %v314
        %v898 = vunpack.c.h.b16 %v314
        %v899 = vunpack.c.l.b16 %v315
        %v900 = vunpack.c.h.b16 %v315
        %v901 = vunpack.c.l.b16 %v316
        %v902 = vunpack.c.h.b16 %v316
        %v903 = vunpack.c.l.b16 %v317
        %v904 = vunpack.c.h.b16 %v317
        %v905 = vunpack.c.l.b16 %v318
        %v906 = vunpack.c.l.b16 %v319
        %v907 = vunpack.c.h.b16 %v319
        %v908 = vunpack.c.l.b16 %v320
        %v909 = vunpack.c.h.b16 %v320
        %v910 = vunpack.c.l.b16 %v321
        %v911 = vunpack.c.h.b16 %v321
        %v912 = vunpack.c.l.b16 %v322
        %v913 = vunpack.c.h.b16 %v322
        %v914 = vunpack.c.l.b16 %v323
        %v915 = vunpack.c.l.b16 %v324
        %v916 = vunpack.c.h.b16 %v324
        %v917 = vunpack.c.l.b16 %v325
        %v918 = vunpack.c.h.b16 %v325
        %v919 = vunpack.c.l.b16 %v326
        %v920 = vunpack.c.h.b16 %v326
        %v921 = vunpack.c.l.b16 %v327
        %v922 = vunpack.c.h.b16 %v327
        %v923 = vunpack.c.l.b16 %v328
        %v924 = vunpack.c.l.b16 %v329
        %v925 = vunpack.c.h.b16 %v329
        %v926 = vunpack.c.l.b16 %v330
        %v927 = vunpack.c.h.b16 %v330
        %v928 = vunpack.c.l.b16 %v331
        %v929 = vunpack.c.h.b16 %v331
        %v930 = vunpack.c.l.b16 %v332
        %v931 = vunpack.c.h.b16 %v332
        %v932 = vunpack.c.l.b16 %v333
        %v933 = vunpack.c.l.b16 %v334
        %v934 = vunpack.c.h.b16 %v334
        %v935 = vunpack.c.l.b16 %v335
        %v936 = vunpack.c.h.b16 %v335
        %v937 = vunpack.c.l.b16 %v336
        %v938 = vunpack.c.h.b16 %v336
        %v939 = vunpack.c.l.b16 %v337
        %v940 = vunpack.c.h.b16 %v337
        %v941 = vunpack.c.l.b16 %v338
        %v942 = vunpack.c.l.b16 %v339
        %v943 = vunpack.c.h.b16 %v339
        %v944 = vunpack.c.l.b16 %v340
        %v945 = vunpack.c.h.b16 %v340
        %v946 = vunpack.c.l.b16 %v341
        %v947 = vunpack.c.h.b16 %v341
        %v948 = vunpack.c.l.b16 %v342
        %v949 = vunpack.c.h.b16 %v342
        %v950 = vunpack.c.l.b16 %v343
        %v951 = vunpack.c.l.b16 %v344
        %v952 = vunpack.c.h.b16 %v344
        %v953 = vunpack.c.l.b16 %v345
        %v954 = vunpack.c.h.b16 %v345
        %v955 = vunpack.c.l.b16 %v346
        %v956 = vunpack.c.h.b16 %v346
        %v957 = vunpack.c.l.b16 %v347
        %v958 = vunpack.c.h.b16 %v347
        %v959 = vunpack.c.l.b16 %v348
        %v960 = vunpack.c.l.b16 %v349
        %v961 = vunpack.c.h.b16 %v349
        %v962 = vunpack.c.l.b16 %v350
        %v963 = vunpack.c.h.b16 %v350
        %v964 = vunpack.c.l.b16 %v351
        %v965 = vunpack.c.h.b16 %v351
        %v966 = vunpack.c.l.b16 %v352
        %v967 = vunpack.c.h.b16 %v352
        %v968 = vunpack.c.l.b16 %v353
        %v969 = vunpack.c.l.b16 %v354
        %v970 = vunpack.c.h.b16 %v354
        %v971 = vunpack.c.l.b16 %v355
        %v972 = vunpack.c.h.b16 %v355
        %v973 = vunpack.c.l.b16 %v356
        %v974 = vunpack.c.h.b16 %v356
        %v975 = vunpack.c.l.b16 %v357
        %v976 = vunpack.c.h.b16 %v357
        %v977 = vunpack.c.l.b16 %v358
        %v978 = vunpack.c.l.b16 %v359
        %v979 = vunpack.c.h.b16 %v359
        %v980 = vunpack.c.l.b16 %v360
        %v981 = vunpack.c.h.b16 %v360
        %v982 = vunpack.c.l.b16 %v361
        %v983 = vunpack.c.h.b16 %v361
        %v984 = vunpack.c.l.b16 %v362
        %v985 = vunpack.c.h.b16 %v362
        %v986 = vunpack.c.l.b16 %v363
        %v987 = vunpack.c.l.b16 %v364
        %v988 = vunpack.c.h.b16 %v364
        %v989 = vunpack.c.l.b16 %v365
        %v990 = vunpack.c.h.b16 %v365
        %v991 = vunpack.c.l.b16 %v366
        %v992 = vunpack.c.h.b16 %v366
        %v993 = vunpack.c.l.b16 %v367
        %v994 = vunpack.c.h.b16 %v367
        %v995 = vunpack.c.l.b16 %v368
        %v996 = vunpack.c.l.b16 %v369
        %v997 = vunpack.c.h.b16 %v369
        %v998 = vunpack.c.l.b16 %v370
        %v999 = vunpack.c.h.b16 %v370
        %v1000 = vunpack.c.l.b16 %v371
        %v1001 = vunpack.c.h.b16 %v371
        %v1002 = vunpack.c.l.b16 %v372
        %v1003 = vunpack.c.h.b16 %v372
        %v1004 = vunpack.c.l.b16 %v373
        %v1005 = vunpack.c.l.b16 %v374
        %v1006 = vunpack.c.h.b16 %v374
        %v1007 = vunpack.c.l.b16 %v375
        %v1008 = vunpack.c.h.b16 %v375
        %v1009 = vunpack.c.l.b16 %v376
        %v1010 = vunpack.c.h.b16 %v376
        %v1011 = vunpack.c.l.b16 %v377
        %v1012 = vunpack.c.h.b16 %v377
        %v1013 = vunpack.c.l.b16 %v378
        %v1014 = vunpack.c.l.b16 %v379
        %v1015 = vunpack.c.h.b16 %v379
        %v1016 = vunpack.c.l.b16 %v380
        %v1017 = vunpack.c.h.b16 %v380
        %v1018 = vunpack.c.l.b16 %v381
        %v1019 = vunpack.c.h.b16 %v381
        %v1020 = vunpack.c.l.b16 %v382
        %v1021 = vunpack.c.h.b16 %v382
        %v1022 = vunpack.c.l.b16 %v383
        %v1023 = vunpack.c.l.b16 %v384
        %v1024 = vunpack.c.h.b16 %v384
        %v1025 = vunpack.c.l.b16 %v385
        %v1026 = vunpack.c.h.b16 %v385
        %v1027 = vunpack.c.l.b16 %v386
        %v1028 = vunpack.c.h.b16 %v386
        %v1029 = vunpack.c.l.b16 %v387
        %v1030 = vunpack.c.h.b16 %v387
        %v1031 = vunpack.c.l.b16 %v388
        %v1032 = vunpack.c.l.b16 %v389
        %v1033 = vunpack.c.h.b16 %v389
        %v1034 = vunpack.c.l.b16 %v390
        %v1035 = vunpack.c.h.b16 %v390
        %v1036 = vunpack.c.l.b16 %v391
        %v1037 = vunpack.c.h.b16 %v391
        %v1038 = vunpack.c.l.b16 %v392
        %v1039 = vunpack.c.h.b16 %v392
        %v1040 = vunpack.c.l.b16 %v393
        %v1041 = vunpack.c.l.b16 %v394
        %v1042 = vunpack.c.h.b16 %v394
        %v1043 = vunpack.c.l.b16 %v395
        %v1044 = vunpack.c.h.b16 %v395
        %v1045 = vunpack.c.l.b16 %v396
        %v1046 = vunpack.c.h.b16 %v396
        %v1047 = vunpack.c.l.b16 %v397
        %v1048 = vunpack.c.h.b16 %v397
        %v1049 = vunpack.c.l.b16 %v398
        %v1050 = vunpack.c.l.b16 %v399
        %v1051 = vunpack.c.h.b16 %v399
        %v1052 = vunpack.c.l.b16 %v400
        %v1053 = vunpack.c.h.b16 %v400
        %v1054 = vunpack.c.l.b16 %v401
        %v1055 = vunpack.c.h.b16 %v401
        %v1056 = vunpack.c.l.b16 %v402
        %v1057 = vunpack.c.h.b16 %v402
        %v1058 = vunpack.c.l.b16 %v403
        %v1059 = vunpack.c.l.b16 %v404
        %v1060 = vunpack.c.h.b16 %v404
        %v1061 = vunpack.c.l.b16 %v405
        %v1062 = vunpack.c.h.b16 %v405
        %v1063 = vunpack.c.l.b16 %v406
        %v1064 = vunpack.c.h.b16 %v406
        %v1065 = vunpack.c.l.b16 %v407
        %v1066 = vunpack.c.h.b16 %v407
        %v1067 = vunpack.c.l.b16 %v408
        %v1068 = vunpack.c.l.b16 %v409
        %v1069 = vunpack.c.h.b16 %v409
        %v1070 = vunpack.c.l.b16 %v410
        %v1071 = vunpack.c.h.b16 %v410
        %v1072 = vunpack.c.l.b16 %v411
        %v1073 = vunpack.c.h.b16 %v411
        %v1074 = vunpack.c.l.b16 %v412
        %v1075 = vunpack.c.h.b16 %v412
        %v1076 = vunpack.c.l.b16 %v413
        %v1077 = vunpack.c.l.b16 %v414
        %v1078 = vunpack.c.h.b16 %v414
        %v1079 = vunpack.c.l.b16 %v415
        %v1080 = vunpack.c.h.b16 %v415
        %v1081 = vunpack.c.l.b16 %v416
        %v1082 = vunpack.c.h.b16 %v416
        %v1083 = vunpack.c.l.b16 %v417
        %v1084 = vunpack.c.h.b16 %v417
        %v1085 = vunpack.c.l.b16 %v418
        %v1086 = vunpack.c.l.b16 %v419
        %v1087 = vunpack.c.h.b16 %v419
        %v1088 = vunpack.c.l.b16 %v420
        %v1089 = vunpack.c.h.b16 %v420
        %v1090 = vunpack.c.l.b16 %v421
        %v1091 = vunpack.c.h.b16 %v421
        %v1092 = vunpack.c.l.b16 %v422
        %v1093 = vunpack.c.h.b16 %v422
        %v1094 = vunpack.c.l.b16 %v423
        %v1095 = vunpack.c.l.b16 %v424
        %v1096 = vunpack.c.h.b16 %v424
        %v1097 = vunpack.c.l.b16 %v425
        %v1098 = vunpack.c.h.b16 %v425
        %v1099 = vunpack.c.l.b16 %v426
        %v1100 = vunpack.c.h.b16 %v426
        %v1101 = vunpack.c.l.b16 %v427
        %v1102 = vunpack.c.h.b16 %v427
        %v1103 = vunpack.c.l.b16 %v428
        %v1104 = vunpack.c.l.b16 %v429
        %v1105 = vunpack.c.h.b16 %v429
        %v1106 = vunpack.c.l.b16 %v430
        %v1107 = vunpack.c.h.b16 %v430
        %v1108 = vunpack.c.l.b16 %v431
        %v1109 = vunpack.c.h.b16 %v431
        %v1110 = vunpack.c.l.b16 %v432
        %v1111 = vunpack.c.h.b16 %v432
        %v1112 = vunpack.c.l.b16 %v433
        %v1113 = vunpack.c.l.b16 %v434
        %v1114 = vunpack.c.h.b16 %v434
        %v1115 = vunpack.c.l.b16 %v435
        %v1116 = vunpack.c.h.b16 %v435
        %v1117 = vunpack.c.l.b16 %v436
        %v1118 = vunpack.c.h.b16 %v436
        %v1119 = vunpack.c.l.b16 %v437
        %v1120 = vunpack.c.h.b16 %v437
        %v1121 = vunpack.c.l.b16 %v438
        %v1122 = vpack.c.b16 %v699, %v690
        %v1123 = vpack.c.b16 %v700, %v691
        %v1124 = vpack.c.b16 %v701, %v692
        %v1125 = vpack.c.b16 %v702, %v693
        %v1126 = vpack.c.b16 %v703, %v694
        %v1127 = vpack.c.b16 %v704, %v695
        %v1128 = vpack.c.b16 %v705, %v696
        %v1129 = vpack.c.b16 %v706, %v697
        %v1130 = vpack.c.b16 %v707, %v698
        %v1131 = vpack.c.b16 %v717, %v708
        %v1132 = vpack.c.b16 %v718, %v709
        %v1133 = vpack.c.b16 %v719, %v710
        %v1134 = vpack.c.b16 %v720, %v711
        %v1135 = vpack.c.b16 %v721, %v712
        %v1136 = vpack.c.b16 %v722, %v713
        %v1137 = vpack.c.b16 %v723, %v714
        %v1138 = vpack.c.b16 %v724, %v715
        %v1139 = vpack.c.b16 %v725, %v716
        %v1140 = vpack.c.b16 %v735, %v726
        %v1141 = vpack.c.b16 %v736, %v727
        %v1142 = vpack.c.b16 %v737, %v728
        %v1143 = vpack.c.b16 %v738, %v729
        %v1144 = vpack.c.b16 %v739, %v730
        %v1145 = vpack.c.b16 %v740, %v731
        %v1146 = vpack.c.b16 %v741, %v732
        %v1147 = vpack.c.b16 %v742, %v733
        %v1148 = vpack.c.b16 %v743, %v734
        %v1149 = vpack.c.b16 %v753, %v744
        %v1150 = vpack.c.b16 %v754, %v745
        %v1151 = vpack.c.b16 %v755, %v746
        %v1152 = vpack.c.b16 %v756, %v747
        %v1153 = vpack.c.b16 %v757, %v748
        %v1154 = vpack.c.b16 %v758, %v749
        %v1155 = vpack.c.b16 %v759, %v750
        %v1156 = vpack.c.b16 %v760, %v751
        %v1157 = vpack.c.b16 %v761, %v752
        %v1158 = vpack.c.b16 %v771, %v762
        %v1159 = vpack.c.b16 %v772, %v763
        %v1160 = vpack.c.b16 %v773, %v764
        %v1161 = vpack.c.b16 %v774, %v765
        %v1162 = vpack.c.b16 %v775, %v766
        %v1163 = vpack.c.b16 %v776, %v767
        %v1164 = vpack.c.b16 %v777, %v768
        %v1165 = vpack.c.b16 %v778, %v769
        %v1166 = vpack.c.b16 %v779, %v770
        %v1167 = vpack.c.b16 %v789, %v780
        %v1168 = vpack.c.b16 %v790, %v781
        %v1169 = vpack.c.b16 %v791, %v782
        %v1170 = vpack.c.b16 %v792, %v783
        %v1171 = vpack.c.b16 %v793, %v784
        %v1172 = vpack.c.b16 %v794, %v785
        %v1173 = vpack.c.b16 %v795, %v786
        %v1174 = vpack.c.b16 %v796, %v787
        %v1175 = vpack.c.b16 %v797, %v788
        %v1176 = vpack.c.b16 %v807, %v798
        %v1177 = vpack.c.b16 %v808, %v799
        %v1178 = vpack.c.b16 %v809, %v800
        %v1179 = vpack.c.b16 %v810, %v801
        %v1180 = vpack.c.b16 %v811, %v802
        %v1181 = vpack.c.b16 %v812, %v803
        %v1182 = vpack.c.b16 %v813, %v804
        %v1183 = vpack.c.b16 %v814, %v805
        %v1184 = vpack.c.b16 %v815, %v806
        %v1185 = vpack.c.b16 %v825, %v816
        %v1186 = vpack.c.b16 %v826, %v817
        %v1187 = vpack.c.b16 %v827, %v818
        %v1188 = vpack.c.b16 %v828, %v819
        %v1189 = vpack.c.b16 %v829, %v820
        %v1190 = vpack.c.b16 %v830, %v821
        %v1191 = vpack.c.b16 %v831, %v822
        %v1192 = vpack.c.b16 %v832, %v823
        %v1193 = vpack.c.b16 %v833, %v824
        %v1194 = vpack.c.b16 %v843, %v834
        %v1195 = vpack.c.b16 %v844, %v835
        %v1196 = vpack.c.b16 %v845, %v836
        %v1197 = vpack.c.b16 %v846, %v837
        %v1198 = vpack.c.b16 %v847, %v838
        %v1199 = vpack.c.b16 %v848, %v839
        %v1200 = vpack.c.b16 %v849, %v840
        %v1201 = vpack.c.b16 %v850, %v841
        %v1202 = vpack.c.b16 %v851, %v842
        %v1203 = vpack.c.b16 %v861, %v852
        %v1204 = vpack.c.b16 %v862, %v853
        %v1205 = vpack.c.b16 %v863, %v854
        %v1206 = vpack.c.b16 %v864, %v855
        %v1207 = vpack.c.b16 %v865, %v856
        %v1208 = vpack.c.b16 %v866, %v857
        %v1209 = vpack.c.b16 %v867, %v858
        %v1210 = vpack.c.b16 %v868, %v859
        %v1211 = vpack.c.b16 %v869, %v860
        %v1212 = vpack.c.b16 %v879, %v870
        %v1213 = vpack.c.b16 %v880, %v871
        %v1214 = vpack.c.b16 %v881, %v872
        %v1215 = vpack.c.b16 %v882, %v873
        %v1216 = vpack.c.b16 %v883, %v874
        %v1217 = vpack.c.b16 %v884, %v875
        %v1218 = vpack.c.b16 %v885, %v876
        %v1219 = vpack.c.b16 %v886, %v877
        %v1220 = vpack.c.b16 %v887, %v878
        %v1221 = vpack.c.b16 %v897, %v888
        %v1222 = vpack.c.b16 %v898, %v889
        %v1223 = vpack.c.b16 %v899, %v890
        %v1224 = vpack.c.b16 %v900, %v891
        %v1225 = vpack.c.b16 %v901, %v892
        %v1226 = vpack.c.b16 %v902, %v893
        %v1227 = vpack.c.b16 %v903, %v894
        %v1228 = vpack.c.b16 %v904, %v895
        %v1229 = vpack.c.b16 %v905, %v896
        %v1230 = vpack.c.b16 %v915, %v906
        %v1231 = vpack.c.b16 %v916, %v907
        %v1232 = vpack.c.b16 %v917, %v908
        %v1233 = vpack.c.b16 %v918, %v909
        %v1234 = vpack.c.b16 %v919, %v910
        %v1235 = vpack.c.b16 %v920, %v911
        %v1236 = vpack.c.b16 %v921, %v912
        %v1237 = vpack.c.b16 %v922, %v913
        %v1238 = vpack.c.b16 %v923, %v914
        %v1239 = vpack.c.b16 %v933, %v924
        %v1240 = vpack.c.b16 %v934, %v925
        %v1241 = vpack.c.b16 %v935, %v926
        %v1242 = vpack.c.b16 %v936, %v927
        %v1243 = vpack.c.b16 %v937, %v928
        %v1244 = vpack.c.b16 %v938, %v929
        %v1245 = vpack.c.b16 %v939, %v930
        %v1246 = vpack.c.b16 %v940, %v931
        %v1247 = vpack.c.b16 %v941, %v932
        %v1248 = vpack.c.b16 %v951, %v942
        %v1249 = vpack.c.b16 %v952, %v943
        %v1250 = vpack.c.b16 %v953, %v944
        %v1251 = vpack.c.b16 %v954, %v945
        %v1252 = vpack.c.b16 %v955, %v946
        %v1253 = vpack.c.b16 %v956, %v947
        %v1254 = vpack.c.b16 %v957, %v948
        %v1255 = vpack.c.b16 %v958, %v949
        %v1256 = vpack.c.b16 %v959, %v950
        %v1257 = vpack.c.b16 %v969, %v960
        %v1258 = vpack.c.b16 %v970, %v961
        %v1259 = vpack.c.b16 %v971, %v962
        %v1260 = vpack.c.b16 %v972, %v963
        %v1261 = vpack.c.b16 %v973, %v964
        %v1262 = vpack.c.b16 %v974, %v965
        %v1263 = vpack.c.b16 %v975, %v966
        %v1264 = vpack.c.b16 %v976, %v967
        %v1265 = vpack.c.b16 %v977, %v968
        %v1266 = vpack.c.b16 %v987, %v978
        %v1267 = vpack.c.b16 %v988, %v979
        %v1268 = vpack.c.b16 %v989, %v980
        %v1269 = vpack.c.b16 %v990, %v981
        %v1270 = vpack.c.b16 %v991, %v982
        %v1271 = vpack.c.b16 %v992, %v983
        %v1272 = vpack.c.b16 %v993, %v984
        %v1273 = vpack.c.b16 %v994, %v985
        %v1274 = vpack.c.b16 %v995, %v986
        %v1275 = vpack.c.b16 %v1005, %v996
        %v1276 = vpack.c.b16 %v1006, %v997
        %v1277 = vpack.c.b16 %v1007, %v998
        %v1278 = vpack.c.b16 %v1008, %v999
        %v1279 = vpack.c.b16 %v1009, %v1000
        %v1280 = vpack.c.b16 %v1010, %v1001
        %v1281 = vpack.c.b16 %v1011, %v1002
        %v1282 = vpack.c.b16 %v1012, %v1003
        %v1283 = vpack.c.b16 %v1013, %v1004
        %v1284 = vpack.c.b16 %v1023, %v1014
        %v1285 = vpack.c.b16 %v1024, %v1015
        %v1286 = vpack.c.b16 %v1025, %v1016
        %v1287 = vpack.c.b16 %v1026, %v1017
        %v1288 = vpack.c.b16 %v1027, %v1018
        %v1289 = vpack.c.b16 %v1028, %v1019
        %v1290 = vpack.c.b16 %v1029, %v1020
        %v1291 = vpack.c.b16 %v1030, %v1021
        %v1292 = vpack.c.b16 %v1031, %v1022
        %v1293 = vpack.c.b16 %v1041, %v1032
        %v1294 = vpack.c.b16 %v1042, %v1033
        %v1295 = vpack.c.b16 %v1043, %v1034
        %v1296 = vpack.c.b16 %v1044, %v1035
        %v1297 = vpack.c.b16 %v1045, %v1036
        %v1298 = vpack.c.b16 %v1046, %v1037
        %v1299 = vpack.c.b16 %v1047, %v1038
        %v1300 = vpack.c.b16 %v1048, %v1039
        %v1301 = vpack.c.b16 %v1049, %v1040
        %v1302 = vpack.c.b16 %v1059, %v1050
        %v1303 = vpack.c.b16 %v1060, %v1051
        %v1304 = vpack.c.b16 %v1061, %v1052
        %v1305 = vpack.c.b16 %v1062, %v1053
        %v1306 = vpack.c.b16 %v1063, %v1054
        %v1307 = vpack.c.b16 %v1064, %v1055
        %v1308 = vpack.c.b16 %v1065, %v1056
        %v1309 = vpack.c.b16 %v1066, %v1057
        %v1310 = vpack.c.b16 %v1067, %v1058
        %v1311 = vpack.c.b16 %v1077, %v1068
        %v1312 = vpack.c.b16 %v1078, %v1069
        %v1313 = vpack.c.b16 %v1079, %v1070
        %v1314 = vpack.c.b16 %v1080, %v1071
        %v1315 = vpack.c.b16 %v1081, %v1072
        %v1316 = vpack.c.b16 %v1082, %v1073
        %v1317 = vpack.c.b16 %v1083, %v1074
        %v1318 = vpack.c.b16 %v1084, %v1075
        %v1319 = vpack.c.b16 %v1085, %v1076
        %v1320 = vpack.c.b16 %v1095, %v1086
        %v1321 = vpack.c.b16 %v1096, %v1087
        %v1322 = vpack.c.b16 %v1097, %v1088
        %v1323 = vpack.c.b16 %v1098, %v1089
        %v1324 = vpack.c.b16 %v1099, %v1090
        %v1325 = vpack.c.b16 %v1100, %v1091
        %v1326 = vpack.c.b16 %v1101, %v1092
        %v1327 = vpack.c.b16 %v1102, %v1093
        %v1328 = vpack.c.b16 %v1103, %v1094
        %v1329 = vpack.c.b16 %v1113, %v1104
        %v1330 = vpack.c.b16 %v1114, %v1105
        %v1331 = vpack.c.b16 %v1115, %v1106
        %v1332 = vpack.c.b16 %v1116, %v1107
        %v1333 = vpack.c.b16 %v1117, %v1108
        %v1334 = vpack.c.b16 %v1118, %v1109
        %v1335 = vpack.c.b16 %v1119, %v1110
        %v1336 = vpack.c.b16 %v1120, %v1111
        %v1337 = vpack.c.b16 %v1121, %v1112
        %1554 = vmatprep.subr.bf16.mxu0 %v1186
        %1555 = vmatpush1.bf16.msra.mxu0 %v1185
        %1556 = vmatprep.subr.bf16.mxu0 %v1177
        %1557 = vmatpush1.bf16.msra.mxu0 %v1176
        %1558 = vmatprep.subr.bf16.mxu0 %v1168
        %1559 = vmatpush1.bf16.msra.mxu0 %v1167
        %1560 = vmatprep.subr.bf16.mxu0 %v1159
        %1561 = vmatpush1.bf16.msra.mxu0 %v1158
        %1562 = vmatprep.subr.bf16.mxu0 %v1150
        %1563 = vmatpush1.bf16.msra.mxu0 %v1149
        %1564 = vmatprep.subr.bf16.mxu0 %v1141
        %1565 = vmatpush1.bf16.msra.mxu0 %v1140
        %1566 = vmatprep.subr.bf16.mxu0 %v1132
        %1567 = vmatpush1.bf16.msra.mxu0 %v1131
        %1568 = vmatprep.subr.bf16.mxu0 %v1123
        %1569 = vmatpush1.bf16.msra.mxu0 %v1122
        %1570 = vmatprep.subr.bf16.mxu0 %v1258
        %1571 = vmatpush2.bf16.msra.mxu0 %v1257
        %1572 = vmatprep.subr.bf16.mxu0 %v1249
        %1573 = vmatpush2.bf16.msra.mxu0 %v1248
        %1574 = vmatprep.subr.bf16.mxu0 %v1240
        %1575 = vmatpush2.bf16.msra.mxu0 %v1239
        %1576 = vmatprep.subr.bf16.mxu0 %v1231
        %1577 = vmatpush2.bf16.msra.mxu0 %v1230
        %1578 = vmatprep.subr.bf16.mxu0 %v1222
        %1579 = vmatpush2.bf16.msra.mxu0 %v1221
        %1580 = vmatprep.subr.bf16.mxu0 %v1213
        %1581 = vmatpush2.bf16.msra.mxu0 %v1212
        %1582 = vmatprep.subr.bf16.mxu0 %v1204
        %1583 = vmatpush2.bf16.msra.mxu0 %v1203
        %1584 = vmatprep.subr.bf16.mxu0 %v1195
        %1585 = vmatpush2.bf16.msra.mxu0 %v1194
        %1586 = vmatprep.mubr.bf16.mxu0 %v445
        %1587 = vmatmul.mubr.bf16.gmra.mxu0 %v444
        %v1588 = vpop.f32.mrf.mxu0
        %v1589 = vadd.f32 0.0, %v1588
        %v1590 = vpop.f32.mrf.mxu0
        %v1591 = vadd.f32 0.0, %v1590
        %v1592 = vpop.f32.mrf.mxu0
        %v1593 = vpop.f32.mrf.mxu0
        %1594 = vdwg.mxu0
        %1595 = vmatprep.subr.bf16.mxu0 %v1330
        %1596 = vmatpush1.bf16.msra.mxu0 %v1329
        %1597 = vmatprep.subr.bf16.mxu0 %v1321
        %1598 = vmatpush1.bf16.msra.mxu0 %v1320
        %1599 = vmatprep.subr.bf16.mxu0 %v1312
        %1600 = vmatpush1.bf16.msra.mxu0 %v1311
        %1601 = vmatprep.subr.bf16.mxu0 %v1303
        %1602 = vmatpush1.bf16.msra.mxu0 %v1302
        %1603 = vmatprep.subr.bf16.mxu0 %v1294
        %1604 = vmatpush1.bf16.msra.mxu0 %v1293
        %1605 = vmatprep.subr.bf16.mxu0 %v1285
        %1606 = vmatpush1.bf16.msra.mxu0 %v1284
        %1607 = vmatprep.subr.bf16.mxu0 %v1276
        %1608 = vmatpush1.bf16.msra.mxu0 %v1275
        %1609 = vmatprep.subr.bf16.mxu0 %v1267
        %1610 = vmatpush1.bf16.msra.mxu0 %v1266
        %1611 = vmatprep.subr.bf16.mxu0 0
        %1612 = vmatpush2.bf16.msra.mxu0 0
        %1613 = vmatprep.subr.bf16.mxu0 0
        %1614 = vmatpush2.bf16.msra.mxu0 0
        %1615 = vmatprep.subr.bf16.mxu0 0
        %1616 = vmatpush2.bf16.msra.mxu0 0
        %1617 = vmatprep.subr.bf16.mxu0 0
        %1618 = vmatpush2.bf16.msra.mxu0 0
        %1619 = vmatprep.subr.bf16.mxu0 0
        %1620 = vmatpush2.bf16.msra.mxu0 0
        %1621 = vmatprep.subr.bf16.mxu0 0
        %1622 = vmatpush2.bf16.msra.mxu0 0
        %1623 = vmatprep.subr.bf16.mxu0 0
        %1624 = vmatpush2.bf16.msra.mxu0 0
        %1625 = vmatprep.subr.bf16.mxu0 0
        %1626 = vmatpush2.bf16.msra.mxu0 0
        %1627 = vmatprep.mubr.bf16.mxu0 0
        %1628 = vmatmul.mubr.bf16.gmra.mxu0 %v446
        %v1629 = vpop.f32.mrf.mxu0
        %v1630 = vadd.f32 %v1589, %v1629
        %v1631 = vpop.f32.mrf.mxu0
        %v1632 = vadd.f32 %v1591, %v1631
        %v1633 = vpop.f32.mrf.mxu0
        %v1634 = vpop.f32.mrf.mxu0
        %1635 = vdwg.mxu0
        %1636 = vmatprep.subr.bf16.mxu0 %v1188
        %1637 = vmatpush1.bf16.msra.mxu0 %v1187
        %1638 = vmatprep.subr.bf16.mxu0 %v1179
        %1639 = vmatpush1.bf16.msra.mxu0 %v1178
        %1640 = vmatprep.subr.bf16.mxu0 %v1170
        %1641 = vmatpush1.bf16.msra.mxu0 %v1169
        %1642 = vmatprep.subr.bf16.mxu0 %v1161
        %1643 = vmatpush1.bf16.msra.mxu0 %v1160
        %1644 = vmatprep.subr.bf16.mxu0 %v1152
        %1645 = vmatpush1.bf16.msra.mxu0 %v1151
        %1646 = vmatprep.subr.bf16.mxu0 %v1143
        %1647 = vmatpush1.bf16.msra.mxu0 %v1142
        %1648 = vmatprep.subr.bf16.mxu0 %v1134
        %1649 = vmatpush1.bf16.msra.mxu0 %v1133
        %1650 = vmatprep.subr.bf16.mxu0 %v1125
        %1651 = vmatpush1.bf16.msra.mxu0 %v1124
        %1652 = vmatprep.subr.bf16.mxu0 %v1260
        %1653 = vmatpush2.bf16.msra.mxu0 %v1259
        %1654 = vmatprep.subr.bf16.mxu0 %v1251
        %1655 = vmatpush2.bf16.msra.mxu0 %v1250
        %1656 = vmatprep.subr.bf16.mxu0 %v1242
        %1657 = vmatpush2.bf16.msra.mxu0 %v1241
        %1658 = vmatprep.subr.bf16.mxu0 %v1233
        %1659 = vmatpush2.bf16.msra.mxu0 %v1232
        %1660 = vmatprep.subr.bf16.mxu0 %v1224
        %1661 = vmatpush2.bf16.msra.mxu0 %v1223
        %1662 = vmatprep.subr.bf16.mxu0 %v1215
        %1663 = vmatpush2.bf16.msra.mxu0 %v1214
        %1664 = vmatprep.subr.bf16.mxu0 %v1206
        %1665 = vmatpush2.bf16.msra.mxu0 %v1205
        %1666 = vmatprep.subr.bf16.mxu0 %v1197
        %1667 = vmatpush2.bf16.msra.mxu0 %v1196
        %1668 = vmatprep.mubr.bf16.mxu0 %v445
        %1669 = vmatmul.mubr.bf16.gmra.mxu0 %v444
        %v1670 = vpop.f32.mrf.mxu0
        %v1671 = vadd.f32 0.0, %v1670
        %v1672 = vpop.f32.mrf.mxu0
        %v1673 = vadd.f32 0.0, %v1672
        %v1674 = vpop.f32.mrf.mxu0
        %v1675 = vpop.f32.mrf.mxu0
        %1676 = vdwg.mxu0
        %1677 = vmatprep.subr.bf16.mxu0 %v1332
        %1678 = vmatpush1.bf16.msra.mxu0 %v1331
        %1679 = vmatprep.subr.bf16.mxu0 %v1323
        %1680 = vmatpush1.bf16.msra.mxu0 %v1322
        %1681 = vmatprep.subr.bf16.mxu0 %v1314
        %1682 = vmatpush1.bf16.msra.mxu0 %v1313
        %1683 = vmatprep.subr.bf16.mxu0 %v1305
        %1684 = vmatpush1.bf16.msra.mxu0 %v1304
        %1685 = vmatprep.subr.bf16.mxu0 %v1296
        %1686 = vmatpush1.bf16.msra.mxu0 %v1295
        %1687 = vmatprep.subr.bf16.mxu0 %v1287
        %1688 = vmatpush1.bf16.msra.mxu0 %v1286
        %1689 = vmatprep.subr.bf16.mxu0 %v1278
        %1690 = vmatpush1.bf16.msra.mxu0 %v1277
        %1691 = vmatprep.subr.bf16.mxu0 %v1269
        %1692 = vmatpush1.bf16.msra.mxu0 %v1268
        %1693 = vmatprep.subr.bf16.mxu0 0
        %1694 = vmatpush2.bf16.msra.mxu0 0
        %1695 = vmatprep.subr.bf16.mxu0 0
        %1696 = vmatpush2.bf16.msra.mxu0 0
        %1697 = vmatprep.subr.bf16.mxu0 0
        %1698 = vmatpush2.bf16.msra.mxu0 0
        %1699 = vmatprep.subr.bf16.mxu0 0
        %1700 = vmatpush2.bf16.msra.mxu0 0
        %1701 = vmatprep.subr.bf16.mxu0 0
        %1702 = vmatpush2.bf16.msra.mxu0 0
        %1703 = vmatprep.subr.bf16.mxu0 0
        %1704 = vmatpush2.bf16.msra.mxu0 0
        %1705 = vmatprep.subr.bf16.mxu0 0
        %1706 = vmatpush2.bf16.msra.mxu0 0
        %1707 = vmatprep.subr.bf16.mxu0 0
        %1708 = vmatpush2.bf16.msra.mxu0 0
        %1709 = vmatprep.mubr.bf16.mxu0 0
        %1710 = vmatmul.mubr.bf16.gmra.mxu0 %v446
        %v1711 = vpop.f32.mrf.mxu0
        %v1712 = vadd.f32 %v1671, %v1711
        %v1713 = vpop.f32.mrf.mxu0
        %v1714 = vadd.f32 %v1673, %v1713
        %v1715 = vpop.f32.mrf.mxu0
        %v1716 = vpop.f32.mrf.mxu0
        %1717 = vdwg.mxu0
        %1718 = vmatprep.subr.bf16.mxu0 %v1190
        %1719 = vmatpush1.bf16.msra.mxu0 %v1189
        %1720 = vmatprep.subr.bf16.mxu0 %v1181
        %1721 = vmatpush1.bf16.msra.mxu0 %v1180
        %1722 = vmatprep.subr.bf16.mxu0 %v1172
        %1723 = vmatpush1.bf16.msra.mxu0 %v1171
        %1724 = vmatprep.subr.bf16.mxu0 %v1163
        %1725 = vmatpush1.bf16.msra.mxu0 %v1162
        %1726 = vmatprep.subr.bf16.mxu0 %v1154
        %1727 = vmatpush1.bf16.msra.mxu0 %v1153
        %1728 = vmatprep.subr.bf16.mxu0 %v1145
        %1729 = vmatpush1.bf16.msra.mxu0 %v1144
        %1730 = vmatprep.subr.bf16.mxu0 %v1136
        %1731 = vmatpush1.bf16.msra.mxu0 %v1135
        %1732 = vmatprep.subr.bf16.mxu0 %v1127
        %1733 = vmatpush1.bf16.msra.mxu0 %v1126
        %1734 = vmatprep.subr.bf16.mxu0 %v1262
        %1735 = vmatpush2.bf16.msra.mxu0 %v1261
        %1736 = vmatprep.subr.bf16.mxu0 %v1253
        %1737 = vmatpush2.bf16.msra.mxu0 %v1252
        %1738 = vmatprep.subr.bf16.mxu0 %v1244
        %1739 = vmatpush2.bf16.msra.mxu0 %v1243
        %1740 = vmatprep.subr.bf16.mxu0 %v1235
        %1741 = vmatpush2.bf16.msra.mxu0 %v1234
        %1742 = vmatprep.subr.bf16.mxu0 %v1226
        %1743 = vmatpush2.bf16.msra.mxu0 %v1225
        %1744 = vmatprep.subr.bf16.mxu0 %v1217
        %1745 = vmatpush2.bf16.msra.mxu0 %v1216
        %1746 = vmatprep.subr.bf16.mxu0 %v1208
        %1747 = vmatpush2.bf16.msra.mxu0 %v1207
        %1748 = vmatprep.subr.bf16.mxu0 %v1199
        %1749 = vmatpush2.bf16.msra.mxu0 %v1198
        %1750 = vmatprep.mubr.bf16.mxu0 %v445
        %1751 = vmatmul.mubr.bf16.gmra.mxu0 %v444
        %v1752 = vpop.f32.mrf.mxu0
        %v1753 = vadd.f32 0.0, %v1752
        %v1754 = vpop.f32.mrf.mxu0
        %v1755 = vadd.f32 0.0, %v1754
        %v1756 = vpop.f32.mrf.mxu0
        %v1757 = vpop.f32.mrf.mxu0
        %1758 = vdwg.mxu0
        %1759 = vmatprep.subr.bf16.mxu0 %v1334
        %1760 = vmatpush1.bf16.msra.mxu0 %v1333
        %1761 = vmatprep.subr.bf16.mxu0 %v1325
        %1762 = vmatpush1.bf16.msra.mxu0 %v1324
        %1763 = vmatprep.subr.bf16.mxu0 %v1316
        %1764 = vmatpush1.bf16.msra.mxu0 %v1315
        %1765 = vmatprep.subr.bf16.mxu0 %v1307
        %1766 = vmatpush1.bf16.msra.mxu0 %v1306
        %1767 = vmatprep.subr.bf16.mxu0 %v1298
        %1768 = vmatpush1.bf16.msra.mxu0 %v1297
        %1769 = vmatprep.subr.bf16.mxu0 %v1289
        %1770 = vmatpush1.bf16.msra.mxu0 %v1288
        %1771 = vmatprep.subr.bf16.mxu0 %v1280
        %1772 = vmatpush1.bf16.msra.mxu0 %v1279
        %1773 = vmatprep.subr.bf16.mxu0 %v1271
        %1774 = vmatpush1.bf16.msra.mxu0 %v1270
        %1775 = vmatprep.subr.bf16.mxu0 0
        %1776 = vmatpush2.bf16.msra.mxu0 0
        %1777 = vmatprep.subr.bf16.mxu0 0
        %1778 = vmatpush2.bf16.msra.mxu0 0
        %1779 = vmatprep.subr.bf16.mxu0 0
        %1780 = vmatpush2.bf16.msra.mxu0 0
        %1781 = vmatprep.subr.bf16.mxu0 0
        %1782 = vmatpush2.bf16.msra.mxu0 0
        %1783 = vmatprep.subr.bf16.mxu0 0
        %1784 = vmatpush2.bf16.msra.mxu0 0
        %1785 = vmatprep.subr.bf16.mxu0 0
        %1786 = vmatpush2.bf16.msra.mxu0 0
        %1787 = vmatprep.subr.bf16.mxu0 0
        %1788 = vmatpush2.bf16.msra.mxu0 0
        %1789 = vmatprep.subr.bf16.mxu0 0
        %1790 = vmatpush2.bf16.msra.mxu0 0
        %1791 = vmatprep.mubr.bf16.mxu0 0
        %1792 = vmatmul.mubr.bf16.gmra.mxu0 %v446
        %v1793 = vpop.f32.mrf.mxu0
        %v1794 = vadd.f32 %v1753, %v1793
        %v1795 = vpop.f32.mrf.mxu0
        %v1796 = vadd.f32 %v1755, %v1795
        %v1797 = vpop.f32.mrf.mxu0
        %v1798 = vpop.f32.mrf.mxu0
        %1799 = vdwg.mxu0
        %1800 = vmatprep.subr.bf16.mxu0 %v1192
        %1801 = vmatpush1.bf16.msra.mxu0 %v1191
        %1802 = vmatprep.subr.bf16.mxu0 %v1183
        %1803 = vmatpush1.bf16.msra.mxu0 %v1182
        %1804 = vmatprep.subr.bf16.mxu0 %v1174
        %1805 = vmatpush1.bf16.msra.mxu0 %v1173
        %1806 = vmatprep.subr.bf16.mxu0 %v1165
        %1807 = vmatpush1.bf16.msra.mxu0 %v1164
        %1808 = vmatprep.subr.bf16.mxu0 %v1156
        %1809 = vmatpush1.bf16.msra.mxu0 %v1155
        %1810 = vmatprep.subr.bf16.mxu0 %v1147
        %1811 = vmatpush1.bf16.msra.mxu0 %v1146
        %1812 = vmatprep.subr.bf16.mxu0 %v1138
        %1813 = vmatpush1.bf16.msra.mxu0 %v1137
        %1814 = vmatprep.subr.bf16.mxu0 %v1129
        %1815 = vmatpush1.bf16.msra.mxu0 %v1128
        %1816 = vmatprep.subr.bf16.mxu0 %v1264
        %1817 = vmatpush2.bf16.msra.mxu0 %v1263
        %1818 = vmatprep.subr.bf16.mxu0 %v1255
        %1819 = vmatpush2.bf16.msra.mxu0 %v1254
        %1820 = vmatprep.subr.bf16.mxu0 %v1246
        %1821 = vmatpush2.bf16.msra.mxu0 %v1245
        %1822 = vmatprep.subr.bf16.mxu0 %v1237
        %1823 = vmatpush2.bf16.msra.mxu0 %v1236
        %1824 = vmatprep.subr.bf16.mxu0 %v1228
        %1825 = vmatpush2.bf16.msra.mxu0 %v1227
        %1826 = vmatprep.subr.bf16.mxu0 %v1219
        %1827 = vmatpush2.bf16.msra.mxu0 %v1218
        %1828 = vmatprep.subr.bf16.mxu0 %v1210
        %1829 = vmatpush2.bf16.msra.mxu0 %v1209
        %1830 = vmatprep.subr.bf16.mxu0 %v1201
        %1831 = vmatpush2.bf16.msra.mxu0 %v1200
        %1832 = vmatprep.mubr.bf16.mxu0 %v445
        %1833 = vmatmul.mubr.bf16.gmra.mxu0 %v444
        %v1834 = vpop.f32.mrf.mxu0
        %v1835 = vadd.f32 0.0, %v1834
        %v1836 = vpop.f32.mrf.mxu0
        %v1837 = vadd.f32 0.0, %v1836
        %v1838 = vpop.f32.mrf.mxu0
        %v1839 = vpop.f32.mrf.mxu0
        %1840 = vdwg.mxu0
        %1841 = vmatprep.subr.bf16.mxu0 %v1336
        %1842 = vmatpush1.bf16.msra.mxu0 %v1335
        %1843 = vmatprep.subr.bf16.mxu0 %v1327
        %1844 = vmatpush1.bf16.msra.mxu0 %v1326
        %1845 = vmatprep.subr.bf16.mxu0 %v1318
        %1846 = vmatpush1.bf16.msra.mxu0 %v1317
        %1847 = vmatprep.subr.bf16.mxu0 %v1309
        %1848 = vmatpush1.bf16.msra.mxu0 %v1308
        %1849 = vmatprep.subr.bf16.mxu0 %v1300
        %1850 = vmatpush1.bf16.msra.mxu0 %v1299
        %1851 = vmatprep.subr.bf16.mxu0 %v1291
        %1852 = vmatpush1.bf16.msra.mxu0 %v1290
        %1853 = vmatprep.subr.bf16.mxu0 %v1282
        %1854 = vmatpush1.bf16.msra.mxu0 %v1281
        %1855 = vmatprep.subr.bf16.mxu0 %v1273
        %1856 = vmatpush1.bf16.msra.mxu0 %v1272
        %1857 = vmatprep.subr.bf16.mxu0 0
        %1858 = vmatpush2.bf16.msra.mxu0 0
        %1859 = vmatprep.subr.bf16.mxu0 0
        %1860 = vmatpush2.bf16.msra.mxu0 0
        %1861 = vmatprep.subr.bf16.mxu0 0
        %1862 = vmatpush2.bf16.msra.mxu0 0
        %1863 = vmatprep.subr.bf16.mxu0 0
        %1864 = vmatpush2.bf16.msra.mxu0 0
        %1865 = vmatprep.subr.bf16.mxu0 0
        %1866 = vmatpush2.bf16.msra.mxu0 0
        %1867 = vmatprep.subr.bf16.mxu0 0
        %1868 = vmatpush2.bf16.msra.mxu0 0
        %1869 = vmatprep.subr.bf16.mxu0 0
        %1870 = vmatpush2.bf16.msra.mxu0 0
        %1871 = vmatprep.subr.bf16.mxu0 0
        %1872 = vmatpush2.bf16.msra.mxu0 0
        %1873 = vmatprep.mubr.bf16.mxu0 0
        %1874 = vmatmul.mubr.bf16.gmra.mxu0 %v446
        %v1875 = vpop.f32.mrf.mxu0
        %v1876 = vadd.f32 %v1835, %v1875
        %v1877 = vpop.f32.mrf.mxu0
        %v1878 = vadd.f32 %v1837, %v1877
        %v1879 = vpop.f32.mrf.mxu0
        %v1880 = vpop.f32.mrf.mxu0
        %1881 = vdwg.mxu0
        %1882 = vmatprep.subr.bf16.mxu0 0
        %1883 = vmatpush1.bf16.msra.mxu0 %v1193
        %1884 = vmatprep.subr.bf16.mxu0 0
        %1885 = vmatpush1.bf16.msra.mxu0 %v1184
        %1886 = vmatprep.subr.bf16.mxu0 0
        %1887 = vmatpush1.bf16.msra.mxu0 %v1175
        %1888 = vmatprep.subr.bf16.mxu0 0
        %1889 = vmatpush1.bf16.msra.mxu0 %v1166
        %1890 = vmatprep.subr.bf16.mxu0 0
        %1891 = vmatpush1.bf16.msra.mxu0 %v1157
        %1892 = vmatprep.subr.bf16.mxu0 0
        %1893 = vmatpush1.bf16.msra.mxu0 %v1148
        %1894 = vmatprep.subr.bf16.mxu0 0
        %1895 = vmatpush1.bf16.msra.mxu0 %v1139
        %1896 = vmatprep.subr.bf16.mxu0 0
        %1897 = vmatpush1.bf16.msra.mxu0 %v1130
        %1898 = vmatprep.subr.bf16.mxu0 0
        %1899 = vmatpush2.bf16.msra.mxu0 %v1265
        %1900 = vmatprep.subr.bf16.mxu0 0
        %1901 = vmatpush2.bf16.msra.mxu0 %v1256
        %1902 = vmatprep.subr.bf16.mxu0 0
        %1903 = vmatpush2.bf16.msra.mxu0 %v1247
        %1904 = vmatprep.subr.bf16.mxu0 0
        %1905 = vmatpush2.bf16.msra.mxu0 %v1238
        %1906 = vmatprep.subr.bf16.mxu0 0
        %1907 = vmatpush2.bf16.msra.mxu0 %v1229
        %1908 = vmatprep.subr.bf16.mxu0 0
        %1909 = vmatpush2.bf16.msra.mxu0 %v1220
        %1910 = vmatprep.subr.bf16.mxu0 0
        %1911 = vmatpush2.bf16.msra.mxu0 %v1211
        %1912 = vmatprep.subr.bf16.mxu0 0
        %1913 = vmatpush2.bf16.msra.mxu0 %v1202
        %1914 = vmatprep.mubr.bf16.mxu0 %v445
        %1915 = vmatmul.mubr.bf16.gmra.mxu0 %v444
        %v1916 = vpop.f32.mrf.mxu0
        %v1917 = vadd.f32 0.0, %v1916
        %v1918 = vpop.f32.mrf.mxu0
        %v1919 = vpop.f32.mrf.mxu0
        %v1920 = vpop.f32.mrf.mxu0
        %1921 = vdwg.mxu0
        %1922 = vmatprep.subr.bf16.mxu0 0
        %1923 = vmatpush1.bf16.msra.mxu0 %v1337
        %1924 = vmatprep.subr.bf16.mxu0 0
        %1925 = vmatpush1.bf16.msra.mxu0 %v1328
        %1926 = vmatprep.subr.bf16.mxu0 0
        %1927 = vmatpush1.bf16.msra.mxu0 %v1319
        %1928 = vmatprep.subr.bf16.mxu0 0
        %1929 = vmatpush1.bf16.msra.mxu0 %v1310
        %1930 = vmatprep.subr.bf16.mxu0 0
        %1931 = vmatpush1.bf16.msra.mxu0 %v1301
        %1932 = vmatprep.subr.bf16.mxu0 0
        %1933 = vmatpush1.bf16.msra.mxu0 %v1292
        %1934 = vmatprep.subr.bf16.mxu0 0
        %1935 = vmatpush1.bf16.msra.mxu0 %v1283
        %1936 = vmatprep.subr.bf16.mxu0 0
        %1937 = vmatpush1.bf16.msra.mxu0 %v1274
        %1938 = vmatprep.subr.bf16.mxu0 0
        %1939 = vmatpush2.bf16.msra.mxu0 0
        %1940 = vmatprep.subr.bf16.mxu0 0
        %1941 = vmatpush2.bf16.msra.mxu0 0
        %1942 = vmatprep.subr.bf16.mxu0 0
        %1943 = vmatpush2.bf16.msra.mxu0 0
        %1944 = vmatprep.subr.bf16.mxu0 0
        %1945 = vmatpush2.bf16.msra.mxu0 0
        %1946 = vmatprep.subr.bf16.mxu0 0
        %1947 = vmatpush2.bf16.msra.mxu0 0
        %1948 = vmatprep.subr.bf16.mxu0 0
        %1949 = vmatpush2.bf16.msra.mxu0 0
        %1950 = vmatprep.subr.bf16.mxu0 0
        %1951 = vmatpush2.bf16.msra.mxu0 0
        %1952 = vmatprep.subr.bf16.mxu0 0
        %1953 = vmatpush2.bf16.msra.mxu0 0
        %1954 = vmatprep.mubr.bf16.mxu0 0
        %1955 = vmatmul.mubr.bf16.gmra.mxu0 %v446
        %v1956 = vpop.f32.mrf.mxu0
        %v1957 = vadd.f32 %v1917, %v1956
        %v1958 = vpop.f32.mrf.mxu0
        %v1959 = vpop.f32.mrf.mxu0
        %v1960 = vpop.f32.mrf.mxu0
        %1961 = vdwg.mxu0
        %v1962 = vmul.f32 %v1630, 0.125
        %v1963 = vmul.f32 %v1632, 0.125
        %v1964 = vmul.f32 %v1712, 0.125
        %v1965 = vpack.c.bf16 %v1962, %v1962
        %v1966 = vpack.c.bf16 %v1963, %v1963
        %v1967 = vpack.c.bf16 %v1964, %v1964
        %v1968 = vpack.c.bf16 %v1714, %v1714
        %v1969 = vpack.c.bf16 %v1794, %v1794
        %v1970 = vpack.c.bf16 %v1796, %v1796
        %v1971 = vpack.c.bf16 %v1876, %v1876
        %v1972 = vpack.c.bf16 %v1878, %v1878
        %v1973 = vpack.c.bf16 %v1957, %v1957
        %v1974 = vlaneseq
        %v1975 = vshrl.u32 %v1974, 7
        %v1976 = vlaneseq
        %v1977 = vand.u32 %v1976, 127
        %vm1978 = vcmp.le.s32.totalorder %v1977, %v1975
        %vm1979 = vcmask 523264
        %v1981 = vsel %vm1979, %v1965, 0
        %v1984 = vsel %vm1979, %v1968, 0
        %1986 = vmatprep.subr.bf16.mxu0 0
        %1987 = vmatpush1.bf16.xpose.msra.mxu0 0
        %1988 = vmatprep.subr.bf16.mxu0 0
        %1989 = vmatpush1.bf16.xpose.msra.mxu0 0
        %1990 = vmatprep.subr.bf16.mxu0 0
        %1991 = vmatpush1.bf16.xpose.msra.mxu0 0
        %1992 = vmatprep.subr.bf16.mxu0 0
        %1993 = vmatpush1.bf16.xpose.msra.mxu0 0
        %1994 = vmatprep.subr.bf16.mxu0 0
        %1995 = vmatpush1.bf16.xpose.msra.mxu0 0
        %1996 = vmatprep.subr.bf16.mxu0 0
        %1997 = vmatpush1.bf16.xpose.msra.mxu0 0
        %1998 = vmatprep.subr.bf16.mxu0 0
        %1999 = vmatpush1.bf16.xpose.msra.mxu0 0
        %2000 = vmatprep.subr.bf16.mxu0 0
        %2001 = vmatpush1.bf16.xpose.msra.mxu0 %v1984
        %2002 = vmatprep.subr.bf16.mxu0 0
        %2003 = vmatpush2.bf16.xpose.msra.mxu0 0
        %2004 = vmatprep.subr.bf16.mxu0 0
        %2005 = vmatpush2.bf16.xpose.msra.mxu0 0
        %2006 = vmatprep.subr.bf16.mxu0 0
        %2007 = vmatpush2.bf16.xpose.msra.mxu0 0
        %2008 = vmatprep.subr.bf16.mxu0 0
        %2009 = vmatpush2.bf16.xpose.msra.mxu0 0
        %2010 = vmatprep.subr.bf16.mxu0 0
        %2011 = vmatpush2.bf16.xpose.msra.mxu0 0
        %2012 = vmatprep.subr.bf16.mxu0 0
        %2013 = vmatpush2.bf16.xpose.msra.mxu0 0
        %2014 = vmatprep.subr.bf16.mxu0 0
        %2015 = vmatpush2.bf16.xpose.msra.mxu0 0
        %2016 = vmatprep.subr.bf16.mxu0 0
        %2017 = vmatpush2.bf16.xpose.msra.mxu0 0
        %2018 = vmatprep.mubr.bf16.mxu0 0
        %2019 = vmatmul.mubr.bf16.gmra.mxu0 %v1981
        %v2020 = vpop.f32.mrf.mxu0
        %v2021 = vadd.f32 0.0, %v2020
        %v2022 = vpop.f32.mrf.mxu0
        %v2023 = vpop.f32.mrf.mxu0
        %v2024 = vpop.f32.mrf.mxu0
        %2025 = vdwg.mxu0
        %v2026 = vsel %vm1978, %v2021, -inf
        %vm2027 = vcmask 64512
        %v2028 = vsel %vm2027, %v2026, -inf
        %2029 = vmax.xlane.f32.xlu0 %v2028
        %v2030 = vpop.xlane.xlu0 %2029
        %v2031 = vsub.f32 %v2026, %v2030
        %v2032 = vmul.f32 %v2031, 1.442695
        %v2033 = vpow.pop %v2032
        %v2034 = vsel %vm2027, %v2033, 0.0
        %2035 = vadd.xlane.f32.xlu0 %v2034
        %v2036 = vpop.xlane.xlu0 %2035
        %v2037 = vpack.c.bf16 %v2033, %v2033
        %v2039 = vsel %vm2027, %v2037, 0
        %vm2041 = vcmask 1043456
        %v2043 = vsel %vm2041, %v1971, 0
        %2045 = vmatprep.subr.bf16.mxu0 0
        %2046 = vmatpush1.bf16.msra.mxu0 0
        %2047 = vmatprep.subr.bf16.mxu0 0
        %2048 = vmatpush1.bf16.msra.mxu0 0
        %2049 = vmatprep.subr.bf16.mxu0 0
        %2050 = vmatpush1.bf16.msra.mxu0 0
        %2051 = vmatprep.subr.bf16.mxu0 0
        %2052 = vmatpush1.bf16.msra.mxu0 0
        %2053 = vmatprep.subr.bf16.mxu0 0
        %2054 = vmatpush1.bf16.msra.mxu0 0
        %2055 = vmatprep.subr.bf16.mxu0 0
        %2056 = vmatpush1.bf16.msra.mxu0 0
        %2057 = vmatprep.subr.bf16.mxu0 0
        %2058 = vmatpush1.bf16.msra.mxu0 0
        %2059 = vmatprep.subr.bf16.mxu0 0
        %2060 = vmatpush1.bf16.msra.mxu0 %v2043
        %2061 = vmatprep.subr.bf16.mxu0 0
        %2062 = vmatpush2.bf16.msra.mxu0 0
        %2063 = vmatprep.subr.bf16.mxu0 0
        %2064 = vmatpush2.bf16.msra.mxu0 0
        %2065 = vmatprep.subr.bf16.mxu0 0
        %2066 = vmatpush2.bf16.msra.mxu0 0
        %2067 = vmatprep.subr.bf16.mxu0 0
        %2068 = vmatpush2.bf16.msra.mxu0 0
        %2069 = vmatprep.subr.bf16.mxu0 0
        %2070 = vmatpush2.bf16.msra.mxu0 0
        %2071 = vmatprep.subr.bf16.mxu0 0
        %2072 = vmatpush2.bf16.msra.mxu0 0
        %2073 = vmatprep.subr.bf16.mxu0 0
        %2074 = vmatpush2.bf16.msra.mxu0 0
        %2075 = vmatprep.subr.bf16.mxu0 0
        %2076 = vmatpush2.bf16.msra.mxu0 0
        %2077 = vmatprep.mubr.bf16.mxu0 0
        %2078 = vmatmul.mubr.bf16.gmra.mxu0 %v2039
        %v2079 = vpop.f32.mrf.mxu0
        %v2080 = vadd.f32 0.0, %v2079
        %v2081 = vpop.f32.mrf.mxu0
        %v2082 = vpop.f32.mrf.mxu0
        %v2083 = vpop.f32.mrf.mxu0
        %2084 = vdwg.mxu0
        %v2085 = vrcp.pop %v2036
        %v2086 = vmul.f32 %v2080, %v2085
        %2088 = vrot.lane.b32.xlu0 %v1965, 64
        %v2089 = vpop.permute.xlu0 %2088
        %2091 = vrot.lane.b32.xlu0 %v1968, 64
        %v2092 = vpop.permute.xlu0 %2091
        %v2094 = vsel %vm1979, %v2089, 0
        %v2097 = vsel %vm1979, %v2092, 0
        %2099 = vmatprep.subr.bf16.mxu0 0
        %2100 = vmatpush1.bf16.xpose.msra.mxu0 0
        %2101 = vmatprep.subr.bf16.mxu0 0
        %2102 = vmatpush1.bf16.xpose.msra.mxu0 0
        %2103 = vmatprep.subr.bf16.mxu0 0
        %2104 = vmatpush1.bf16.xpose.msra.mxu0 0
        %2105 = vmatprep.subr.bf16.mxu0 0
        %2106 = vmatpush1.bf16.xpose.msra.mxu0 0
        %2107 = vmatprep.subr.bf16.mxu0 0
        %2108 = vmatpush1.bf16.xpose.msra.mxu0 0
        %2109 = vmatprep.subr.bf16.mxu0 0
        %2110 = vmatpush1.bf16.xpose.msra.mxu0 0
        %2111 = vmatprep.subr.bf16.mxu0 0
        %2112 = vmatpush1.bf16.xpose.msra.mxu0 0
        %2113 = vmatprep.subr.bf16.mxu0 0
        %2114 = vmatpush1.bf16.xpose.msra.mxu0 %v2097
        %2115 = vmatprep.subr.bf16.mxu0 0
        %2116 = vmatpush2.bf16.xpose.msra.mxu0 0
        %2117 = vmatprep.subr.bf16.mxu0 0
        %2118 = vmatpush2.bf16.xpose.msra.mxu0 0
        %2119 = vmatprep.subr.bf16.mxu0 0
        %2120 = vmatpush2.bf16.xpose.msra.mxu0 0
        %2121 = vmatprep.subr.bf16.mxu0 0
        %2122 = vmatpush2.bf16.xpose.msra.mxu0 0
        %2123 = vmatprep.subr.bf16.mxu0 0
        %2124 = vmatpush2.bf16.xpose.msra.mxu0 0
        %2125 = vmatprep.subr.bf16.mxu0 0
        %2126 = vmatpush2.bf16.xpose.msra.mxu0 0
        %2127 = vmatprep.subr.bf16.mxu0 0
        %2128 = vmatpush2.bf16.xpose.msra.mxu0 0
        %2129 = vmatprep.subr.bf16.mxu0 0
        %2130 = vmatpush2.bf16.xpose.msra.mxu0 0
        %2131 = vmatprep.mubr.bf16.mxu0 0
        %2132 = vmatmul.mubr.bf16.gmra.mxu0 %v2094
        %v2133 = vpop.f32.mrf.mxu0
        %v2134 = vadd.f32 0.0, %v2133
        %v2135 = vpop.f32.mrf.mxu0
        %v2136 = vpop.f32.mrf.mxu0
        %v2137 = vpop.f32.mrf.mxu0
        %2138 = vdwg.mxu0
        %v2139 = vsel %vm1978, %v2134, -inf
        %v2140 = vsel %vm2027, %v2139, -inf
        %2141 = vmax.xlane.f32.xlu0 %v2140
        %v2142 = vpop.xlane.xlu0 %2141
        %v2143 = vsub.f32 %v2139, %v2142
        %v2144 = vmul.f32 %v2143, 1.442695
        %v2145 = vpow.pop %v2144
        %v2146 = vsel %vm2027, %v2145, 0.0
        %2147 = vadd.xlane.f32.xlu0 %v2146
        %v2148 = vpop.xlane.xlu0 %2147
        %v2149 = vpack.c.bf16 %v2145, %v2145
        %2151 = vrot.lane.b32.xlu0 %v1971, 64
        %v2152 = vpop.permute.xlu0 %2151
        %v2154 = vsel %vm2027, %v2149, 0
        %v2157 = vsel %vm2041, %v2152, 0
        %2159 = vmatprep.subr.bf16.mxu0 0
        %2160 = vmatpush1.bf16.msra.mxu0 0
        %2161 = vmatprep.subr.bf16.mxu0 0
        %2162 = vmatpush1.bf16.msra.mxu0 0
        %2163 = vmatprep.subr.bf16.mxu0 0
        %2164 = vmatpush1.bf16.msra.mxu0 0
        %2165 = vmatprep.subr.bf16.mxu0 0
        %2166 = vmatpush1.bf16.msra.mxu0 0
        %2167 = vmatprep.subr.bf16.mxu0 0
        %2168 = vmatpush1.bf16.msra.mxu0 0
        %2169 = vmatprep.subr.bf16.mxu0 0
        %2170 = vmatpush1.bf16.msra.mxu0 0
        %2171 = vmatprep.subr.bf16.mxu0 0
        %2172 = vmatpush1.bf16.msra.mxu0 0
        %2173 = vmatprep.subr.bf16.mxu0 0
        %2174 = vmatpush1.bf16.msra.mxu0 %v2157
        %2175 = vmatprep.subr.bf16.mxu0 0
        %2176 = vmatpush2.bf16.msra.mxu0 0
        %2177 = vmatprep.subr.bf16.mxu0 0
        %2178 = vmatpush2.bf16.msra.mxu0 0
        %2179 = vmatprep.subr.bf16.mxu0 0
        %2180 = vmatpush2.bf16.msra.mxu0 0
        %2181 = vmatprep.subr.bf16.mxu0 0
        %2182 = vmatpush2.bf16.msra.mxu0 0
        %2183 = vmatprep.subr.bf16.mxu0 0
        %2184 = vmatpush2.bf16.msra.mxu0 0
        %2185 = vmatprep.subr.bf16.mxu0 0
        %2186 = vmatpush2.bf16.msra.mxu0 0
        %2187 = vmatprep.subr.bf16.mxu0 0
        %2188 = vmatpush2.bf16.msra.mxu0 0
        %2189 = vmatprep.subr.bf16.mxu0 0
        %2190 = vmatpush2.bf16.msra.mxu0 0
        %2191 = vmatprep.mubr.bf16.mxu0 0
        %2192 = vmatmul.mubr.bf16.gmra.mxu0 %v2154
        %v2193 = vpop.f32.mrf.mxu0
        %v2194 = vadd.f32 0.0, %v2193
        %v2195 = vpop.f32.mrf.mxu0
        %v2196 = vpop.f32.mrf.mxu0
        %v2197 = vpop.f32.mrf.mxu0
        %2198 = vdwg.mxu0
        %v2199 = vrcp.pop %v2148
        %v2200 = vmul.f32 %v2194, %v2199
        %v2202 = vsel %vm1979, %v1966, 0
        %v2205 = vsel %vm1979, %v1969, 0
        %2207 = vmatprep.subr.bf16.mxu0 0
        %2208 = vmatpush1.bf16.xpose.msra.mxu0 0
        %2209 = vmatprep.subr.bf16.mxu0 0
        %2210 = vmatpush1.bf16.xpose.msra.mxu0 0
        %2211 = vmatprep.subr.bf16.mxu0 0
        %2212 = vmatpush1.bf16.xpose.msra.mxu0 0
        %2213 = vmatprep.subr.bf16.mxu0 0
        %2214 = vmatpush1.bf16.xpose.msra.mxu0 0
        %2215 = vmatprep.subr.bf16.mxu0 0
        %2216 = vmatpush1.bf16.xpose.msra.mxu0 0
        %2217 = vmatprep.subr.bf16.mxu0 0
        %2218 = vmatpush1.bf16.xpose.msra.mxu0 0
        %2219 = vmatprep.subr.bf16.mxu0 0
        %2220 = vmatpush1.bf16.xpose.msra.mxu0 0
        %2221 = vmatprep.subr.bf16.mxu0 0
        %2222 = vmatpush1.bf16.xpose.msra.mxu0 %v2205
        %2223 = vmatprep.subr.bf16.mxu0 0
        %2224 = vmatpush2.bf16.xpose.msra.mxu0 0
        %2225 = vmatprep.subr.bf16.mxu0 0
        %2226 = vmatpush2.bf16.xpose.msra.mxu0 0
        %2227 = vmatprep.subr.bf16.mxu0 0
        %2228 = vmatpush2.bf16.xpose.msra.mxu0 0
        %2229 = vmatprep.subr.bf16.mxu0 0
        %2230 = vmatpush2.bf16.xpose.msra.mxu0 0
        %2231 = vmatprep.subr.bf16.mxu0 0
        %2232 = vmatpush2.bf16.xpose.msra.mxu0 0
        %2233 = vmatprep.subr.bf16.mxu0 0
        %2234 = vmatpush2.bf16.xpose.msra.mxu0 0
        %2235 = vmatprep.subr.bf16.mxu0 0
        %2236 = vmatpush2.bf16.xpose.msra.mxu0 0
        %2237 = vmatprep.subr.bf16.mxu0 0
        %2238 = vmatpush2.bf16.xpose.msra.mxu0 0
        %2239 = vmatprep.mubr.bf16.mxu0 0
        %2240 = vmatmul.mubr.bf16.gmra.mxu0 %v2202
        %v2241 = vpop.f32.mrf.mxu0
        %v2242 = vadd.f32 0.0, %v2241
        %v2243 = vpop.f32.mrf.mxu0
        %v2244 = vpop.f32.mrf.mxu0
        %v2245 = vpop.f32.mrf.mxu0
        %2246 = vdwg.mxu0
        %v2247 = vsel %vm1978, %v2242, -inf
        %v2248 = vsel %vm2027, %v2247, -inf
        %2249 = vmax.xlane.f32.xlu0 %v2248
        %v2250 = vpop.xlane.xlu0 %2249
        %v2251 = vsub.f32 %v2247, %v2250
        %v2252 = vmul.f32 %v2251, 1.442695
        %v2253 = vpow.pop %v2252
        %v2254 = vsel %vm2027, %v2253, 0.0
        %2255 = vadd.xlane.f32.xlu0 %v2254
        %v2256 = vpop.xlane.xlu0 %2255
        %v2257 = vpack.c.bf16 %v2253, %v2253
        %v2259 = vsel %vm2027, %v2257, 0
        %v2262 = vsel %vm2041, %v1972, 0
        %2264 = vmatprep.subr.bf16.mxu0 0
        %2265 = vmatpush1.bf16.msra.mxu0 0
        %2266 = vmatprep.subr.bf16.mxu0 0
        %2267 = vmatpush1.bf16.msra.mxu0 0
        %2268 = vmatprep.subr.bf16.mxu0 0
        %2269 = vmatpush1.bf16.msra.mxu0 0
        %2270 = vmatprep.subr.bf16.mxu0 0
        %2271 = vmatpush1.bf16.msra.mxu0 0
        %2272 = vmatprep.subr.bf16.mxu0 0
        %2273 = vmatpush1.bf16.msra.mxu0 0
        %2274 = vmatprep.subr.bf16.mxu0 0
        %2275 = vmatpush1.bf16.msra.mxu0 0
        %2276 = vmatprep.subr.bf16.mxu0 0
        %2277 = vmatpush1.bf16.msra.mxu0 0
        %2278 = vmatprep.subr.bf16.mxu0 0
        %2279 = vmatpush1.bf16.msra.mxu0 %v2262
        %2280 = vmatprep.subr.bf16.mxu0 0
        %2281 = vmatpush2.bf16.msra.mxu0 0
        %2282 = vmatprep.subr.bf16.mxu0 0
        %2283 = vmatpush2.bf16.msra.mxu0 0
        %2284 = vmatprep.subr.bf16.mxu0 0
        %2285 = vmatpush2.bf16.msra.mxu0 0
        %2286 = vmatprep.subr.bf16.mxu0 0
        %2287 = vmatpush2.bf16.msra.mxu0 0
        %2288 = vmatprep.subr.bf16.mxu0 0
        %2289 = vmatpush2.bf16.msra.mxu0 0
        %2290 = vmatprep.subr.bf16.mxu0 0
        %2291 = vmatpush2.bf16.msra.mxu0 0
        %2292 = vmatprep.subr.bf16.mxu0 0
        %2293 = vmatpush2.bf16.msra.mxu0 0
        %2294 = vmatprep.subr.bf16.mxu0 0
        %2295 = vmatpush2.bf16.msra.mxu0 0
        %2296 = vmatprep.mubr.bf16.mxu0 0
        %2297 = vmatmul.mubr.bf16.gmra.mxu0 %v2259
        %v2298 = vpop.f32.mrf.mxu0
        %v2299 = vadd.f32 0.0, %v2298
        %v2300 = vpop.f32.mrf.mxu0
        %v2301 = vpop.f32.mrf.mxu0
        %v2302 = vpop.f32.mrf.mxu0
        %2303 = vdwg.mxu0
        %v2304 = vrcp.pop %v2256
        %v2305 = vmul.f32 %v2299, %v2304
        %2307 = vrot.lane.b32.xlu0 %v1966, 64
        %v2308 = vpop.permute.xlu0 %2307
        %2310 = vrot.lane.b32.xlu0 %v1969, 64
        %v2311 = vpop.permute.xlu0 %2310
        %v2313 = vsel %vm1979, %v2308, 0
        %v2316 = vsel %vm1979, %v2311, 0
        %2318 = vmatprep.subr.bf16.mxu0 0
        %2319 = vmatpush1.bf16.xpose.msra.mxu0 0
        %2320 = vmatprep.subr.bf16.mxu0 0
        %2321 = vmatpush1.bf16.xpose.msra.mxu0 0
        %2322 = vmatprep.subr.bf16.mxu0 0
        %2323 = vmatpush1.bf16.xpose.msra.mxu0 0
        %2324 = vmatprep.subr.bf16.mxu0 0
        %2325 = vmatpush1.bf16.xpose.msra.mxu0 0
        %2326 = vmatprep.subr.bf16.mxu0 0
        %2327 = vmatpush1.bf16.xpose.msra.mxu0 0
        %2328 = vmatprep.subr.bf16.mxu0 0
        %2329 = vmatpush1.bf16.xpose.msra.mxu0 0
        %2330 = vmatprep.subr.bf16.mxu0 0
        %2331 = vmatpush1.bf16.xpose.msra.mxu0 0
        %2332 = vmatprep.subr.bf16.mxu0 0
        %2333 = vmatpush1.bf16.xpose.msra.mxu0 %v2316
        %2334 = vmatprep.subr.bf16.mxu0 0
        %2335 = vmatpush2.bf16.xpose.msra.mxu0 0
        %2336 = vmatprep.subr.bf16.mxu0 0
        %2337 = vmatpush2.bf16.xpose.msra.mxu0 0
        %2338 = vmatprep.subr.bf16.mxu0 0
        %2339 = vmatpush2.bf16.xpose.msra.mxu0 0
        %2340 = vmatprep.subr.bf16.mxu0 0
        %2341 = vmatpush2.bf16.xpose.msra.mxu0 0
        %2342 = vmatprep.subr.bf16.mxu0 0
        %2343 = vmatpush2.bf16.xpose.msra.mxu0 0
        %2344 = vmatprep.subr.bf16.mxu0 0
        %2345 = vmatpush2.bf16.xpose.msra.mxu0 0
        %2346 = vmatprep.subr.bf16.mxu0 0
        %2347 = vmatpush2.bf16.xpose.msra.mxu0 0
        %2348 = vmatprep.subr.bf16.mxu0 0
        %2349 = vmatpush2.bf16.xpose.msra.mxu0 0
        %2350 = vmatprep.mubr.bf16.mxu0 0
        %2351 = vmatmul.mubr.bf16.gmra.mxu0 %v2313
        %v2352 = vpop.f32.mrf.mxu0
        %v2353 = vadd.f32 0.0, %v2352
        %v2354 = vpop.f32.mrf.mxu0
        %v2355 = vpop.f32.mrf.mxu0
        %v2356 = vpop.f32.mrf.mxu0
        %2357 = vdwg.mxu0
        %v2358 = vsel %vm1978, %v2353, -inf
        %v2359 = vsel %vm2027, %v2358, -inf
        %2360 = vmax.xlane.f32.xlu0 %v2359
        %v2361 = vpop.xlane.xlu0 %2360
        %v2362 = vsub.f32 %v2358, %v2361
        %v2363 = vmul.f32 %v2362, 1.442695
        %v2364 = vpow.pop %v2363
        %v2365 = vsel %vm2027, %v2364, 0.0
        %2366 = vadd.xlane.f32.xlu0 %v2365
        %v2367 = vpop.xlane.xlu0 %2366
        %v2368 = vpack.c.bf16 %v2364, %v2364
        %2370 = vrot.lane.b32.xlu0 %v1972, 64
        %v2371 = vpop.permute.xlu0 %2370
        %v2373 = vsel %vm2027, %v2368, 0
        %v2376 = vsel %vm2041, %v2371, 0
        %2378 = vmatprep.subr.bf16.mxu0 0
        %2379 = vmatpush1.bf16.msra.mxu0 0
        %2380 = vmatprep.subr.bf16.mxu0 0
        %2381 = vmatpush1.bf16.msra.mxu0 0
        %2382 = vmatprep.subr.bf16.mxu0 0
        %2383 = vmatpush1.bf16.msra.mxu0 0
        %2384 = vmatprep.subr.bf16.mxu0 0
        %2385 = vmatpush1.bf16.msra.mxu0 0
        %2386 = vmatprep.subr.bf16.mxu0 0
        %2387 = vmatpush1.bf16.msra.mxu0 0
        %2388 = vmatprep.subr.bf16.mxu0 0
        %2389 = vmatpush1.bf16.msra.mxu0 0
        %2390 = vmatprep.subr.bf16.mxu0 0
        %2391 = vmatpush1.bf16.msra.mxu0 0
        %2392 = vmatprep.subr.bf16.mxu0 0
        %2393 = vmatpush1.bf16.msra.mxu0 %v2376
        %2394 = vmatprep.subr.bf16.mxu0 0
        %2395 = vmatpush2.bf16.msra.mxu0 0
        %2396 = vmatprep.subr.bf16.mxu0 0
        %2397 = vmatpush2.bf16.msra.mxu0 0
        %2398 = vmatprep.subr.bf16.mxu0 0
        %2399 = vmatpush2.bf16.msra.mxu0 0
        %2400 = vmatprep.subr.bf16.mxu0 0
        %2401 = vmatpush2.bf16.msra.mxu0 0
        %2402 = vmatprep.subr.bf16.mxu0 0
        %2403 = vmatpush2.bf16.msra.mxu0 0
        %2404 = vmatprep.subr.bf16.mxu0 0
        %2405 = vmatpush2.bf16.msra.mxu0 0
        %2406 = vmatprep.subr.bf16.mxu0 0
        %2407 = vmatpush2.bf16.msra.mxu0 0
        %2408 = vmatprep.subr.bf16.mxu0 0
        %2409 = vmatpush2.bf16.msra.mxu0 0
        %2410 = vmatprep.mubr.bf16.mxu0 0
        %2411 = vmatmul.mubr.bf16.gmra.mxu0 %v2373
        %v2412 = vpop.f32.mrf.mxu0
        %v2413 = vadd.f32 0.0, %v2412
        %v2414 = vpop.f32.mrf.mxu0
        %v2415 = vpop.f32.mrf.mxu0
        %v2416 = vpop.f32.mrf.mxu0
        %2417 = vdwg.mxu0
        %v2418 = vrcp.pop %v2367
        %v2419 = vmul.f32 %v2413, %v2418
        %v2421 = vsel %vm1979, %v1967, 0
        %v2424 = vsel %vm1979, %v1970, 0
        %2426 = vmatprep.subr.bf16.mxu0 0
        %2427 = vmatpush1.bf16.xpose.msra.mxu0 0
        %2428 = vmatprep.subr.bf16.mxu0 0
        %2429 = vmatpush1.bf16.xpose.msra.mxu0 0
        %2430 = vmatprep.subr.bf16.mxu0 0
        %2431 = vmatpush1.bf16.xpose.msra.mxu0 0
        %2432 = vmatprep.subr.bf16.mxu0 0
        %2433 = vmatpush1.bf16.xpose.msra.mxu0 0
        %2434 = vmatprep.subr.bf16.mxu0 0
        %2435 = vmatpush1.bf16.xpose.msra.mxu0 0
        %2436 = vmatprep.subr.bf16.mxu0 0
        %2437 = vmatpush1.bf16.xpose.msra.mxu0 0
        %2438 = vmatprep.subr.bf16.mxu0 0
        %2439 = vmatpush1.bf16.xpose.msra.mxu0 0
        %2440 = vmatprep.subr.bf16.mxu0 0
        %2441 = vmatpush1.bf16.xpose.msra.mxu0 %v2424
        %2442 = vmatprep.subr.bf16.mxu0 0
        %2443 = vmatpush2.bf16.xpose.msra.mxu0 0
        %2444 = vmatprep.subr.bf16.mxu0 0
        %2445 = vmatpush2.bf16.xpose.msra.mxu0 0
        %2446 = vmatprep.subr.bf16.mxu0 0
        %2447 = vmatpush2.bf16.xpose.msra.mxu0 0
        %2448 = vmatprep.subr.bf16.mxu0 0
        %2449 = vmatpush2.bf16.xpose.msra.mxu0 0
        %2450 = vmatprep.subr.bf16.mxu0 0
        %2451 = vmatpush2.bf16.xpose.msra.mxu0 0
        %2452 = vmatprep.subr.bf16.mxu0 0
        %2453 = vmatpush2.bf16.xpose.msra.mxu0 0
        %2454 = vmatprep.subr.bf16.mxu0 0
        %2455 = vmatpush2.bf16.xpose.msra.mxu0 0
        %2456 = vmatprep.subr.bf16.mxu0 0
        %2457 = vmatpush2.bf16.xpose.msra.mxu0 0
        %2458 = vmatprep.mubr.bf16.mxu0 0
        %2459 = vmatmul.mubr.bf16.gmra.mxu0 %v2421
        %v2460 = vpop.f32.mrf.mxu0
        %v2461 = vadd.f32 0.0, %v2460
        %v2462 = vpop.f32.mrf.mxu0
        %v2463 = vpop.f32.mrf.mxu0
        %v2464 = vpop.f32.mrf.mxu0
        %2465 = vdwg.mxu0
        %v2466 = vsel %vm1978, %v2461, -inf
        %v2467 = vsel %vm2027, %v2466, -inf
        %2468 = vmax.xlane.f32.xlu0 %v2467
        %v2469 = vpop.xlane.xlu0 %2468
        %v2470 = vsub.f32 %v2466, %v2469
        %v2471 = vmul.f32 %v2470, 1.442695
        %v2472 = vpow.pop %v2471
        %v2473 = vsel %vm2027, %v2472, 0.0
        %2474 = vadd.xlane.f32.xlu0 %v2473
        %v2475 = vpop.xlane.xlu0 %2474
        %v2476 = vpack.c.bf16 %v2472, %v2472
        %v2478 = vsel %vm2027, %v2476, 0
        %v2481 = vsel %vm2041, %v1973, 0
        %2483 = vmatprep.subr.bf16.mxu0 0
        %2484 = vmatpush1.bf16.msra.mxu0 0
        %2485 = vmatprep.subr.bf16.mxu0 0
        %2486 = vmatpush1.bf16.msra.mxu0 0
        %2487 = vmatprep.subr.bf16.mxu0 0
        %2488 = vmatpush1.bf16.msra.mxu0 0
        %2489 = vmatprep.subr.bf16.mxu0 0
        %2490 = vmatpush1.bf16.msra.mxu0 0
        %2491 = vmatprep.subr.bf16.mxu0 0
        %2492 = vmatpush1.bf16.msra.mxu0 0
        %2493 = vmatprep.subr.bf16.mxu0 0
        %2494 = vmatpush1.bf16.msra.mxu0 0
        %2495 = vmatprep.subr.bf16.mxu0 0
        %2496 = vmatpush1.bf16.msra.mxu0 0
        %2497 = vmatprep.subr.bf16.mxu0 0
        %2498 = vmatpush1.bf16.msra.mxu0 %v2481
        %2499 = vmatprep.subr.bf16.mxu0 0
        %2500 = vmatpush2.bf16.msra.mxu0 0
        %2501 = vmatprep.subr.bf16.mxu0 0
        %2502 = vmatpush2.bf16.msra.mxu0 0
        %2503 = vmatprep.subr.bf16.mxu0 0
        %2504 = vmatpush2.bf16.msra.mxu0 0
        %2505 = vmatprep.subr.bf16.mxu0 0
        %2506 = vmatpush2.bf16.msra.mxu0 0
        %2507 = vmatprep.subr.bf16.mxu0 0
        %2508 = vmatpush2.bf16.msra.mxu0 0
        %2509 = vmatprep.subr.bf16.mxu0 0
        %2510 = vmatpush2.bf16.msra.mxu0 0
        %2511 = vmatprep.subr.bf16.mxu0 0
        %2512 = vmatpush2.bf16.msra.mxu0 0
        %2513 = vmatprep.subr.bf16.mxu0 0
        %2514 = vmatpush2.bf16.msra.mxu0 0
        %2515 = vmatprep.mubr.bf16.mxu0 0
        %2516 = vmatmul.mubr.bf16.gmra.mxu0 %v2478
        %v2517 = vpop.f32.mrf.mxu0
        %v2518 = vadd.f32 0.0, %v2517
        %v2519 = vpop.f32.mrf.mxu0
        %v2520 = vpop.f32.mrf.mxu0
        %v2521 = vpop.f32.mrf.mxu0
        %2522 = vdwg.mxu0
        %v2523 = vrcp.pop %v2475
        %v2524 = vmul.f32 %v2518, %v2523
        %2526 = vrot.lane.b32.xlu0 %v1967, 64
        %v2527 = vpop.permute.xlu0 %2526
        %2529 = vrot.lane.b32.xlu0 %v1970, 64
        %v2530 = vpop.permute.xlu0 %2529
        %v2532 = vsel %vm1979, %v2527, 0
        %v2535 = vsel %vm1979, %v2530, 0
        %2537 = vmatprep.subr.bf16.mxu0 0
        %2538 = vmatpush1.bf16.xpose.msra.mxu0 0
        %2539 = vmatprep.subr.bf16.mxu0 0
        %2540 = vmatpush1.bf16.xpose.msra.mxu0 0
        %2541 = vmatprep.subr.bf16.mxu0 0
        %2542 = vmatpush1.bf16.xpose.msra.mxu0 0
        %2543 = vmatprep.subr.bf16.mxu0 0
        %2544 = vmatpush1.bf16.xpose.msra.mxu0 0
        %2545 = vmatprep.subr.bf16.mxu0 0
        %2546 = vmatpush1.bf16.xpose.msra.mxu0 0
        %2547 = vmatprep.subr.bf16.mxu0 0
        %2548 = vmatpush1.bf16.xpose.msra.mxu0 0
        %2549 = vmatprep.subr.bf16.mxu0 0
        %2550 = vmatpush1.bf16.xpose.msra.mxu0 0
        %2551 = vmatprep.subr.bf16.mxu0 0
        %2552 = vmatpush1.bf16.xpose.msra.mxu0 %v2535
        %2553 = vmatprep.subr.bf16.mxu0 0
        %2554 = vmatpush2.bf16.xpose.msra.mxu0 0
        %2555 = vmatprep.subr.bf16.mxu0 0
        %2556 = vmatpush2.bf16.xpose.msra.mxu0 0
        %2557 = vmatprep.subr.bf16.mxu0 0
        %2558 = vmatpush2.bf16.xpose.msra.mxu0 0
        %2559 = vmatprep.subr.bf16.mxu0 0
        %2560 = vmatpush2.bf16.xpose.msra.mxu0 0
        %2561 = vmatprep.subr.bf16.mxu0 0
        %2562 = vmatpush2.bf16.xpose.msra.mxu0 0
        %2563 = vmatprep.subr.bf16.mxu0 0
        %2564 = vmatpush2.bf16.xpose.msra.mxu0 0
        %2565 = vmatprep.subr.bf16.mxu0 0
        %2566 = vmatpush2.bf16.xpose.msra.mxu0 0
        %2567 = vmatprep.subr.bf16.mxu0 0
        %2568 = vmatpush2.bf16.xpose.msra.mxu0 0
        %2569 = vmatprep.mubr.bf16.mxu0 0
        %2570 = vmatmul.mubr.bf16.gmra.mxu0 %v2532
        %v2571 = vpop.f32.mrf.mxu0
        %v2572 = vadd.f32 0.0, %v2571
        %v2573 = vpop.f32.mrf.mxu0
        %v2574 = vpop.f32.mrf.mxu0
        %v2575 = vpop.f32.mrf.mxu0
        %2576 = vdwg.mxu0
        %v2577 = vsel %vm1978, %v2572, -inf
        %v2578 = vsel %vm2027, %v2577, -inf
        %2579 = vmax.xlane.f32.xlu0 %v2578
        %v2580 = vpop.xlane.xlu0 %2579
        %v2581 = vsub.f32 %v2577, %v2580
        %v2582 = vmul.f32 %v2581, 1.442695
        %v2583 = vpow.pop %v2582
        %v2584 = vsel %vm2027, %v2583, 0.0
        %2585 = vadd.xlane.f32.xlu0 %v2584
        %v2586 = vpop.xlane.xlu0 %2585
        %v2587 = vpack.c.bf16 %v2583, %v2583
        %2589 = vrot.lane.b32.xlu0 %v1973, 64
        %v2590 = vpop.permute.xlu0 %2589
        %v2592 = vsel %vm2027, %v2587, 0
        %v2595 = vsel %vm2041, %v2590, 0
        %2597 = vmatprep.subr.bf16.mxu0 0
        %2598 = vmatpush1.bf16.msra.mxu0 0
        %2599 = vmatprep.subr.bf16.mxu0 0
        %2600 = vmatpush1.bf16.msra.mxu0 0
        %2601 = vmatprep.subr.bf16.mxu0 0
        %2602 = vmatpush1.bf16.msra.mxu0 0
        %2603 = vmatprep.subr.bf16.mxu0 0
        %2604 = vmatpush1.bf16.msra.mxu0 0
        %2605 = vmatprep.subr.bf16.mxu0 0
        %2606 = vmatpush1.bf16.msra.mxu0 0
        %2607 = vmatprep.subr.bf16.mxu0 0
        %2608 = vmatpush1.bf16.msra.mxu0 0
        %2609 = vmatprep.subr.bf16.mxu0 0
        %2610 = vmatpush1.bf16.msra.mxu0 0
        %2611 = vmatprep.subr.bf16.mxu0 0
        %2612 = vmatpush1.bf16.msra.mxu0 %v2595
        %2613 = vmatprep.subr.bf16.mxu0 0
        %2614 = vmatpush2.bf16.msra.mxu0 0
        %2615 = vmatprep.subr.bf16.mxu0 0
        %2616 = vmatpush2.bf16.msra.mxu0 0
        %2617 = vmatprep.subr.bf16.mxu0 0
        %2618 = vmatpush2.bf16.msra.mxu0 0
        %2619 = vmatprep.subr.bf16.mxu0 0
        %2620 = vmatpush2.bf16.msra.mxu0 0
        %2621 = vmatprep.subr.bf16.mxu0 0
        %2622 = vmatpush2.bf16.msra.mxu0 0
        %2623 = vmatprep.subr.bf16.mxu0 0
        %2624 = vmatpush2.bf16.msra.mxu0 0
        %2625 = vmatprep.subr.bf16.mxu0 0
        %2626 = vmatpush2.bf16.msra.mxu0 0
        %2627 = vmatprep.subr.bf16.mxu0 0
        %2628 = vmatpush2.bf16.msra.mxu0 0
        %2629 = vmatprep.mubr.bf16.mxu0 0
        %2630 = vmatmul.mubr.bf16.gmra.mxu0 %v2592
        %v2631 = vpop.f32.mrf.mxu0
        %v2632 = vadd.f32 0.0, %v2631
        %v2633 = vpop.f32.mrf.mxu0
        %v2634 = vpop.f32.mrf.mxu0
        %v2635 = vpop.f32.mrf.mxu0
        %2636 = vdwg.mxu0
        %v2637 = vrcp.pop %v2586
        %v2638 = vmul.f32 %v2632, %v2637
        %2640 = vrot.lane.b32.xlu0 %v2200, 64
        %v2641 = vpop.permute.xlu0 %2640
        %2644 = vrot.lane.b32.xlu0 %v2419, 64
        %v2645 = vpop.permute.xlu0 %2644
        %2648 = vrot.lane.b32.xlu0 %v2638, 64
        %v2649 = vpop.permute.xlu0 %2648
        %v2651 = vsel %vm1979, %v2086, %v2641
        %v2652 = vsel %vm1979, %v2305, %v2645
        %v2653 = vsel %vm1979, %v2524, %v2649
        %v2654 = vpack.c.bf16 %v2651, %v2651
        %v2655 = vpack.c.bf16 %v2652, %v2652
        %v2656 = vpack.c.bf16 %v2653, %v2653
        %v2657 = vld [vmem:[%s2] sm:$0xff]
        %v2658 = vld [vmem:[%s2 + $0x8] sm:$0xf]
        %v2659 = vld [vmem:[%s2 + $0xc] sm:$0xff]
        %v2660 = vld [vmem:[%s2 + $0x14] sm:$0xf]
        %v2661 = vld [vmem:[%s2 + $0x18] sm:$0xff]
        %v2662 = vld [vmem:[%s2 + $0x20] sm:$0xf]
        %v2663 = vld [vmem:[%s2 + $0x24] sm:$0xff]
        %v2664 = vld [vmem:[%s2 + $0x2c] sm:$0xf]
        %v2665 = vld [vmem:[%s2 + $0x30] sm:$0xff]
        %v2666 = vld [vmem:[%s2 + $0x38] sm:$0xf]
        %v2667 = vld [vmem:[%s2 + $0x3c] sm:$0xff]
        %v2668 = vld [vmem:[%s2 + $0x44] sm:$0xf]
        %v2669 = vld [vmem:[%s2 + $0x48] sm:$0xff]
        %v2670 = vld [vmem:[%s2 + $0x50] sm:$0xf]
        %v2671 = vld [vmem:[%s2 + $0x54] sm:$0xff]
        %v2672 = vld [vmem:[%s2 + $0x5c] sm:$0xf]
        %v2673 = vld [vmem:[%s2 + $0x60] sm:$0xff]
        %v2674 = vld [vmem:[%s2 + $0x68] sm:$0xf]
        %v2675 = vld [vmem:[%s2 + $0x6c] sm:$0xff]
        %v2676 = vld [vmem:[%s2 + $0x74] sm:$0xf]
        %v2677 = vld [vmem:[%s2 + $0x78] sm:$0xff]
        %v2678 = vld [vmem:[%s2 + $0x80] sm:$0xf]
        %v2679 = vld [vmem:[%s2 + $0x84] sm:$0xff]
        %v2680 = vld [vmem:[%s2 + $0x8c] sm:$0xf]
        %v2681 = vld [vmem:[%s2 + $0x90] sm:$0xff]
        %v2682 = vld [vmem:[%s2 + $0x98] sm:$0xf]
        %v2683 = vld [vmem:[%s2 + $0x9c] sm:$0xff]
        %v2684 = vld [vmem:[%s2 + $0xa4] sm:$0xf]
        %v2685 = vld [vmem:[%s2 + $0xa8] sm:$0xff]
        %v2686 = vld [vmem:[%s2 + $0xb0] sm:$0xf]
        %v2687 = vld [vmem:[%s2 + $0xb4] sm:$0xff]
        %v2688 = vld [vmem:[%s2 + $0xbc] sm:$0xf]
        %v2689 = vld [vmem:[%s2 + $0xc0] sm:$0xff]
        %v2690 = vld [vmem:[%s2 + $0xc8] sm:$0xf]
        %v2691 = vld [vmem:[%s2 + $0xcc] sm:$0xff]
        %v2692 = vld [vmem:[%s2 + $0xd4] sm:$0xf]
        %v2693 = vld [vmem:[%s2 + $0xd8] sm:$0xff]
        %v2694 = vld [vmem:[%s2 + $0xe0] sm:$0xf]
        %v2695 = vld [vmem:[%s2 + $0xe4] sm:$0xff]
        %v2696 = vld [vmem:[%s2 + $0xec] sm:$0xf]
        %v2697 = vld [vmem:[%s2 + $0xf0] sm:$0xff]
        %v2698 = vld [vmem:[%s2 + $0xf8] sm:$0xf]
        %v2699 = vld [vmem:[%s2 + $0xfc] sm:$0xff]
        %v2700 = vld [vmem:[%s2 + $0x104] sm:$0xf]
        %v2701 = vld [vmem:[%s2 + $0x108] sm:$0xff]
        %v2702 = vld [vmem:[%s2 + $0x110] sm:$0xf]
        %v2703 = vld [vmem:[%s2 + $0x114] sm:$0xff]
        %v2704 = vld [vmem:[%s2 + $0x11c] sm:$0xf]
        %v2705 = vld [vmem:[%s2 + $0x120] sm:$0xff]
        %v2706 = vld [vmem:[%s2 + $0x128] sm:$0xf]
        %v2707 = vld [vmem:[%s2 + $0x12c] sm:$0xff]
        %v2708 = vld [vmem:[%s2 + $0x134] sm:$0xf]
        %v2709 = vld [vmem:[%s2 + $0x138] sm:$0xff]
        %v2710 = vld [vmem:[%s2 + $0x140] sm:$0xf]
        %v2711 = vld [vmem:[%s2 + $0x144] sm:$0xff]
        %v2712 = vld [vmem:[%s2 + $0x14c] sm:$0xf]
        %v2713 = vld [vmem:[%s2 + $0x150] sm:$0xff]
        %v2714 = vld [vmem:[%s2 + $0x158] sm:$0xf]
        %v2715 = vld [vmem:[%s2 + $0x15c] sm:$0xff]
        %v2716 = vld [vmem:[%s2 + $0x164] sm:$0xf]
        %v2717 = vld [vmem:[%s2 + $0x168] sm:$0xff]
        %v2718 = vld [vmem:[%s2 + $0x170] sm:$0xf]
        %v2719 = vld [vmem:[%s2 + $0x174] sm:$0xff]
        %v2720 = vld [vmem:[%s2 + $0x17c] sm:$0xf]
        %v2721 = vld [vmem:[%s2 + $0x180] sm:$0xff]
        %v2722 = vld [vmem:[%s2 + $0x188] sm:$0xf]
        %v2723 = vld [vmem:[%s2 + $0x18c] sm:$0xff]
        %v2724 = vld [vmem:[%s2 + $0x194] sm:$0xf]
        %v2725 = vld [vmem:[%s2 + $0x198] sm:$0xff]
        %v2726 = vld [vmem:[%s2 + $0x1a0] sm:$0xf]
        %v2727 = vld [vmem:[%s2 + $0x1a4] sm:$0xff]
        %v2728 = vld [vmem:[%s2 + $0x1ac] sm:$0xf]
        %v2729 = vld [vmem:[%s2 + $0x1b0] sm:$0xff]
        %v2730 = vld [vmem:[%s2 + $0x1b8] sm:$0xf]
        %v2731 = vld [vmem:[%s2 + $0x1bc] sm:$0xff]
        %v2732 = vld [vmem:[%s2 + $0x1c4] sm:$0xf]
        %v2733 = vld [vmem:[%s2 + $0x1c8] sm:$0xff]
        %v2734 = vld [vmem:[%s2 + $0x1d0] sm:$0xf]
        %v2735 = vld [vmem:[%s2 + $0x1d4] sm:$0xff]
        %v2736 = vld [vmem:[%s2 + $0x1dc] sm:$0xf]
        %v2737 = vld [vmem:[%s2 + $0x1e0] sm:$0xff]
        %v2738 = vld [vmem:[%s2 + $0x1e8] sm:$0xf]
        %v2739 = vld [vmem:[%s2 + $0x1ec] sm:$0xff]
        %v2740 = vld [vmem:[%s2 + $0x1f4] sm:$0xf]
        %v2741 = vld [vmem:[%s2 + $0x1f8] sm:$0xff]
        %v2742 = vld [vmem:[%s2 + $0x200] sm:$0xf]
        %v2743 = vld [vmem:[%s2 + $0x204] sm:$0xff]
        %v2744 = vld [vmem:[%s2 + $0x20c] sm:$0xf]
        %v2745 = vld [vmem:[%s2 + $0x210] sm:$0xff]
        %v2746 = vld [vmem:[%s2 + $0x218] sm:$0xf]
        %v2747 = vld [vmem:[%s2 + $0x21c] sm:$0xff]
        %v2748 = vld [vmem:[%s2 + $0x224] sm:$0xf]
        %v2749 = vld [vmem:[%s2 + $0x228] sm:$0xff]
        %v2750 = vld [vmem:[%s2 + $0x230] sm:$0xf]
        %v2751 = vld [vmem:[%s2 + $0x234] sm:$0xff]
        %v2752 = vld [vmem:[%s2 + $0x23c] sm:$0xf]
        %v2753 = vld [vmem:[%s3] sm:$0x7]
        %v2755 = vlaneseq
        %v2756 = vshrl.u32 %v2755, 7
        %v2757 = vsub.s32 0, %v2756
        %v2758 = vrot.slane %v2753, %v2757
        %v2759 = vlaneseq
        %v2760 = vshrl.u32 %v2759, 7
        %v2761 = vsub.s32 1, %v2760
        %v2762 = vrot.slane %v2753, %v2761
        %v2763 = vlaneseq
        %v2764 = vshrl.u32 %v2763, 7
        %v2765 = vsub.s32 2, %v2764
        %v2766 = vrot.slane %v2753, %v2765
        %v2866 = vunpack.c.l.b16 %v2657
        %v2867 = vunpack.c.h.b16 %v2657
        %v2868 = vunpack.c.l.b16 %v2658
        %v2869 = vunpack.c.l.b16 %v2659
        %v2870 = vunpack.c.h.b16 %v2659
        %v2871 = vunpack.c.l.b16 %v2660
        %v2872 = vunpack.c.l.b16 %v2661
        %v2873 = vunpack.c.h.b16 %v2661
        %v2874 = vunpack.c.l.b16 %v2662
        %v2875 = vunpack.c.l.b16 %v2663
        %v2876 = vunpack.c.h.b16 %v2663
        %v2877 = vunpack.c.l.b16 %v2664
        %v2878 = vunpack.c.l.b16 %v2665
        %v2879 = vunpack.c.h.b16 %v2665
        %v2880 = vunpack.c.l.b16 %v2666
        %v2881 = vunpack.c.l.b16 %v2667
        %v2882 = vunpack.c.h.b16 %v2667
        %v2883 = vunpack.c.l.b16 %v2668
        %v2884 = vunpack.c.l.b16 %v2669
        %v2885 = vunpack.c.h.b16 %v2669
        %v2886 = vunpack.c.l.b16 %v2670
        %v2887 = vunpack.c.l.b16 %v2671
        %v2888 = vunpack.c.h.b16 %v2671
        %v2889 = vunpack.c.l.b16 %v2672
        %v2890 = vunpack.c.l.b16 %v2673
        %v2891 = vunpack.c.h.b16 %v2673
        %v2892 = vunpack.c.l.b16 %v2674
        %v2893 = vunpack.c.l.b16 %v2675
        %v2894 = vunpack.c.h.b16 %v2675
        %v2895 = vunpack.c.l.b16 %v2676
        %v2896 = vunpack.c.l.b16 %v2677
        %v2897 = vunpack.c.h.b16 %v2677
        %v2898 = vunpack.c.l.b16 %v2678
        %v2899 = vunpack.c.l.b16 %v2679
        %v2900 = vunpack.c.h.b16 %v2679
        %v2901 = vunpack.c.l.b16 %v2680
        %v2902 = vunpack.c.l.b16 %v2681
        %v2903 = vunpack.c.h.b16 %v2681
        %v2904 = vunpack.c.l.b16 %v2682
        %v2905 = vunpack.c.l.b16 %v2683
        %v2906 = vunpack.c.h.b16 %v2683
        %v2907 = vunpack.c.l.b16 %v2684
        %v2908 = vunpack.c.l.b16 %v2685
        %v2909 = vunpack.c.h.b16 %v2685
        %v2910 = vunpack.c.l.b16 %v2686
        %v2911 = vunpack.c.l.b16 %v2687
        %v2912 = vunpack.c.h.b16 %v2687
        %v2913 = vunpack.c.l.b16 %v2688
        %v2914 = vunpack.c.l.b16 %v2689
        %v2915 = vunpack.c.h.b16 %v2689
        %v2916 = vunpack.c.l.b16 %v2690
        %v2917 = vunpack.c.l.b16 %v2691
        %v2918 = vunpack.c.h.b16 %v2691
        %v2919 = vunpack.c.l.b16 %v2692
        %v2920 = vunpack.c.l.b16 %v2693
        %v2921 = vunpack.c.h.b16 %v2693
        %v2922 = vunpack.c.l.b16 %v2694
        %v2923 = vunpack.c.l.b16 %v2695
        %v2924 = vunpack.c.h.b16 %v2695
        %v2925 = vunpack.c.l.b16 %v2696
        %v2926 = vunpack.c.l.b16 %v2697
        %v2927 = vunpack.c.h.b16 %v2697
        %v2928 = vunpack.c.l.b16 %v2698
        %v2929 = vunpack.c.l.b16 %v2699
        %v2930 = vunpack.c.h.b16 %v2699
        %v2931 = vunpack.c.l.b16 %v2700
        %v2932 = vunpack.c.l.b16 %v2701
        %v2933 = vunpack.c.h.b16 %v2701
        %v2934 = vunpack.c.l.b16 %v2702
        %v2935 = vunpack.c.l.b16 %v2703
        %v2936 = vunpack.c.h.b16 %v2703
        %v2937 = vunpack.c.l.b16 %v2704
        %v2938 = vunpack.c.l.b16 %v2705
        %v2939 = vunpack.c.h.b16 %v2705
        %v2940 = vunpack.c.l.b16 %v2706
        %v2941 = vunpack.c.l.b16 %v2707
        %v2942 = vunpack.c.h.b16 %v2707
        %v2943 = vunpack.c.l.b16 %v2708
        %v2944 = vunpack.c.l.b16 %v2709
        %v2945 = vunpack.c.h.b16 %v2709
        %v2946 = vunpack.c.l.b16 %v2710
        %v2947 = vunpack.c.l.b16 %v2711
        %v2948 = vunpack.c.h.b16 %v2711
        %v2949 = vunpack.c.l.b16 %v2712
        %v2950 = vunpack.c.l.b16 %v2713
        %v2951 = vunpack.c.h.b16 %v2713
        %v2952 = vunpack.c.l.b16 %v2714
        %v2953 = vunpack.c.l.b16 %v2715
        %v2954 = vunpack.c.h.b16 %v2715
        %v2955 = vunpack.c.l.b16 %v2716
        %v2956 = vunpack.c.l.b16 %v2717
        %v2957 = vunpack.c.h.b16 %v2717
        %v2958 = vunpack.c.l.b16 %v2718
        %v2959 = vunpack.c.l.b16 %v2719
        %v2960 = vunpack.c.h.b16 %v2719
        %v2961 = vunpack.c.l.b16 %v2720
        %v2962 = vunpack.c.l.b16 %v2721
        %v2963 = vunpack.c.h.b16 %v2721
        %v2964 = vunpack.c.l.b16 %v2722
        %v2965 = vunpack.c.l.b16 %v2723
        %v2966 = vunpack.c.h.b16 %v2723
        %v2967 = vunpack.c.l.b16 %v2724
        %v2968 = vunpack.c.l.b16 %v2725
        %v2969 = vunpack.c.h.b16 %v2725
        %v2970 = vunpack.c.l.b16 %v2726
        %v2971 = vunpack.c.l.b16 %v2727
        %v2972 = vunpack.c.h.b16 %v2727
        %v2973 = vunpack.c.l.b16 %v2728
        %v2974 = vunpack.c.l.b16 %v2729
        %v2975 = vunpack.c.h.b16 %v2729
        %v2976 = vunpack.c.l.b16 %v2730
        %v2977 = vunpack.c.l.b16 %v2731
        %v2978 = vunpack.c.h.b16 %v2731
        %v2979 = vunpack.c.l.b16 %v2732
        %v2980 = vunpack.c.l.b16 %v2733
        %v2981 = vunpack.c.h.b16 %v2733
        %v2982 = vunpack.c.l.b16 %v2734
        %v2983 = vunpack.c.l.b16 %v2735
        %v2984 = vunpack.c.h.b16 %v2735
        %v2985 = vunpack.c.l.b16 %v2736
        %v2986 = vunpack.c.l.b16 %v2737
        %v2987 = vunpack.c.h.b16 %v2737
        %v2988 = vunpack.c.l.b16 %v2738
        %v2989 = vunpack.c.l.b16 %v2739
        %v2990 = vunpack.c.h.b16 %v2739
        %v2991 = vunpack.c.l.b16 %v2740
        %v2992 = vunpack.c.l.b16 %v2741
        %v2993 = vunpack.c.h.b16 %v2741
        %v2994 = vunpack.c.l.b16 %v2742
        %v2995 = vunpack.c.l.b16 %v2743
        %v2996 = vunpack.c.h.b16 %v2743
        %v2997 = vunpack.c.l.b16 %v2744
        %v2998 = vunpack.c.l.b16 %v2745
        %v2999 = vunpack.c.h.b16 %v2745
        %v3000 = vunpack.c.l.b16 %v2746
        %v3001 = vunpack.c.l.b16 %v2747
        %v3002 = vunpack.c.h.b16 %v2747
        %v3003 = vunpack.c.l.b16 %v2748
        %v3004 = vunpack.c.l.b16 %v2749
        %v3005 = vunpack.c.h.b16 %v2749
        %v3006 = vunpack.c.l.b16 %v2750
        %v3007 = vunpack.c.l.b16 %v2751
        %v3008 = vunpack.c.h.b16 %v2751
        %v3009 = vunpack.c.l.b16 %v2752
        %v3010 = vpack.c.b16 %v2869, %v2866
        %v3011 = vpack.c.b16 %v2870, %v2867
        %v3012 = vpack.c.b16 %v2871, %v2868
        %v3013 = vpack.c.b16 %v2875, %v2872
        %v3014 = vpack.c.b16 %v2876, %v2873
        %v3015 = vpack.c.b16 %v2877, %v2874
        %v3016 = vpack.c.b16 %v2881, %v2878
        %v3017 = vpack.c.b16 %v2882, %v2879
        %v3018 = vpack.c.b16 %v2883, %v2880
        %v3019 = vpack.c.b16 %v2887, %v2884
        %v3020 = vpack.c.b16 %v2888, %v2885
        %v3021 = vpack.c.b16 %v2889, %v2886
        %v3022 = vpack.c.b16 %v2893, %v2890
        %v3023 = vpack.c.b16 %v2894, %v2891
        %v3024 = vpack.c.b16 %v2895, %v2892
        %v3025 = vpack.c.b16 %v2899, %v2896
        %v3026 = vpack.c.b16 %v2900, %v2897
        %v3027 = vpack.c.b16 %v2901, %v2898
        %v3028 = vpack.c.b16 %v2905, %v2902
        %v3029 = vpack.c.b16 %v2906, %v2903
        %v3030 = vpack.c.b16 %v2907, %v2904
        %v3031 = vpack.c.b16 %v2911, %v2908
        %v3032 = vpack.c.b16 %v2912, %v2909
        %v3033 = vpack.c.b16 %v2913, %v2910
        %v3034 = vpack.c.b16 %v2917, %v2914
        %v3035 = vpack.c.b16 %v2918, %v2915
        %v3036 = vpack.c.b16 %v2919, %v2916
        %v3037 = vpack.c.b16 %v2923, %v2920
        %v3038 = vpack.c.b16 %v2924, %v2921
        %v3039 = vpack.c.b16 %v2925, %v2922
        %v3040 = vpack.c.b16 %v2929, %v2926
        %v3041 = vpack.c.b16 %v2930, %v2927
        %v3042 = vpack.c.b16 %v2931, %v2928
        %v3043 = vpack.c.b16 %v2935, %v2932
        %v3044 = vpack.c.b16 %v2936, %v2933
        %v3045 = vpack.c.b16 %v2937, %v2934
        %v3046 = vpack.c.b16 %v2941, %v2938
        %v3047 = vpack.c.b16 %v2942, %v2939
        %v3048 = vpack.c.b16 %v2943, %v2940
        %v3049 = vpack.c.b16 %v2947, %v2944
        %v3050 = vpack.c.b16 %v2948, %v2945
        %v3051 = vpack.c.b16 %v2949, %v2946
        %v3052 = vpack.c.b16 %v2953, %v2950
        %v3053 = vpack.c.b16 %v2954, %v2951
        %v3054 = vpack.c.b16 %v2955, %v2952
        %v3055 = vpack.c.b16 %v2959, %v2956
        %v3056 = vpack.c.b16 %v2960, %v2957
        %v3057 = vpack.c.b16 %v2961, %v2958
        %v3058 = vpack.c.b16 %v2965, %v2962
        %v3059 = vpack.c.b16 %v2966, %v2963
        %v3060 = vpack.c.b16 %v2967, %v2964
        %v3061 = vpack.c.b16 %v2971, %v2968
        %v3062 = vpack.c.b16 %v2972, %v2969
        %v3063 = vpack.c.b16 %v2973, %v2970
        %v3064 = vpack.c.b16 %v2977, %v2974
        %v3065 = vpack.c.b16 %v2978, %v2975
        %v3066 = vpack.c.b16 %v2979, %v2976
        %v3067 = vpack.c.b16 %v2983, %v2980
        %v3068 = vpack.c.b16 %v2984, %v2981
        %v3069 = vpack.c.b16 %v2985, %v2982
        %v3070 = vpack.c.b16 %v2989, %v2986
        %v3071 = vpack.c.b16 %v2990, %v2987
        %v3072 = vpack.c.b16 %v2991, %v2988
        %v3073 = vpack.c.b16 %v2995, %v2992
        %v3074 = vpack.c.b16 %v2996, %v2993
        %v3075 = vpack.c.b16 %v2997, %v2994
        %v3076 = vpack.c.b16 %v3001, %v2998
        %v3077 = vpack.c.b16 %v3002, %v2999
        %v3078 = vpack.c.b16 %v3003, %v3000
        %v3079 = vpack.c.b16 %v3007, %v3004
        %v3080 = vpack.c.b16 %v3008, %v3005
        %v3081 = vpack.c.b16 %v3009, %v3006
        %3154 = vmatprep.subr.bf16.mxu0 %v3032
        %3155 = vmatpush1.bf16.msra.mxu0 %v3031
        %3156 = vmatprep.subr.bf16.mxu0 %v3029
        %3157 = vmatpush1.bf16.msra.mxu0 %v3028
        %3158 = vmatprep.subr.bf16.mxu0 %v3026
        %3159 = vmatpush1.bf16.msra.mxu0 %v3025
        %3160 = vmatprep.subr.bf16.mxu0 %v3023
        %3161 = vmatpush1.bf16.msra.mxu0 %v3022
        %3162 = vmatprep.subr.bf16.mxu0 %v3020
        %3163 = vmatpush1.bf16.msra.mxu0 %v3019
        %3164 = vmatprep.subr.bf16.mxu0 %v3017
        %3165 = vmatpush1.bf16.msra.mxu0 %v3016
        %3166 = vmatprep.subr.bf16.mxu0 %v3014
        %3167 = vmatpush1.bf16.msra.mxu0 %v3013
        %3168 = vmatprep.subr.bf16.mxu0 %v3011
        %3169 = vmatpush1.bf16.msra.mxu0 %v3010
        %3170 = vmatprep.subr.bf16.mxu0 %v3056
        %3171 = vmatpush2.bf16.msra.mxu0 %v3055
        %3172 = vmatprep.subr.bf16.mxu0 %v3053
        %3173 = vmatpush2.bf16.msra.mxu0 %v3052
        %3174 = vmatprep.subr.bf16.mxu0 %v3050
        %3175 = vmatpush2.bf16.msra.mxu0 %v3049
        %3176 = vmatprep.subr.bf16.mxu0 %v3047
        %3177 = vmatpush2.bf16.msra.mxu0 %v3046
        %3178 = vmatprep.subr.bf16.mxu0 %v3044
        %3179 = vmatpush2.bf16.msra.mxu0 %v3043
        %3180 = vmatprep.subr.bf16.mxu0 %v3041
        %3181 = vmatpush2.bf16.msra.mxu0 %v3040
        %3182 = vmatprep.subr.bf16.mxu0 %v3038
        %3183 = vmatpush2.bf16.msra.mxu0 %v3037
        %3184 = vmatprep.subr.bf16.mxu0 %v3035
        %3185 = vmatpush2.bf16.msra.mxu0 %v3034
        %3186 = vmatprep.mubr.bf16.mxu0 %v2655
        %3187 = vmatmul.mubr.bf16.gmra.mxu0 %v2654
        %v3188 = vpop.f32.mrf.mxu0
        %v3189 = vadd.f32 %v2758, %v3188
        %v3190 = vpop.f32.mrf.mxu0
        %v3191 = vadd.f32 %v2762, %v3190
        %v3192 = vpop.f32.mrf.mxu0
        %v3193 = vpop.f32.mrf.mxu0
        %3194 = vdwg.mxu0
        %3195 = vmatprep.subr.bf16.mxu0 %v3080
        %3196 = vmatpush1.bf16.msra.mxu0 %v3079
        %3197 = vmatprep.subr.bf16.mxu0 %v3077
        %3198 = vmatpush1.bf16.msra.mxu0 %v3076
        %3199 = vmatprep.subr.bf16.mxu0 %v3074
        %3200 = vmatpush1.bf16.msra.mxu0 %v3073
        %3201 = vmatprep.subr.bf16.mxu0 %v3071
        %3202 = vmatpush1.bf16.msra.mxu0 %v3070
        %3203 = vmatprep.subr.bf16.mxu0 %v3068
        %3204 = vmatpush1.bf16.msra.mxu0 %v3067
        %3205 = vmatprep.subr.bf16.mxu0 %v3065
        %3206 = vmatpush1.bf16.msra.mxu0 %v3064
        %3207 = vmatprep.subr.bf16.mxu0 %v3062
        %3208 = vmatpush1.bf16.msra.mxu0 %v3061
        %3209 = vmatprep.subr.bf16.mxu0 %v3059
        %3210 = vmatpush1.bf16.msra.mxu0 %v3058
        %3211 = vmatprep.subr.bf16.mxu0 0
        %3212 = vmatpush2.bf16.msra.mxu0 0
        %3213 = vmatprep.subr.bf16.mxu0 0
        %3214 = vmatpush2.bf16.msra.mxu0 0
        %3215 = vmatprep.subr.bf16.mxu0 0
        %3216 = vmatpush2.bf16.msra.mxu0 0
        %3217 = vmatprep.subr.bf16.mxu0 0
        %3218 = vmatpush2.bf16.msra.mxu0 0
        %3219 = vmatprep.subr.bf16.mxu0 0
        %3220 = vmatpush2.bf16.msra.mxu0 0
        %3221 = vmatprep.subr.bf16.mxu0 0
        %3222 = vmatpush2.bf16.msra.mxu0 0
        %3223 = vmatprep.subr.bf16.mxu0 0
        %3224 = vmatpush2.bf16.msra.mxu0 0
        %3225 = vmatprep.subr.bf16.mxu0 0
        %3226 = vmatpush2.bf16.msra.mxu0 0
        %3227 = vmatprep.mubr.bf16.mxu0 0
        %3228 = vmatmul.mubr.bf16.gmra.mxu0 %v2656
        %v3229 = vpop.f32.mrf.mxu0
        %v3230 = vadd.f32 %v3189, %v3229
        %v3231 = vpop.f32.mrf.mxu0
        %v3232 = vadd.f32 %v3191, %v3231
        %v3233 = vpop.f32.mrf.mxu0
        %v3234 = vpop.f32.mrf.mxu0
        %3235 = vdwg.mxu0
        %3236 = vmatprep.subr.bf16.mxu0 0
        %3237 = vmatpush1.bf16.msra.mxu0 %v3033
        %3238 = vmatprep.subr.bf16.mxu0 0
        %3239 = vmatpush1.bf16.msra.mxu0 %v3030
        %3240 = vmatprep.subr.bf16.mxu0 0
        %3241 = vmatpush1.bf16.msra.mxu0 %v3027
        %3242 = vmatprep.subr.bf16.mxu0 0
        %3243 = vmatpush1.bf16.msra.mxu0 %v3024
        %3244 = vmatprep.subr.bf16.mxu0 0
        %3245 = vmatpush1.bf16.msra.mxu0 %v3021
        %3246 = vmatprep.subr.bf16.mxu0 0
        %3247 = vmatpush1.bf16.msra.mxu0 %v3018
        %3248 = vmatprep.subr.bf16.mxu0 0
        %3249 = vmatpush1.bf16.msra.mxu0 %v3015
        %3250 = vmatprep.subr.bf16.mxu0 0
        %3251 = vmatpush1.bf16.msra.mxu0 %v3012
        %3252 = vmatprep.subr.bf16.mxu0 0
        %3253 = vmatpush2.bf16.msra.mxu0 %v3057
        %3254 = vmatprep.subr.bf16.mxu0 0
        %3255 = vmatpush2.bf16.msra.mxu0 %v3054
        %3256 = vmatprep.subr.bf16.mxu0 0
        %3257 = vmatpush2.bf16.msra.mxu0 %v3051
        %3258 = vmatprep.subr.bf16.mxu0 0
        %3259 = vmatpush2.bf16.msra.mxu0 %v3048
        %3260 = vmatprep.subr.bf16.mxu0 0
        %3261 = vmatpush2.bf16.msra.mxu0 %v3045
        %3262 = vmatprep.subr.bf16.mxu0 0
        %3263 = vmatpush2.bf16.msra.mxu0 %v3042
        %3264 = vmatprep.subr.bf16.mxu0 0
        %3265 = vmatpush2.bf16.msra.mxu0 %v3039
        %3266 = vmatprep.subr.bf16.mxu0 0
        %3267 = vmatpush2.bf16.msra.mxu0 %v3036
        %3268 = vmatprep.mubr.bf16.mxu0 %v2655
        %3269 = vmatmul.mubr.bf16.gmra.mxu0 %v2654
        %v3270 = vpop.f32.mrf.mxu0
        %v3271 = vadd.f32 %v2766, %v3270
        %v3272 = vpop.f32.mrf.mxu0
        %v3273 = vpop.f32.mrf.mxu0
        %v3274 = vpop.f32.mrf.mxu0
        %3275 = vdwg.mxu0
        %3276 = vmatprep.subr.bf16.mxu0 0
        %3277 = vmatpush1.bf16.msra.mxu0 %v3081
        %3278 = vmatprep.subr.bf16.mxu0 0
        %3279 = vmatpush1.bf16.msra.mxu0 %v3078
        %3280 = vmatprep.subr.bf16.mxu0 0
        %3281 = vmatpush1.bf16.msra.mxu0 %v3075
        %3282 = vmatprep.subr.bf16.mxu0 0
        %3283 = vmatpush1.bf16.msra.mxu0 %v3072
        %3284 = vmatprep.subr.bf16.mxu0 0
        %3285 = vmatpush1.bf16.msra.mxu0 %v3069
        %3286 = vmatprep.subr.bf16.mxu0 0
        %3287 = vmatpush1.bf16.msra.mxu0 %v3066
        %3288 = vmatprep.subr.bf16.mxu0 0
        %3289 = vmatpush1.bf16.msra.mxu0 %v3063
        %3290 = vmatprep.subr.bf16.mxu0 0
        %3291 = vmatpush1.bf16.msra.mxu0 %v3060
        %3292 = vmatprep.subr.bf16.mxu0 0
        %3293 = vmatpush2.bf16.msra.mxu0 0
        %3294 = vmatprep.subr.bf16.mxu0 0
        %3295 = vmatpush2.bf16.msra.mxu0 0
        %3296 = vmatprep.subr.bf16.mxu0 0
        %3297 = vmatpush2.bf16.msra.mxu0 0
        %3298 = vmatprep.subr.bf16.mxu0 0
        %3299 = vmatpush2.bf16.msra.mxu0 0
        %3300 = vmatprep.subr.bf16.mxu0 0
        %3301 = vmatpush2.bf16.msra.mxu0 0
        %3302 = vmatprep.subr.bf16.mxu0 0
        %3303 = vmatpush2.bf16.msra.mxu0 0
        %3304 = vmatprep.subr.bf16.mxu0 0
        %3305 = vmatpush2.bf16.msra.mxu0 0
        %3306 = vmatprep.subr.bf16.mxu0 0
        %3307 = vmatpush2.bf16.msra.mxu0 0
        %3308 = vmatprep.mubr.bf16.mxu0 0
        %3309 = vmatmul.mubr.bf16.gmra.mxu0 %v2656
        %v3310 = vpop.f32.mrf.mxu0
        %v3311 = vadd.f32 %v3271, %v3310
        %v3312 = vpop.f32.mrf.mxu0
        %v3313 = vpop.f32.mrf.mxu0
        %v3314 = vpop.f32.mrf.mxu0
        %3315 = vdwg.mxu0
        %3316 = vst [vmem:[%s190] sm:$0xff] %v3230
        %3317 = vst [vmem:[%s190 + $0x8] sm:$0xff] %v3232
        %3318 = vst [vmem:[%s190 + $0x10] sm:$0xff] %v3311
        %s3319 = sand.u32 %s115, 1
        %s3320 = scalar_lea.sflag [#allocation3], %s3319
        %s3321 = sand.u32 %s115, 1
        %s3322 = smul.addr %s3321, 24
        %s3323 = scalar_lea.vmem [#allocation2], %s3322
        // Predicated region
        $region37: #{multi_head_attention.1} parent=35 // pred_check
          %p3324 = pneg %p125
        $region38: #{multi_head_attention.1} parent=35 // pred_check_branch
          %3326 = sbr.rel (%p3324) target = $region40
        $region39: #{multi_head_attention.1} parent=35 // pred_region
          %s3328 = ssub.s32 384, 384
          %3329 = vsyncadd %s3320, %s3328
          %s3330 = smul.addr %s18, 3
          %s3331 = smul.addr %s3330, 128
          %s3332 = scalar_lea.hbm %s4, %s3331
          %s3334 = sshll.u32 %s3323, 4
          %s3335 = int_to_ptr.vmem [resolvable:$true] %s3334
          %3337 = dma.vmem_to_hbm [thread:$0]  %s3335, 384, %s3332, %s3320
        $region40: #{multi_head_attention.1} parent=35 // pred_fallthru
          _
      $region36: #{multi_head_attention.1} parent=5 // pred_fallthru
        _
      %p3338 = scmp.le.s32.totalorder 2, %s13
      // Predicated region
      $region41: #{multi_head_attention.1} parent=5 // pred_check
        %p3339 = pneg %p3338
      $region42: #{multi_head_attention.1} parent=5 // pred_check_branch
        %3341 = sbr.rel (%p3339) target = $region44
      $region43: #{multi_head_attention.1} parent=5 // pred_region
        %s3342 = ssub.s32 %s13, 2
        // Predicated region
        $region45: #{multi_head_attention.1} parent=43 // pred_check
          %p3343 = pneg %p131
        $region46: #{multi_head_attention.1} parent=43 // pred_check_branch
          %3345 = sbr.rel (%p3343) target = $region48
        $region47: #{multi_head_attention.1} parent=43 // pred_region
          %s3346 = sand.u32 %s116, 1
          %s3347 = scalar_lea.sflag [#allocation3], %s3346
          %s3348 = sand.u32 %s116, 1
          %s3349 = smul.addr %s3348, 24
          %s3350 = scalar_lea.vmem [#allocation2], %s3349
          %3351 = dma.done %s3347, 384
        $region48: #{multi_head_attention.1} parent=43 // pred_fallthru
          _
      $region44: #{multi_head_attention.1} parent=5 // pred_fallthru
        _
    $region6: #{multi_head_attention.1} parent=1 // loop_footer
      %s17 = sadd.s32 1, %s13
    $region7: #{multi_head_attention.1} parent=1 // loop_footer_branch
      %12 = sbr.rel target = $region3
    $region8: #{multi_head_attention.1} parent=1 // loop_exit
      _
    %3352 = vsyncpa [#allocation3], 1
    %s3353 = scalar_lea.sflag [#allocation3], 1
    %3354 = vsyncpa %s3353, 1

</llo_original>
